<compile_context>
chip_gen: v5e
topology: v5e:2x2
jax: 0.10.0
libtpu: 0.0.40
codegen_flags: <defaults>
</compile_context>

<pallas_src>
from functools import partial

import numpy as np
import jax
import jax.numpy as jnp
from jax.experimental import pallas as pl
from jax.experimental.pallas import tpu as pltpu

EPS = 1e-5
LRELU_ALPHA = 0.1
PALLAS_MIN_ROWS = 1024            # rows below this -> XLA dot / XLA elementwise
GEMM_VMEM_BUDGET = 12 * 1024 * 1024
VMEM_LIMIT = 40 * 1024 * 1024     # > v5e's 16MiB scoped default, < v7x 64MiB


def _ceil_to(x, m):
    return ((x + m - 1) // m) * m


# ----------------------------------------------------------------------------
# Pallas GEMM (bias fused, bf16 operands, f32 accumulation)
# ----------------------------------------------------------------------------

def _gemm_kernel(x_ref, w_ref, b_ref, o_ref, acc_ref):
    @pl.when(pl.program_id(2) == 0)
    def _():
        acc_ref[...] = jnp.zeros_like(acc_ref)

    acc_ref[...] += jnp.dot(x_ref[...], w_ref[...],
                            preferred_element_type=jnp.float32)

    @pl.when(pl.program_id(2) == pl.num_programs(2) - 1)
    def _():
        o_ref[...] = (acc_ref[...] + b_ref[...]).astype(o_ref.dtype)


def _pick_gemm_tiles(M, K, N):
    Np = _ceil_to(N, 128)
    if Np <= 1024:
        tn = Np
    else:
        tn = 512
        Np = _ceil_to(Np, tn)
    Kp = _ceil_to(K, 128)
    if Kp <= 1536:
        tk = Kp
    else:
        nk = -(-Kp // 1536)
        tk = _ceil_to(-(-Kp // nk), 128)
        Kp = nk * tk
    tm = 8
    for cand in (2048, 1024, 512, 256, 128, 64, 32, 16, 8):
        if cand > _ceil_to(M, 8):
            continue
        foot = (2 * (cand * tk * 2 + tk * tn * 2 + tn * 4 + cand * tn * 4)
                + cand * tn * 4)
        if foot <= GEMM_VMEM_BUDGET:
            tm = cand
            break
    Mp = _ceil_to(M, tm)
    return tm, tk, tn, Mp, Kp, Np


def pallas_matmul_bias(x, w, b):
    M, K = x.shape
    N = w.shape[1]
    tm, tk, tn, Mp, Kp, Np = _pick_gemm_tiles(M, K, N)
    xp = jnp.pad(x.astype(jnp.bfloat16), ((0, Mp - M), (0, Kp - K)))
    wp = jnp.pad(w.astype(jnp.bfloat16), ((0, Kp - K), (0, Np - N)))
    bp = jnp.pad(b.astype(jnp.float32), (0, Np - N)).reshape(1, Np)
    out = pl.pallas_call(
        _gemm_kernel,
        out_shape=jax.ShapeDtypeStruct((Mp, Np), jnp.float32),
        grid=(Mp // tm, Np // tn, Kp // tk),
        in_specs=[
            pl.BlockSpec((tm, tk), lambda i, j, k: (i, k)),
            pl.BlockSpec((tk, tn), lambda i, j, k: (k, j)),
            pl.BlockSpec((1, tn), lambda i, j, k: (0, j)),
        ],
        out_specs=pl.BlockSpec((tm, tn), lambda i, j, k: (i, j)),
        scratch_shapes=[pltpu.VMEM((tm, tn), jnp.float32)],
        compiler_params=pltpu.CompilerParams(
            dimension_semantics=("parallel", "parallel", "arbitrary"),
            vmem_limit_bytes=VMEM_LIMIT),
    )(xp, wp, bp)
    return out[:M, :N]


def matmul_bias(x, w, b):
    """y = x @ w + b.  Pallas MXU kernel for large M, XLA dot otherwise."""
    M, K = x.shape
    if M >= PALLAS_MIN_ROWS:
        return pallas_matmul_bias(x, w, b)
    y = jnp.dot(x.astype(jnp.bfloat16), w.astype(jnp.bfloat16),
                preferred_element_type=jnp.float32)
    return y + b.astype(jnp.float32)


# ----------------------------------------------------------------------------
# Pallas element-wise kernels
# ----------------------------------------------------------------------------

def _pick_row_tile(rows, cols, cap_bytes=512 * 1024, max_rows=4096):
    tl = 8
    while (tl * 2 <= max_rows and rows % (tl * 2) == 0
           and (tl * 2) * cols * 4 <= cap_bytes):
        tl *= 2
    return tl


def _affine_lrelu_kernel(x_ref, s_ref, t_ref, o_ref):
    y = x_ref[...] * s_ref[...] + t_ref[...]
    o_ref[...] = jnp.where(y >= 0, y, LRELU_ALPHA * y)


def _affine_lrelu_add_kernel(x_ref, s_ref, t_ref, k_ref, o_ref):
    y = x_ref[...] * s_ref[...] + t_ref[...]
    y = jnp.where(y >= 0, y, LRELU_ALPHA * y)
    o_ref[...] = y + k_ref[...]


def affine_lrelu(x, scale, shift, skip=None):
    """leaky_relu(x * scale + shift, 0.1) [+ skip]; x/skip:(M,C), scale/shift:(C,)."""
    M, C = x.shape
    k = 1
    if C < 128 and 128 % C == 0 and M % (128 // C) == 0:
        k = 128 // C                     # lane-dense packing for C = 32 / 64
    Mr, Cr = M // k, C * k
    if M < PALLAS_MIN_ROWS or Mr % 8 != 0:
        y = x * scale + shift
        y = jnp.where(y >= 0, y, LRELU_ALPHA * y)
        return y if skip is None else y + skip
    xr = x.reshape(Mr, Cr)
    sr = jnp.tile(scale, k).reshape(1, Cr)
    tr = jnp.tile(shift, k).reshape(1, Cr)
    tl = _pick_row_tile(Mr, Cr)
    big_spec = pl.BlockSpec((tl, Cr), lambda i: (i, 0))
    vec_spec = pl.BlockSpec((1, Cr), lambda i: (0, 0))
    cp = pltpu.CompilerParams(dimension_semantics=("parallel",),
                              vmem_limit_bytes=VMEM_LIMIT)
    if skip is None:
        out = pl.pallas_call(
            _affine_lrelu_kernel,
            out_shape=jax.ShapeDtypeStruct((Mr, Cr), jnp.float32),
            grid=(Mr // tl,),
            in_specs=[big_spec, vec_spec, vec_spec],
            out_specs=big_spec,
            compiler_params=cp,
        )(xr, sr, tr)
    else:
        kr = skip.astype(jnp.float32).reshape(Mr, Cr)
        out = pl.pallas_call(
            _affine_lrelu_add_kernel,
            out_shape=jax.ShapeDtypeStruct((Mr, Cr), jnp.float32),
            grid=(Mr // tl,),
            in_specs=[big_spec, vec_spec, vec_spec, big_spec],
            out_specs=big_spec,
            compiler_params=cp,
        )(xr, sr, tr, kr)
    return out.reshape(M, C)


def _aad_blend_kernel(h_ref, sc_ref, sh_ref, ga_ref, ba_ref, ml_ref,
                      gi_ref, bi_ref, o_ref):
    hn = h_ref[...] * sc_ref[...] + sh_ref[...]          # instance-norm apply
    m = jax.nn.sigmoid(ml_ref[...])
    a = ga_ref[...] * hn + ba_ref[...]
    ident = gi_ref[...] * hn + bi_ref[...]
    y = a + m * (ident - a)
    o_ref[...] = jnp.maximum(y, 0.0)                     # fused ReLU


def aad_blend_relu(h, scale, shift, ga, ba, ml, gi, bi):
    """relu((1-sig(m))*(ga*IN(h)+ba) + sig(m)*(gi*IN(h)+bi)) fused."""
    B, L, C = h.shape
    if L < PALLAS_MIN_ROWS or L % 8 != 0:
        hn = h * scale[:, None, :] + shift[:, None, :]
        m = jax.nn.sigmoid(ml)
        a = ga * hn + ba
        ident = gi[:, None, :] * hn + bi[:, None, :]
        return jnp.maximum(a + m * (ident - a), 0.0)
    tl = _pick_row_tile(L, C)
    sc = scale.reshape(B, 1, C)
    sh = shift.reshape(B, 1, C)
    gi3 = gi.reshape(B, 1, C)
    bi3 = bi.reshape(B, 1, C)
    return pl.pallas_call(
        _aad_blend_kernel,
        out_shape=jax.ShapeDtypeStruct((B, L, C), jnp.float32),
        grid=(B, L // tl),
        in_specs=[
            pl.BlockSpec((1, tl, C), lambda b, i: (b, i, 0)),
            pl.BlockSpec((1, 1, C), lambda b, i: (b, 0, 0)),
            pl.BlockSpec((1, 1, C), lambda b, i: (b, 0, 0)),
            pl.BlockSpec((1, tl, C), lambda b, i: (b, i, 0)),
            pl.BlockSpec((1, tl, C), lambda b, i: (b, i, 0)),
            pl.BlockSpec((1, tl, 1), lambda b, i: (b, i, 0)),
            pl.BlockSpec((1, 1, C), lambda b, i: (b, 0, 0)),
            pl.BlockSpec((1, 1, C), lambda b, i: (b, 0, 0)),
        ],
        out_specs=pl.BlockSpec((1, tl, C), lambda b, i: (b, i, 0)),
        compiler_params=pltpu.CompilerParams(
            dimension_semantics=("parallel", "parallel"),
            vmem_limit_bytes=VMEM_LIMIT),
    )(h, sc, sh, ga, ba, ml, gi3, bi3)


# ----------------------------------------------------------------------------
# Conv / deconv / norm / upsample built on the kernels above
# ----------------------------------------------------------------------------

def conv2d(x, w, b, stride, padding):
    """x: (B,H,W,Cin) NHWC; w: (kh,kw,Cin,Cout).  im2col + GEMM."""
    B, H, W, Cin = x.shape
    kh, kw, _, Cout = w.shape
    x = x.astype(jnp.bfloat16)
    if padding:
        x = jnp.pad(x, ((0, 0), (padding, padding), (padding, padding), (0, 0)))
    Hp, Wp = x.shape[1], x.shape[2]
    Ho = (Hp - kh) // stride + 1
    Wo = (Wp - kw) // stride + 1
    if kh == 1 and kw == 1 and stride == 1:
        patches = x.reshape(B * Ho * Wo, Cin)
    else:
        cols = []
        for di in range(kh):
            for dj in range(kw):
                cols.append(x[:, di:di + stride * Ho:stride,
                              dj:dj + stride * Wo:stride, :])
        patches = jnp.concatenate(cols, axis=-1).reshape(B * Ho * Wo,
                                                         kh * kw * Cin)
    if b is None:
        b = jnp.zeros((Cout,), jnp.float32)
    y = matmul_bias(patches, w.reshape(kh * kw * Cin, Cout), b)
    return y.reshape(B, Ho, Wo, Cout)


def _deconv4x4_s2_phase(x, w, b):
    """ConvTranspose2d(k=4, s=2, p=1) via sub-pixel phase decomposition.

    Output pixel (2m+pa, 2n+pb) only touches the 2x2 input window
    x[m-1+pa : m+1+pa, n-1+pb : n+1+pb] with conv-transpose taps
    w[(3-pa)-2r, (3-pb)-2c].  All four phases are emitted by a single GEMM
    over a 3x3-tap im2col of the (un-dilated) input, with each phase's 2x2
    sub-kernel embedded (zero-padded) into a (9*Cin, 4*Cout) weight.
    """
    B, H, W, Cin = x.shape
    Cout = w.shape[-1]
    xb = x.astype(jnp.bfloat16)
    xp = jnp.pad(xb, ((0, 0), (1, 1), (1, 1), (0, 0)))
    cols = []
    for di in range(3):
        for dj in range(3):
            cols.append(xp[:, di:di + H, dj:dj + W, :])
    patches = jnp.concatenate(cols, axis=-1).reshape(B * H * W, 9 * Cin)
    subs = []
    for pa in (0, 1):
        for pb in (0, 1):
            ws = jnp.stack([
                jnp.stack([w[3 - pa, 3 - pb], w[3 - pa, 1 - pb]], axis=0),
                jnp.stack([w[1 - pa, 3 - pb], w[1 - pa, 1 - pb]], axis=0),
            ], axis=0)                                    # (2,2,Cin,Cout)
            subs.append(jnp.pad(ws, ((pa, 1 - pa), (pb, 1 - pb),
                                     (0, 0), (0, 0))))    # (3,3,Cin,Cout)
    w3 = jnp.stack(subs, axis=3)                          # (3,3,Cin,4,Cout)
    if b is None:
        b = jnp.zeros((Cout,), jnp.float32)
    y = matmul_bias(patches, w3.reshape(9 * Cin, 4 * Cout), jnp.tile(b, 4))
    y = y.reshape(B, H, W, 2, 2, Cout)
    y = jnp.transpose(y, (0, 1, 3, 2, 4, 5)).reshape(B, 2 * H, 2 * W, Cout)
    return y


def conv_transpose2d(x, w, b, stride, padding):
    """ConvTranspose2d.  Phase decomposition for the big (k=4,s=2,p=1) encoder
    deconvs; dilate + flipped conv for the tiny ones."""
    B, H, W, Cin = x.shape
    kh, kw, _, Cout = w.shape
    if (stride == 2 and kh == 4 and kw == 4 and padding == 1
            and B * H * W >= 256):
        return _deconv4x4_s2_phase(x, w, b)
    x = x.astype(jnp.bfloat16)
    if stride > 1:
        xd = jnp.zeros((B, (H - 1) * stride + 1, (W - 1) * stride + 1, Cin),
                       x.dtype)
        xd = xd.at[:, ::stride, ::stride, :].set(x)
    else:
        xd = x
    w_flip = w[::-1, ::-1, :, :]
    return conv2d(xd, w_flip, b, 1, kh - 1 - padding)


def bn_lrelu_apply(y, gamma, beta, skip=None):
    """Training-mode BatchNorm2d (batch stats) + LeakyReLU(0.1) [+ skip]."""
    B, H, W, C = y.shape
    yf = y.reshape(B * H * W, C)
    mean = jnp.mean(yf, axis=0)
    var = jnp.mean(jnp.square(yf), axis=0) - mean * mean
    inv = jax.lax.rsqrt(jnp.maximum(var, 0.0) + EPS)
    scale = gamma * inv
    shift = beta - mean * scale
    sk = None if skip is None else skip.reshape(B * H * W, C)
    return affine_lrelu(yf, scale, shift, sk).reshape(B, H, W, C)


@partial(jax.jit, static_argnames=("stride", "padding"))
def conv_bn_lrelu(x, w, gamma, beta, *, stride, padding):
    return bn_lrelu_apply(conv2d(x, w, None, stride, padding), gamma, beta)


@jax.jit
def deconv_bn_lrelu_add(x, skip, w, gamma, beta):
    y = conv_transpose2d(x, w, None, 2, 1)
    return bn_lrelu_apply(y, gamma, beta, skip)


@jax.jit
def upsample2x(x):
    """F.interpolate(scale_factor=2, mode='bilinear', align_corners=True)."""
    B, H, W, C = x.shape
    Ho, Wo = 2 * H, 2 * W

    def coords(out, inn):
        pos = jnp.arange(out, dtype=jnp.float32) * ((inn - 1) / (out - 1))
        lo = jnp.floor(pos).astype(jnp.int32)
        hi = jnp.minimum(lo + 1, inn - 1)
        return pos - lo.astype(jnp.float32), lo, hi

    fy, y0, y1 = coords(Ho, H)
    fx, x0, x1 = coords(Wo, W)
    left = jnp.take(x, x0, axis=2)
    right = jnp.take(x, x1, axis=2)
    xr = left + (right - left) * fx[None, None, :, None]
    top = jnp.take(xr, y0, axis=1)
    bot = jnp.take(xr, y1, axis=1)
    return top + (bot - top) * fy[None, :, None, None]


@jax.jit
def up1_fwd(z_id, w, b):
    """ConvTranspose2d(c_id, 1024, k=2, s=1, p=0) on a (B,c_id,1,1) code."""
    m = jnp.einsum('bc,ijco->bijo', z_id.astype(jnp.bfloat16), w,
                   preferred_element_type=jnp.float32)
    return m + b


@jax.jit
def aad_relu_conv(h_in, z_attr, z_id, aad_p, conv_w):
    """AADLayer + ReLU + 3x3 conv (one per-block compiled unit)."""
    B, H, W, C = h_in.shape
    L = H * W
    hf = h_in.reshape(B, L, C).astype(jnp.float32)
    # InstanceNorm2d(affine=False) statistics
    mu = jnp.mean(hf, axis=1)
    var = jnp.mean(jnp.square(hf), axis=1) - mu * mu
    inv = jax.lax.rsqrt(jnp.maximum(var, 0.0) + EPS)
    scale, shift = inv, -mu * inv
    # gamma/beta from attributes: stacked 1x1 conv == pixel GEMM (Pallas if big)
    Ca = z_attr.shape[-1]
    gb = matmul_bias(z_attr.reshape(B * L, Ca), aad_p['attr_w'],
                     aad_p['attr_b'])
    ga = gb[:, :C].reshape(B, L, C)
    ba = gb[:, C:].reshape(B, L, C)
    # gamma/beta from the id code (tiny GEMM -> XLA)
    gb_id = (jnp.dot(z_id.astype(jnp.bfloat16), aad_p['fc_w'],
                     preferred_element_type=jnp.float32) + aad_p['fc_b'])
    gi, bi = gb_id[:, :C], gb_id[:, C:]
    # mask logit: 1x1 conv (C -> 1) with the instance-norm folded into it
    w_eff = aad_p['convh_w'][None, :] * scale                       # (B,C)
    b_eff = aad_p['convh_b'] + jnp.sum(aad_p['convh_w'][None, :] * shift,
                                       axis=-1)                     # (B,)
    ml = (jnp.einsum('blc,bc->bl', hf, w_eff) + b_eff[:, None])[..., None]
    # fused IN-apply + blend + ReLU (Pallas), then 3x3 conv
    out = aad_blend_relu(hf, scale, shift, ga, ba, ml, gi, bi)
    out = out.reshape(B, H, W, C)
    return conv2d(out, conv_w, None, 1, 1)


# ----------------------------------------------------------------------------
# Parameter initialization (synthetic, numpy-based -> no device compiles)
# ----------------------------------------------------------------------------

class ParamGen:
    def __init__(self, seed=0):
        self.rng = np.random.default_rng(seed)

    def normal(self, shape, std, dtype=jnp.float32):
        a = self.rng.standard_normal(size=shape, dtype=np.float32) * std
        return jnp.asarray(a, dtype=dtype)

    def conv(self, kh, kw, cin, cout):
        std = (2.0 / ((cin + cout) * kh * kw)) ** 0.5     # xavier_normal_
        return self.normal((kh, kw, cin, cout), std, jnp.bfloat16)

    def matrix(self, cin, cout, std):
        return self.normal((cin, cout), std, jnp.bfloat16)


def init_encoder(pg):
    p = {}
    enc = [(3, 32), (32, 64), (64, 128), (128, 256), (256, 512),
           (512, 1024), (1024, 1024)]
    for i, (ci, co) in enumerate(enc, 1):
        p[f'conv{i}'] = dict(w=pg.conv(4, 4, ci, co),
                             gamma=jnp.ones((co,), jnp.float32),
                             beta=jnp.zeros((co,), jnp.float32))
    dec = [(1024, 1024), (1024, 512), (512, 256), (256, 128), (128, 64),
           (64, 32)]
    for i, (ci, co) in enumerate(dec, 1):
        p[f'deconv{i}'] = dict(w=pg.conv(4, 4, ci, co),
                               gamma=jnp.ones((co,), jnp.float32),
                               beta=jnp.zeros((co,), jnp.float32))
    return p


def init_aad_layer(pg, c_x, c_attr, c_id):
    std_attr = (2.0 / (c_attr + c_x)) ** 0.5
    std_h = (2.0 / (c_x + 1)) ** 0.5
    return dict(
        attr_w=pg.matrix(c_attr, 2 * c_x, std_attr),   # conv1 | conv2 stacked
        attr_b=jnp.zeros((2 * c_x,), jnp.float32),
        fc_w=pg.matrix(c_id, 2 * c_x, 0.001),          # fc1 | fc2 stacked
        fc_b=jnp.zeros((2 * c_x,), jnp.float32),
        convh_w=pg.normal((c_x,), std_h, jnp.float32),
        convh_b=jnp.zeros((), jnp.float32))


def init_aad_resblk(pg, cin, cout, c_attr, c_id, num_blocks):
    add = []
    for i in range(num_blocks):
        out = cin if i < num_blocks - 1 else cout
        add.append(dict(aad=init_aad_layer(pg, cin, c_attr, c_id),
                        conv_w=pg.conv(3, 3, cin, out)))
    p = dict(cin=cin, cout=cout, add=add)
    if cin != cout:
        p['last'] = dict(aad=init_aad_layer(pg, cin, c_attr, c_id),
                         conv_w=pg.conv(3, 3, cin, cout))
    return p


def init_generator(pg, c_id, num_blocks):
    plan = [(1024, 1024, 1024), (1024, 1024, 1024), (1024, 1024, 512),
            (1024, 512, 256), (512, 256, 128), (256, 128, 64),
            (128, 64, 32), (64, 3, 32)]                  # linknet backbone
    std_up = (2.0 / ((c_id + 1024) * 4)) ** 0.5
    return dict(up1_w=pg.normal((2, 2, c_id, 1024), std_up, jnp.bfloat16),
                up1_b=jnp.zeros((1024,), jnp.float32),
                blocks=[init_aad_resblk(pg, ci, co, ca, c_id, num_blocks)
                        for (ci, co, ca) in plan])


def init_aei_net(seed=0, c_id=256, num_blocks=1):
    pg = ParamGen(seed)
    return dict(encoder=init_encoder(pg),
                generator=init_generator(pg, c_id, num_blocks))


# ----------------------------------------------------------------------------
# Forward passes
# ----------------------------------------------------------------------------

def encoder_fwd(p, xt):
    feats = []
    x = xt
    for i in range(1, 8):
        lp = p[f'conv{i}']
        x = conv_bn_lrelu(x, lp['w'], lp['gamma'], lp['beta'],
                          stride=2, padding=1)
        feats.append(x)
    outs = [feats[6]]
    skips = [feats[5], feats[4], feats[3], feats[2], feats[1], feats[0]]
    z = feats[6]
    for i in range(1, 7):
        lp = p[f'deconv{i}']
        z = deconv_bn_lrelu_add(z, skips[i - 1], lp['w'], lp['gamma'],
                                lp['beta'])
        outs.append(z)
    outs.append(upsample2x(z))
    return tuple(outs)


def aad_resblk_fwd(p, h, z_attr, z_id):
    x = h
    for blk in p['add']:
        x = aad_relu_conv(x, z_attr, z_id, blk['aad'], blk['conv_w'])
    if p['cin'] != p['cout']:
        h = aad_relu_conv(h, z_attr, z_id, p['last']['aad'],
                          p['last']['conv_w'])
    return x + h


def generator_fwd(p, z_attr, z_id):
    x = up1_fwd(z_id, p['up1_w'], p['up1_b'])            # (B,2,2,1024)
    for idx in range(7):
        x = upsample2x(aad_resblk_fwd(p['blocks'][idx], x, z_attr[idx], z_id))
    y = aad_resblk_fwd(p['blocks'][7], x, z_attr[7], z_id)
    return jnp.tanh(y)


def aei_net_fwd(params, Xt_nchw, z_id):
    """AEI_Net.forward.  Xt: (B,3,256,256) NCHW, z_id: (B,256)."""
    xt = jnp.transpose(Xt_nchw, (0, 2, 3, 1)).astype(jnp.float32)   # -> NHWC
    attr = encoder_fwd(params['encoder'], xt)
    Y = generator_fwd(params['generator'], attr, z_id.astype(jnp.float32))
    Y_nchw = jnp.transpose(Y, (0, 3, 1, 2))
    attr_nchw = tuple(jnp.transpose(a, (0, 3, 1, 2)) for a in attr)
    return Y_nchw, attr_nchw


# ----------------------------------------------------------------------------
# Main
# ----------------------------------------------------------------------------

if __name__ == "__main__":
    # The architecture hard-wires 7 stride-2 encoder stages against the
    # generator's 2x2..256x256 attribute maps, so the only consistent input is
    # 256x256x3.  batch=1, num_blocks=1 (constructor arg) keep the synthetic
    # workload as small as the module allows.
    B, C_ID = 1, 256
    key = jax.random.PRNGKey(0)
    kx, kz = jax.random.split(key)
    Xt = jax.random.normal(kx, (B, 3, 256, 256), jnp.float32)
    z_id = jax.random.normal(kz, (B, C_ID), jnp.float32)

    params = init_aei_net(seed=0, c_id=C_ID, num_blocks=1)

    Y, attr = aei_net_fwd(params, Xt, z_id)
    Y = jax.block_until_ready(Y)
    for a in attr:
        jax.block_until_ready(a)

    assert Y.shape == (B, 3, 256, 256)
    assert len(attr) == 8
    print("KERNEL_OK")
</pallas_src>

<mosaic_0001>
module attributes {stable_mosaic.version = 11 : i64} {
  func.func @_gemm_kernel(%arg0: i32, %arg1: i32, %arg2: i32, %arg3: memref<2048x128xbf16, #tpu.memory_space<vmem>>, %arg4: memref<128x128xbf16, #tpu.memory_space<vmem>>, %arg5: memref<1x128xf32, #tpu.memory_space<vmem>>, %arg6: memref<2048x128xf32, #tpu.memory_space<vmem>>, %arg7: memref<2048x128xf32, #tpu.memory_space<vmem>>) attributes {dimension_semantics = [#tpu.dimension_semantics<parallel>, #tpu.dimension_semantics<parallel>, #tpu.dimension_semantics<arbitrary>], iteration_bounds = array<i64: 8, 1, 1>, scalar_prefetch = 0 : i64, scratch_operands = 1 : i64, tpu.core_type = #tpu.core_type<tc>, window_params = [{transform_indices = @transform_0, window_bounds = array<i64: 2048, 128>}, {transform_indices = @transform_1, window_bounds = array<i64: 128, 128>}, {transform_indices = @transform_2, window_bounds = array<i64: 1, 128>}, {transform_indices = @transform_3, window_bounds = array<i64: 2048, 128>}]} {
    %c0_i32 = arith.constant 0 : i32
    %0 = arith.cmpi eq, %arg2, %c0_i32 : i32
    %1 = arith.extui %0 : i1 to i32
    %c0_i32_0 = arith.constant 0 : i32
    %2 = arith.cmpi ne, %1, %c0_i32_0 : i32
    scf.if %2 {
      %cst_10 = arith.constant 0.000000e+00 : f32
      %12 = vector.broadcast %cst_10 : f32 to vector<2048x128xf32>
      %c0_11 = arith.constant 0 : index
      %c0_12 = arith.constant 0 : index
      %13 = vector.load %arg7[%c0_11, %c0_12] : memref<2048x128xf32, #tpu.memory_space<vmem>>, vector<2048x128xf32>
      tpu.vector_store %arg7[%c0_11, %c0_12], %12 {strides = array<i32>} : memref<2048x128xf32, #tpu.memory_space<vmem>>, vector<2048x128xf32>,
    } else {
    }
    %c0 = arith.constant 0 : index
    %c0_1 = arith.constant 0 : index
    %3 = vector.load %arg7[%c0, %c0_1] : memref<2048x128xf32, #tpu.memory_space<vmem>>, vector<2048x128xf32>
    %c0_2 = arith.constant 0 : index
    %c0_3 = arith.constant 0 : index
    %4 = vector.load %arg3[%c0_2, %c0_3] : memref<2048x128xbf16, #tpu.memory_space<vmem>>, vector<2048x128xbf16>
    %c0_4 = arith.constant 0 : index
    %c0_5 = arith.constant 0 : index
    %5 = vector.load %arg4[%c0_4, %c0_5] : memref<128x128xbf16, #tpu.memory_space<vmem>>, vector<128x128xbf16>
    %cst = arith.constant dense<0.000000e+00> : vector<2048x128xf32>
    %6 = tpu.matmul %4, %5, %cst {dimension_numbers = #tpu.dot_dimension_numbers<[1], [0], [0], [1], [0, 0, 1, 1], [], []>} : vector<2048x128xbf16>, vector<128x128xbf16>, vector<2048x128xf32> -> vector<2048x128xf32>
    %7 = arith.addf %3, %6 : vector<2048x128xf32>
    %c0_6 = arith.constant 0 : index
    %c0_7 = arith.constant 0 : index
    %8 = vector.load %arg7[%c0_6, %c0_7] : memref<2048x128xf32, #tpu.memory_space<vmem>>, vector<2048x128xf32>
    tpu.vector_store %arg7[%c0_6, %c0_7], %7 {strides = array<i32>} : memref<2048x128xf32, #tpu.memory_space<vmem>>, vector<2048x128xf32>,
    %c0_i32_8 = arith.constant 0 : i32
    %9 = arith.cmpi eq, %arg2, %c0_i32_8 : i32
    %10 = arith.extui %9 : i1 to i32
    %c0_i32_9 = arith.constant 0 : i32
    %11 = arith.cmpi ne, %10, %c0_i32_9 : i32
    scf.if %11 {
      %c0_10 = arith.constant 0 : index
      %c0_11 = arith.constant 0 : index
      %12 = vector.load %arg7[%c0_10, %c0_11] : memref<2048x128xf32, #tpu.memory_space<vmem>>, vector<2048x128xf32>
      %c0_12 = arith.constant 0 : index
      %c0_13 = arith.constant 0 : index
      %13 = vector.load %arg5[%c0_12, %c0_13] : memref<1x128xf32, #tpu.memory_space<vmem>>, vector<1x128xf32>
      %14 = vector.broadcast %13 : vector<1x128xf32> to vector<2048x128xf32>
      %15 = arith.addf %12, %14 : vector<2048x128xf32>
      %c0_14 = arith.constant 0 : index
      %c0_15 = arith.constant 0 : index
      %16 = vector.load %arg6[%c0_14, %c0_15] : memref<2048x128xf32, #tpu.memory_space<vmem>>, vector<2048x128xf32>
      tpu.vector_store %arg6[%c0_14, %c0_15], %15 {strides = array<i32>} : memref<2048x128xf32, #tpu.memory_space<vmem>>, vector<2048x128xf32>,
    } else {
    }
    return
  }
  func.func @transform_0(%arg0: i32, %arg1: i32, %arg2: i32) -> (i32, i32) {
    %c0_i32 = arith.constant 0 : i32
    return %arg0, %arg2 : i32, i32
  }
  func.func @transform_1(%arg0: i32, %arg1: i32, %arg2: i32) -> (i32, i32) {
    %c0_i32 = arith.constant 0 : i32
    return %arg2, %arg1 : i32, i32
  }
  func.func @transform_2(%arg0: i32, %arg1: i32, %arg2: i32) -> (i32, i32) {
    %c0_i32 = arith.constant 0 : i32
    %c0_i32_0 = arith.constant 0 : i32
    return %c0_i32, %arg1 : i32, i32
  }
  func.func @transform_3(%arg0: i32, %arg1: i32, %arg2: i32) -> (i32, i32) {
    %c0_i32 = arith.constant 0 : i32
    return %arg0, %arg1 : i32, i32
  }
}

module attributes {stable_mosaic.version = 11 : i64} {
  func.func @_affine_lrelu_kernel(%arg0: i32, %arg1: memref<1024x128xf32, #tpu.memory_space<vmem>>, %arg2: memref<1x128xf32, #tpu.memory_space<vmem>>, %arg3: memref<1x128xf32, #tpu.memory_space<vmem>>, %arg4: memref<1024x128xf32, #tpu.memory_space<vmem>>) attributes {dimension_semantics = [#tpu.dimension_semantics<parallel>], iteration_bounds = array<i64: 4>, scalar_prefetch = 0 : i64, scratch_operands = 0 : i64, tpu.core_type = #tpu.core_type<tc>, window_params = [{transform_indices = @transform_0, window_bounds = array<i64: 1024, 128>}, {pipeline_mode = #tpu.pipeline_mode<synchronous>, transform_indices = @transform_1, window_bounds = array<i64: 1, 128>}, {pipeline_mode = #tpu.pipeline_mode<synchronous>, transform_indices = @transform_2, window_bounds = array<i64: 1, 128>}, {transform_indices = @transform_3, window_bounds = array<i64: 1024, 128>}]} {
    %c0 = arith.constant 0 : index
    %c0_0 = arith.constant 0 : index
    %0 = vector.load %arg1[%c0, %c0_0] : memref<1024x128xf32, #tpu.memory_space<vmem>>, vector<1024x128xf32>
    %c0_1 = arith.constant 0 : index
    %c0_2 = arith.constant 0 : index
    %1 = vector.load %arg2[%c0_1, %c0_2] : memref<1x128xf32, #tpu.memory_space<vmem>>, vector<1x128xf32>
    %2 = vector.broadcast %1 : vector<1x128xf32> to vector<1024x128xf32>
    %3 = arith.mulf %0, %2 : vector<1024x128xf32>
    %c0_3 = arith.constant 0 : index
    %c0_4 = arith.constant 0 : index
    %4 = vector.load %arg3[%c0_3, %c0_4] : memref<1x128xf32, #tpu.memory_space<vmem>>, vector<1x128xf32>
    %5 = vector.broadcast %4 : vector<1x128xf32> to vector<1024x128xf32>
    %6 = arith.addf %3, %5 : vector<1024x128xf32>
    %cst = arith.constant 0.000000e+00 : f32
    %7 = vector.broadcast %cst : f32 to vector<1024x128xf32>
    %8 = arith.cmpf oge, %6, %7 : vector<1024x128xf32>
    %cst_5 = arith.constant 1.000000e-01 : f32
    %9 = vector.broadcast %cst_5 : f32 to vector<1024x128xf32>
    %10 = arith.mulf %9, %6 : vector<1024x128xf32>
    %11 = arith.select %8, %6, %10 : vector<1024x128xi1>, vector<1024x128xf32>
    %c0_6 = arith.constant 0 : index
    %c0_7 = arith.constant 0 : index
    %12 = vector.load %arg4[%c0_6, %c0_7] : memref<1024x128xf32, #tpu.memory_space<vmem>>, vector<1024x128xf32>
    tpu.vector_store %arg4[%c0_6, %c0_7], %11 {strides = array<i32>} : memref<1024x128xf32, #tpu.memory_space<vmem>>, vector<1024x128xf32>,
    return
  }
  func.func @transform_0(%arg0: i32) -> (i32, i32) {
    %c0_i32 = arith.constant 0 : i32
    %c0_i32_0 = arith.constant 0 : i32
    return %arg0, %c0_i32 : i32, i32
  }
  func.func @transform_1(%arg0: i32) -> (i32, i32) {
    %c0_i32 = arith.constant 0 : i32
    %c0_i32_0 = arith.constant 0 : i32
    %c0_i32_1 = arith.constant 0 : i32
    return %c0_i32, %c0_i32_0 : i32, i32
  }
  func.func @transform_2(%arg0: i32) -> (i32, i32) {
    %c0_i32 = arith.constant 0 : i32
    %c0_i32_0 = arith.constant 0 : i32
    %c0_i32_1 = arith.constant 0 : i32
    return %c0_i32, %c0_i32_0 : i32, i32
  }
  func.func @transform_3(%arg0: i32) -> (i32, i32) {
    %c0_i32 = arith.constant 0 : i32
    %c0_i32_0 = arith.constant 0 : i32
    return %arg0, %c0_i32 : i32, i32
  }
}

</mosaic_0001>

<llo_original>
// kernel: conv_bn_lrelu.2
$region0: #{conv_bn_lrelu.2}
  #allocation0 [shape = 'u32[]', space=smem, size = 0x4, offset = 0x4, fixed_abs, tag = 'smem constant byte address 0x4 - core index']
  #allocation1 [shape = 'u32[72,128]{1,0:T(1,128)}', space=vmem, size = 0x9000, scoped, tag = 'internal scratch']
  #allocation2 [shape = 'f32[2048,128]{1,0:T(8,128)}', space=vmem, size = 0x100000, scoped, tag = 'scratch operand']
  %s0 = inlined_call_operand.vmem [shape: bf16[16384,128], index: 0, kind: input, shape index: {}]
  %s1 = inlined_call_operand.vmem [shape: bf16[128,128], index: 1, kind: input, shape index: {}]
  %s2 = inlined_call_operand.vmem [shape: f32[1,128], index: 2, kind: input, shape index: {}]
  %s3 = inlined_call_operand.vmem [shape: f32[16384,128], index: 3, kind: output, shape index: {}]
  %s4 = sld [smem:[#allocation0]]
  $region53: #{conv_bn_lrelu.2} parent=0
    _
  %s6 = ssub.s32 1, %s4
  %s7 = scalar_select 0, %s6, %s4
  loop: start=0, step=1, limit=10
  $region2: #{conv_bn_lrelu.2} parent=0 // loop_pre_header
    _
  $region3: #{conv_bn_lrelu.2} parent=0 // loop_header
    %s9 = sphi 0, %s13
    %p10 = scmp.ge.s32.totalorder %s9, 10
    %s16 = sphi 0, %s35
    %s17 = sphi 0, %s31
    %s18 = sphi 0, %s27
    %s19 = sphi 0, %s16
    %s20 = sphi 0, %s17
    %s21 = sphi 0, %s18
    %s22 = sphi 0, %s19
    %s23 = sphi 0, %s20
    %s24 = sphi 0, %s21
    %s40 = sphi 0, %s42
    %s43 = sphi 0, %s40
    %s44 = sphi 0, %s43
    %s60 = sphi 0, %s44
    %s68 = sphi 0, %s70
    %s71 = sphi 0, %s68
    %s72 = sphi 0, %s71
    %s88 = sphi 0, %s72
    %s94 = sphi 0, %s96
    %s97 = sphi 0, %s94
    %s98 = sphi 0, %s97
    %s114 = sphi 0, %s98
    %s122 = sphi 0, %s124
    %s125 = sphi 0, %s122
    %s126 = sphi 0, %s125
    %s142 = sphi 0, %s126
  $region4: #{conv_bn_lrelu.2} parent=0 // loop_header_branch
    %12 = sbr.rel (%p10) target = $region8
  $region5: #{conv_bn_lrelu.2} parent=0 // loop_body
    %s14 = ssub.s32 %s9, 1
    %s15 = ssub.s32 %s9, 2
    %s25 = sadd.s32 1, %s18
    %p26 = scmp.ge.s32.totalorder %s25, 1
    %s27 = scalar_select %p26, 0, %s25
    %s28 = sadd.s32 1, %s17
    %s29 = scalar_select %p26, %s28, %s17
    %p30 = scmp.ge.s32.totalorder %s29, 1
    %s31 = scalar_select %p30, 0, %s29
    %s32 = sadd.s32 1, %s16
    %s33 = scalar_select %p30, %s32, %s16
    %p34 = scmp.ge.s32.totalorder %s33, 8
    %s35 = scalar_select %p34, 0, %s33
    %s36 = ssub.s32 %s16, %s35
    %s37 = ssub.s32 %s18, %s27
    %s38 = sor.u32 %s36, %s37
    %p39 = scmp.eq.s32.totalorder %s38, 0
    %s41 = sadd.s32 %s40, 1
    %s42 = scalar_select %p39, %s40, %s41
    %p45 = pneg %p39
    %p46 = scmp.eq.s32.totalorder %s9, 7
    %p47 = por %p45, %p46
    %p48 = scmp.ne.s32.totalorder %s40, %s43
    %p49 = scmp.eq.s32.totalorder %s9, 0
    %p50 = por %p48, %p49
    %p51 = scmp.ne.s32.totalorder %s40, %s43
    %p52 = scmp.eq.s32.totalorder %s14, 7
    %p53 = por %p51, %p52
    %p54 = scmp.ne.s32.totalorder %s43, %s44
    %p55 = scmp.eq.s32.totalorder %s14, 0
    %p56 = por %p54, %p55
    %p57 = scmp.ne.s32.totalorder %s43, %s44
    %p58 = scmp.eq.s32.totalorder %s15, 7
    %p59 = por %p57, %p58
    %p61 = scmp.ne.s32.totalorder %s44, %s60
    %p62 = scmp.eq.s32.totalorder %s15, 0
    %p63 = por %p61, %p62
    %s64 = ssub.s32 %s18, %s27
    %s65 = ssub.s32 %s17, %s31
    %s66 = sor.u32 %s64, %s65
    %p67 = scmp.eq.s32.totalorder %s66, 0
    %s69 = sadd.s32 %s68, 1
    %s70 = scalar_select %p67, %s68, %s69
    %p73 = pneg %p67
    %p74 = scmp.eq.s32.totalorder %s9, 7
    %p75 = por %p73, %p74
    %p76 = scmp.ne.s32.totalorder %s68, %s71
    %p77 = scmp.eq.s32.totalorder %s9, 0
    %p78 = por %p76, %p77
    %p79 = scmp.ne.s32.totalorder %s68, %s71
    %p80 = scmp.eq.s32.totalorder %s14, 7
    %p81 = por %p79, %p80
    %p82 = scmp.ne.s32.totalorder %s71, %s72
    %p83 = scmp.eq.s32.totalorder %s14, 0
    %p84 = por %p82, %p83
    %p85 = scmp.ne.s32.totalorder %s71, %s72
    %p86 = scmp.eq.s32.totalorder %s15, 7
    %p87 = por %p85, %p86
    %p89 = scmp.ne.s32.totalorder %s72, %s88
    %p90 = scmp.eq.s32.totalorder %s15, 0
    %p91 = por %p89, %p90
    %s92 = ssub.s32 %s17, %s31
    %p93 = scmp.eq.s32.totalorder %s92, 0
    %s95 = sadd.s32 %s94, 1
    %s96 = scalar_select %p93, %s94, %s95
    %p99 = pneg %p93
    %p100 = scmp.eq.s32.totalorder %s9, 7
    %p101 = por %p99, %p100
    %p102 = scmp.ne.s32.totalorder %s94, %s97
    %p103 = scmp.eq.s32.totalorder %s9, 0
    %p104 = por %p102, %p103
    %p105 = scmp.ne.s32.totalorder %s94, %s97
    %p106 = scmp.eq.s32.totalorder %s14, 7
    %p107 = por %p105, %p106
    %p108 = scmp.ne.s32.totalorder %s97, %s98
    %p109 = scmp.eq.s32.totalorder %s14, 0
    %p110 = por %p108, %p109
    %p111 = scmp.ne.s32.totalorder %s97, %s98
    %p112 = scmp.eq.s32.totalorder %s15, 7
    %p113 = por %p111, %p112
    %p115 = scmp.ne.s32.totalorder %s98, %s114
    %p116 = scmp.eq.s32.totalorder %s15, 0
    %p117 = por %p115, %p116
    %s118 = ssub.s32 %s16, %s35
    %s119 = ssub.s32 %s17, %s31
    %s120 = sor.u32 %s118, %s119
    %p121 = scmp.eq.s32.totalorder %s120, 0
    %s123 = sadd.s32 %s122, 1
    %s124 = scalar_select %p121, %s122, %s123
    %p127 = pneg %p121
    %p128 = scmp.eq.s32.totalorder %s9, 7
    %p129 = por %p127, %p128
    %p130 = scmp.ne.s32.totalorder %s122, %s125
    %p131 = scmp.eq.s32.totalorder %s9, 0
    %p132 = por %p130, %p131
    %p133 = scmp.ne.s32.totalorder %s122, %s125
    %p134 = scmp.eq.s32.totalorder %s14, 7
    %p135 = por %p133, %p134
    %p136 = scmp.ne.s32.totalorder %s125, %s126
    %p137 = scmp.eq.s32.totalorder %s14, 0
    %p138 = por %p136, %p137
    %p139 = scmp.ne.s32.totalorder %s125, %s126
    %p140 = scmp.eq.s32.totalorder %s15, 7
    %p141 = por %p139, %p140
    %p143 = scmp.ne.s32.totalorder %s126, %s142
    %p144 = scmp.eq.s32.totalorder %s15, 0
    %p145 = por %p143, %p144
    %p146 = scmp.le.s32.totalorder 1, %s9
    %p147 = scmp.lt.s32.totalorder %s9, 9
    %p148 = pnand %p146, %p147
    %p149 = pneg %p148
    // Predicated region
    $region9: #{conv_bn_lrelu.2} parent=5 // pred_check
      _
    $region10: #{conv_bn_lrelu.2} parent=5 // pred_check_branch
      %151 = sbr.rel (%p148) target = $region12
    $region11: #{conv_bn_lrelu.2} parent=5 // pred_region
      %s152 = ssub.s32 %s9, 1
      // Predicated region
      $region13: #{conv_bn_lrelu.2} parent=11 // pred_check
        %p153 = pneg %p84
      $region14: #{conv_bn_lrelu.2} parent=11 // pred_check_branch
        %155 = sbr.rel (%p153) target = $region16
      $region15: #{conv_bn_lrelu.2} parent=11 // pred_region
        %s156 = smul.u32 16, %s21
        %p157 = scmp.lt.s32.totalorder %s156, 15
        %s158 = scalar_select %p157, %s156, 15
        %p159 = scmp.lt.s32.totalorder %s20, 0
        %s160 = scalar_select %p159, %s20, 0
        %s161 = sadd.s32 %s160, %s158
        %s162 = smul.addr %s161, 4
        %s163 = scalar_lea.vmem %s1, %s162
        %s164 = smul.u32 16, %s21
      $region16: #{conv_bn_lrelu.2} parent=11 // pred_fallthru
        _
      // Predicated region
      $region17: #{conv_bn_lrelu.2} parent=11 // pred_check
        %p165 = pneg %p110
      $region18: #{conv_bn_lrelu.2} parent=11 // pred_check_branch
        %167 = sbr.rel (%p165) target = $region20
      $region19: #{conv_bn_lrelu.2} parent=11 // pred_region
        %p168 = scmp.lt.s32.totalorder %s20, 0
        %s169 = scalar_select %p168, %s20, 0
        %s170 = scalar_lea.vmem %s2, %s169
      $region20: #{conv_bn_lrelu.2} parent=11 // pred_fallthru
        _
    $region12: #{conv_bn_lrelu.2} parent=5 // pred_fallthru
      _
    %p171 = scmp.lt.s32.totalorder %s9, 8
    // Predicated region
    $region21: #{conv_bn_lrelu.2} parent=5 // pred_check
      %p172 = pneg %p171
    $region22: #{conv_bn_lrelu.2} parent=5 // pred_check_branch
      %174 = sbr.rel (%p172) target = $region24
    $region23: #{conv_bn_lrelu.2} parent=5 // pred_region
      // Predicated region
      $region25: #{conv_bn_lrelu.2} parent=23 // pred_check
        %p175 = pneg %p50
      $region26: #{conv_bn_lrelu.2} parent=23 // pred_check_branch
        %177 = sbr.rel (%p175) target = $region28
      $region27: #{conv_bn_lrelu.2} parent=23 // pred_region
        %s178 = smul.u32 256, %s16
        %p179 = scmp.lt.s32.totalorder %s178, 2047
        %s180 = scalar_select %p179, %s178, 2047
        %p181 = scmp.lt.s32.totalorder %s18, 0
        %s182 = scalar_select %p181, %s18, 0
        %s183 = sadd.s32 %s182, %s180
        %s184 = smul.addr %s183, 4
        %s185 = scalar_lea.vmem %s0, %s184
        %s186 = smul.u32 256, %s16
      $region28: #{conv_bn_lrelu.2} parent=23 // pred_fallthru
        _
    $region24: #{conv_bn_lrelu.2} parent=5 // pred_fallthru
      _
    %p187 = scmp.le.s32.totalorder 1, %s9
    %p188 = scmp.lt.s32.totalorder %s9, 9
    %p189 = pnand %p187, %p188
    %p190 = pneg %p189
    // Predicated region
    $region29: #{conv_bn_lrelu.2} parent=5 // pred_check
      _
    $region30: #{conv_bn_lrelu.2} parent=5 // pred_check_branch
      %192 = sbr.rel (%p189) target = $region32
    $region31: #{conv_bn_lrelu.2} parent=5 // pred_region
      %s193 = ssub.s32 %s9, 1
      %s194 = smul.u32 256, %s19
      %p195 = scmp.lt.s32.totalorder %s194, 2047
      %s196 = scalar_select %p195, %s194, 2047
      %p197 = scmp.lt.s32.totalorder %s21, 0
      %s198 = scalar_select %p197, %s21, 0
      %s199 = sadd.s32 %s198, %s196
      %s200 = smul.addr %s199, 4
      %s201 = scalar_lea.vmem %s0, %s200
      %p202 = pneg %p56
      %p203 = pneg %p53
      %s204 = smul.u32 16, %s21
      %p205 = scmp.lt.s32.totalorder %s204, 15
      %s206 = scalar_select %p205, %s204, 15
      %p207 = scmp.lt.s32.totalorder %s20, 0
      %s208 = scalar_select %p207, %s20, 0
      %s209 = sadd.s32 %s208, %s206
      %s210 = smul.addr %s209, 4
      %s211 = scalar_lea.vmem %s1, %s210
      %p212 = pneg %p84
      %p213 = pneg %p81
      %p214 = scmp.lt.s32.totalorder %s20, 0
      %s215 = scalar_select %p214, %s20, 0
      %s216 = scalar_lea.vmem %s2, %s215
      %p217 = pneg %p110
      %p218 = pneg %p107
      %p219 = pneg %p138
      %p220 = pneg %p135
      %s221 = smul.u32 256, %s19
      %p222 = scmp.lt.s32.totalorder %s221, 2047
      %s223 = scalar_select %p222, %s221, 2047
      %p224 = scmp.lt.s32.totalorder %s20, 0
      %s225 = scalar_select %p224, %s20, 0
      %s226 = sadd.s32 %s225, %s223
      %s227 = smul.addr %s226, 8
      %s228 = scalar_lea.vmem %s3, %s227
      %s229 = smul.u32 256, %s19
      %p230 = scmp.lt.s32.totalorder %s229, 2047
      %s231 = scalar_select %p230, %s229, 2047
      %p232 = scmp.lt.s32.totalorder %s21, 0
      %s233 = scalar_select %p232, %s21, 0
      %s234 = sadd.s32 %s233, %s231
      %s235 = smul.addr %s234, 4
      %s236 = scalar_lea.vmem %s0, %s235
      %s237 = smul.u32 256, %s19
      %s238 = smul.u32 16, %s21
      %p239 = scmp.lt.s32.totalorder %s238, 15
      %s240 = scalar_select %p239, %s238, 15
      %p241 = scmp.lt.s32.totalorder %s20, 0
      %s242 = scalar_select %p241, %s20, 0
      %s243 = sadd.s32 %s242, %s240
      %s244 = smul.addr %s243, 4
      %s245 = scalar_lea.vmem %s1, %s244
      %s246 = smul.u32 16, %s21
      %p247 = scmp.lt.s32.totalorder %s20, 0
      %s248 = scalar_select %p247, %s20, 0
      %s249 = scalar_lea.vmem %s2, %s248
      %s250 = smul.u32 256, %s19
      %p251 = scmp.lt.s32.totalorder %s250, 2047
      %s252 = scalar_select %p251, %s250, 2047
      %p253 = scmp.lt.s32.totalorder %s20, 0
      %s254 = scalar_select %p253, %s20, 0
      %s255 = sadd.s32 %s254, %s252
      %s256 = smul.addr %s255, 8
      %s257 = scalar_lea.vmem %s3, %s256
      %s258 = smul.u32 256, %s19
      %p259 = scmp.eq.s32.totalorder %s21, 0
      // Predicated region
      $region33: #{conv_bn_lrelu.2} parent=31 // pred_check
        %p260 = pneg %p259
      $region34: #{conv_bn_lrelu.2} parent=31 // pred_check_branch
        %262 = sbr.rel (%p260) target = $region36
      $region35: #{conv_bn_lrelu.2} parent=31 // pred_region
        %263 = vst [vmem:[#allocation2] sm:$0xff] 0.0
        %264 = vst [vmem:[#allocation2 + $0x8] sm:$0xff] 0.0
        %265 = vst [vmem:[#allocation2 + $0x10] sm:$0xff] 0.0
        %266 = vst [vmem:[#allocation2 + $0x18] sm:$0xff] 0.0
        %267 = vst [vmem:[#allocation2 + $0x20] sm:$0xff] 0.0
        %268 = vst [vmem:[#allocation2 + $0x28] sm:$0xff] 0.0
        %269 = vst [vmem:[#allocation2 + $0x30] sm:$0xff] 0.0
        %270 = vst [vmem:[#allocation2 + $0x38] sm:$0xff] 0.0
        %271 = vst [vmem:[#allocation2 + $0x40] sm:$0xff] 0.0
        %272 = vst [vmem:[#allocation2 + $0x48] sm:$0xff] 0.0
        %273 = vst [vmem:[#allocation2 + $0x50] sm:$0xff] 0.0
        %274 = vst [vmem:[#allocation2 + $0x58] sm:$0xff] 0.0
        %275 = vst [vmem:[#allocation2 + $0x60] sm:$0xff] 0.0
        %276 = vst [vmem:[#allocation2 + $0x68] sm:$0xff] 0.0
        %277 = vst [vmem:[#allocation2 + $0x70] sm:$0xff] 0.0
        %278 = vst [vmem:[#allocation2 + $0x78] sm:$0xff] 0.0
        %279 = vst [vmem:[#allocation2 + $0x80] sm:$0xff] 0.0
        %280 = vst [vmem:[#allocation2 + $0x88] sm:$0xff] 0.0
        %281 = vst [vmem:[#allocation2 + $0x90] sm:$0xff] 0.0
        %282 = vst [vmem:[#allocation2 + $0x98] sm:$0xff] 0.0
        %283 = vst [vmem:[#allocation2 + $0xa0] sm:$0xff] 0.0
        %284 = vst [vmem:[#allocation2 + $0xa8] sm:$0xff] 0.0
        %285 = vst [vmem:[#allocation2 + $0xb0] sm:$0xff] 0.0
        %286 = vst [vmem:[#allocation2 + $0xb8] sm:$0xff] 0.0
        %287 = vst [vmem:[#allocation2 + $0xc0] sm:$0xff] 0.0
        %288 = vst [vmem:[#allocation2 + $0xc8] sm:$0xff] 0.0
        %289 = vst [vmem:[#allocation2 + $0xd0] sm:$0xff] 0.0
        %290 = vst [vmem:[#allocation2 + $0xd8] sm:$0xff] 0.0
        %291 = vst [vmem:[#allocation2 + $0xe0] sm:$0xff] 0.0
        %292 = vst [vmem:[#allocation2 + $0xe8] sm:$0xff] 0.0
        %293 = vst [vmem:[#allocation2 + $0xf0] sm:$0xff] 0.0
        %294 = vst [vmem:[#allocation2 + $0xf8] sm:$0xff] 0.0
        %295 = vst [vmem:[#allocation2 + $0x100] sm:$0xff] 0.0
        %296 = vst [vmem:[#allocation2 + $0x108] sm:$0xff] 0.0
        %297 = vst [vmem:[#allocation2 + $0x110] sm:$0xff] 0.0
        %298 = vst [vmem:[#allocation2 + $0x118] sm:$0xff] 0.0
        %299 = vst [vmem:[#allocation2 + $0x120] sm:$0xff] 0.0
        %300 = vst [vmem:[#allocation2 + $0x128] sm:$0xff] 0.0
        %301 = vst [vmem:[#allocation2 + $0x130] sm:$0xff] 0.0
        %302 = vst [vmem:[#allocation2 + $0x138] sm:$0xff] 0.0
        %303 = vst [vmem:[#allocation2 + $0x140] sm:$0xff] 0.0
        %304 = vst [vmem:[#allocation2 + $0x148] sm:$0xff] 0.0
        %305 = vst [vmem:[#allocation2 + $0x150] sm:$0xff] 0.0
        %306 = vst [vmem:[#allocation2 + $0x158] sm:$0xff] 0.0
        %307 = vst [vmem:[#allocation2 + $0x160] sm:$0xff] 0.0
        %308 = vst [vmem:[#allocation2 + $0x168] sm:$0xff] 0.0
        %309 = vst [vmem:[#allocation2 + $0x170] sm:$0xff] 0.0
        %310 = vst [vmem:[#allocation2 + $0x178] sm:$0xff] 0.0
        %311 = vst [vmem:[#allocation2 + $0x180] sm:$0xff] 0.0
        %312 = vst [vmem:[#allocation2 + $0x188] sm:$0xff] 0.0
        %313 = vst [vmem:[#allocation2 + $0x190] sm:$0xff] 0.0
        %314 = vst [vmem:[#allocation2 + $0x198] sm:$0xff] 0.0
        %315 = vst [vmem:[#allocation2 + $0x1a0] sm:$0xff] 0.0
        %316 = vst [vmem:[#allocation2 + $0x1a8] sm:$0xff] 0.0
        %317 = vst [vmem:[#allocation2 + $0x1b0] sm:$0xff] 0.0
        %318 = vst [vmem:[#allocation2 + $0x1b8] sm:$0xff] 0.0
        %319 = vst [vmem:[#allocation2 + $0x1c0] sm:$0xff] 0.0
        %320 = vst [vmem:[#allocation2 + $0x1c8] sm:$0xff] 0.0
        %321 = vst [vmem:[#allocation2 + $0x1d0] sm:$0xff] 0.0
        %322 = vst [vmem:[#allocation2 + $0x1d8] sm:$0xff] 0.0
        %323 = vst [vmem:[#allocation2 + $0x1e0] sm:$0xff] 0.0
        %324 = vst [vmem:[#allocation2 + $0x1e8] sm:$0xff] 0.0
        %325 = vst [vmem:[#allocation2 + $0x1f0] sm:$0xff] 0.0
        %326 = vst [vmem:[#allocation2 + $0x1f8] sm:$0xff] 0.0
        %327 = vst [vmem:[#allocation2 + $0x200] sm:$0xff] 0.0
        %328 = vst [vmem:[#allocation2 + $0x208] sm:$0xff] 0.0
        %329 = vst [vmem:[#allocation2 + $0x210] sm:$0xff] 0.0
        %330 = vst [vmem:[#allocation2 + $0x218] sm:$0xff] 0.0
        %331 = vst [vmem:[#allocation2 + $0x220] sm:$0xff] 0.0
        %332 = vst [vmem:[#allocation2 + $0x228] sm:$0xff] 0.0
        %333 = vst [vmem:[#allocation2 + $0x230] sm:$0xff] 0.0
        %334 = vst [vmem:[#allocation2 + $0x238] sm:$0xff] 0.0
        %335 = vst [vmem:[#allocation2 + $0x240] sm:$0xff] 0.0
        %336 = vst [vmem:[#allocation2 + $0x248] sm:$0xff] 0.0
        %337 = vst [vmem:[#allocation2 + $0x250] sm:$0xff] 0.0
        %338 = vst [vmem:[#allocation2 + $0x258] sm:$0xff] 0.0
        %339 = vst [vmem:[#allocation2 + $0x260] sm:$0xff] 0.0
        %340 = vst [vmem:[#allocation2 + $0x268] sm:$0xff] 0.0
        %341 = vst [vmem:[#allocation2 + $0x270] sm:$0xff] 0.0
        %342 = vst [vmem:[#allocation2 + $0x278] sm:$0xff] 0.0
        %343 = vst [vmem:[#allocation2 + $0x280] sm:$0xff] 0.0
        %344 = vst [vmem:[#allocation2 + $0x288] sm:$0xff] 0.0
        %345 = vst [vmem:[#allocation2 + $0x290] sm:$0xff] 0.0
        %346 = vst [vmem:[#allocation2 + $0x298] sm:$0xff] 0.0
        %347 = vst [vmem:[#allocation2 + $0x2a0] sm:$0xff] 0.0
        %348 = vst [vmem:[#allocation2 + $0x2a8] sm:$0xff] 0.0
        %349 = vst [vmem:[#allocation2 + $0x2b0] sm:$0xff] 0.0
        %350 = vst [vmem:[#allocation2 + $0x2b8] sm:$0xff] 0.0
        %351 = vst [vmem:[#allocation2 + $0x2c0] sm:$0xff] 0.0
        %352 = vst [vmem:[#allocation2 + $0x2c8] sm:$0xff] 0.0
        %353 = vst [vmem:[#allocation2 + $0x2d0] sm:$0xff] 0.0
        %354 = vst [vmem:[#allocation2 + $0x2d8] sm:$0xff] 0.0
        %355 = vst [vmem:[#allocation2 + $0x2e0] sm:$0xff] 0.0
        %356 = vst [vmem:[#allocation2 + $0x2e8] sm:$0xff] 0.0
        %357 = vst [vmem:[#allocation2 + $0x2f0] sm:$0xff] 0.0
        %358 = vst [vmem:[#allocation2 + $0x2f8] sm:$0xff] 0.0
        %359 = vst [vmem:[#allocation2 + $0x300] sm:$0xff] 0.0
        %360 = vst [vmem:[#allocation2 + $0x308] sm:$0xff] 0.0
        %361 = vst [vmem:[#allocation2 + $0x310] sm:$0xff] 0.0
        %362 = vst [vmem:[#allocation2 + $0x318] sm:$0xff] 0.0
        %363 = vst [vmem:[#allocation2 + $0x320] sm:$0xff] 0.0
        %364 = vst [vmem:[#allocation2 + $0x328] sm:$0xff] 0.0
        %365 = vst [vmem:[#allocation2 + $0x330] sm:$0xff] 0.0
        %366 = vst [vmem:[#allocation2 + $0x338] sm:$0xff] 0.0
        %367 = vst [vmem:[#allocation2 + $0x340] sm:$0xff] 0.0
        %368 = vst [vmem:[#allocation2 + $0x348] sm:$0xff] 0.0
        %369 = vst [vmem:[#allocation2 + $0x350] sm:$0xff] 0.0
        %370 = vst [vmem:[#allocation2 + $0x358] sm:$0xff] 0.0
        %371 = vst [vmem:[#allocation2 + $0x360] sm:$0xff] 0.0
        %372 = vst [vmem:[#allocation2 + $0x368] sm:$0xff] 0.0
        %373 = vst [vmem:[#allocation2 + $0x370] sm:$0xff] 0.0
        %374 = vst [vmem:[#allocation2 + $0x378] sm:$0xff] 0.0
        %375 = vst [vmem:[#allocation2 + $0x380] sm:$0xff] 0.0
        %376 = vst [vmem:[#allocation2 + $0x388] sm:$0xff] 0.0
        %377 = vst [vmem:[#allocation2 + $0x390] sm:$0xff] 0.0
        %378 = vst [vmem:[#allocation2 + $0x398] sm:$0xff] 0.0
        %379 = vst [vmem:[#allocation2 + $0x3a0] sm:$0xff] 0.0
        %380 = vst [vmem:[#allocation2 + $0x3a8] sm:$0xff] 0.0
        %381 = vst [vmem:[#allocation2 + $0x3b0] sm:$0xff] 0.0
        %382 = vst [vmem:[#allocation2 + $0x3b8] sm:$0xff] 0.0
        %383 = vst [vmem:[#allocation2 + $0x3c0] sm:$0xff] 0.0
        %384 = vst [vmem:[#allocation2 + $0x3c8] sm:$0xff] 0.0
        %385 = vst [vmem:[#allocation2 + $0x3d0] sm:$0xff] 0.0
        %386 = vst [vmem:[#allocation2 + $0x3d8] sm:$0xff] 0.0
        %387 = vst [vmem:[#allocation2 + $0x3e0] sm:$0xff] 0.0
        %388 = vst [vmem:[#allocation2 + $0x3e8] sm:$0xff] 0.0
        %389 = vst [vmem:[#allocation2 + $0x3f0] sm:$0xff] 0.0
        %390 = vst [vmem:[#allocation2 + $0x3f8] sm:$0xff] 0.0
        %391 = vst [vmem:[#allocation2 + $0x400] sm:$0xff] 0.0
        %392 = vst [vmem:[#allocation2 + $0x408] sm:$0xff] 0.0
        %393 = vst [vmem:[#allocation2 + $0x410] sm:$0xff] 0.0
        %394 = vst [vmem:[#allocation2 + $0x418] sm:$0xff] 0.0
        %395 = vst [vmem:[#allocation2 + $0x420] sm:$0xff] 0.0
        %396 = vst [vmem:[#allocation2 + $0x428] sm:$0xff] 0.0
        %397 = vst [vmem:[#allocation2 + $0x430] sm:$0xff] 0.0
        %398 = vst [vmem:[#allocation2 + $0x438] sm:$0xff] 0.0
        %399 = vst [vmem:[#allocation2 + $0x440] sm:$0xff] 0.0
        %400 = vst [vmem:[#allocation2 + $0x448] sm:$0xff] 0.0
        %401 = vst [vmem:[#allocation2 + $0x450] sm:$0xff] 0.0
        %402 = vst [vmem:[#allocation2 + $0x458] sm:$0xff] 0.0
        %403 = vst [vmem:[#allocation2 + $0x460] sm:$0xff] 0.0
        %404 = vst [vmem:[#allocation2 + $0x468] sm:$0xff] 0.0
        %405 = vst [vmem:[#allocation2 + $0x470] sm:$0xff] 0.0
        %406 = vst [vmem:[#allocation2 + $0x478] sm:$0xff] 0.0
        %407 = vst [vmem:[#allocation2 + $0x480] sm:$0xff] 0.0
        %408 = vst [vmem:[#allocation2 + $0x488] sm:$0xff] 0.0
        %409 = vst [vmem:[#allocation2 + $0x490] sm:$0xff] 0.0
        %410 = vst [vmem:[#allocation2 + $0x498] sm:$0xff] 0.0
        %411 = vst [vmem:[#allocation2 + $0x4a0] sm:$0xff] 0.0
        %412 = vst [vmem:[#allocation2 + $0x4a8] sm:$0xff] 0.0
        %413 = vst [vmem:[#allocation2 + $0x4b0] sm:$0xff] 0.0
        %414 = vst [vmem:[#allocation2 + $0x4b8] sm:$0xff] 0.0
        %415 = vst [vmem:[#allocation2 + $0x4c0] sm:$0xff] 0.0
        %416 = vst [vmem:[#allocation2 + $0x4c8] sm:$0xff] 0.0
        %417 = vst [vmem:[#allocation2 + $0x4d0] sm:$0xff] 0.0
        %418 = vst [vmem:[#allocation2 + $0x4d8] sm:$0xff] 0.0
        %419 = vst [vmem:[#allocation2 + $0x4e0] sm:$0xff] 0.0
        %420 = vst [vmem:[#allocation2 + $0x4e8] sm:$0xff] 0.0
        %421 = vst [vmem:[#allocation2 + $0x4f0] sm:$0xff] 0.0
        %422 = vst [vmem:[#allocation2 + $0x4f8] sm:$0xff] 0.0
        %423 = vst [vmem:[#allocation2 + $0x500] sm:$0xff] 0.0
        %424 = vst [vmem:[#allocation2 + $0x508] sm:$0xff] 0.0
        %425 = vst [vmem:[#allocation2 + $0x510] sm:$0xff] 0.0
        %426 = vst [vmem:[#allocation2 + $0x518] sm:$0xff] 0.0
        %427 = vst [vmem:[#allocation2 + $0x520] sm:$0xff] 0.0
        %428 = vst [vmem:[#allocation2 + $0x528] sm:$0xff] 0.0
        %429 = vst [vmem:[#allocation2 + $0x530] sm:$0xff] 0.0
        %430 = vst [vmem:[#allocation2 + $0x538] sm:$0xff] 0.0
        %431 = vst [vmem:[#allocation2 + $0x540] sm:$0xff] 0.0
        %432 = vst [vmem:[#allocation2 + $0x548] sm:$0xff] 0.0
        %433 = vst [vmem:[#allocation2 + $0x550] sm:$0xff] 0.0
        %434 = vst [vmem:[#allocation2 + $0x558] sm:$0xff] 0.0
        %435 = vst [vmem:[#allocation2 + $0x560] sm:$0xff] 0.0
        %436 = vst [vmem:[#allocation2 + $0x568] sm:$0xff] 0.0
        %437 = vst [vmem:[#allocation2 + $0x570] sm:$0xff] 0.0
        %438 = vst [vmem:[#allocation2 + $0x578] sm:$0xff] 0.0
        %439 = vst [vmem:[#allocation2 + $0x580] sm:$0xff] 0.0
        %440 = vst [vmem:[#allocation2 + $0x588] sm:$0xff] 0.0
        %441 = vst [vmem:[#allocation2 + $0x590] sm:$0xff] 0.0
        %442 = vst [vmem:[#allocation2 + $0x598] sm:$0xff] 0.0
        %443 = vst [vmem:[#allocation2 + $0x5a0] sm:$0xff] 0.0
        %444 = vst [vmem:[#allocation2 + $0x5a8] sm:$0xff] 0.0
        %445 = vst [vmem:[#allocation2 + $0x5b0] sm:$0xff] 0.0
        %446 = vst [vmem:[#allocation2 + $0x5b8] sm:$0xff] 0.0
        %447 = vst [vmem:[#allocation2 + $0x5c0] sm:$0xff] 0.0
        %448 = vst [vmem:[#allocation2 + $0x5c8] sm:$0xff] 0.0
        %449 = vst [vmem:[#allocation2 + $0x5d0] sm:$0xff] 0.0
        %450 = vst [vmem:[#allocation2 + $0x5d8] sm:$0xff] 0.0
        %451 = vst [vmem:[#allocation2 + $0x5e0] sm:$0xff] 0.0
        %452 = vst [vmem:[#allocation2 + $0x5e8] sm:$0xff] 0.0
        %453 = vst [vmem:[#allocation2 + $0x5f0] sm:$0xff] 0.0
        %454 = vst [vmem:[#allocation2 + $0x5f8] sm:$0xff] 0.0
        %455 = vst [vmem:[#allocation2 + $0x600] sm:$0xff] 0.0
        %456 = vst [vmem:[#allocation2 + $0x608] sm:$0xff] 0.0
        %457 = vst [vmem:[#allocation2 + $0x610] sm:$0xff] 0.0
        %458 = vst [vmem:[#allocation2 + $0x618] sm:$0xff] 0.0
        %459 = vst [vmem:[#allocation2 + $0x620] sm:$0xff] 0.0
        %460 = vst [vmem:[#allocation2 + $0x628] sm:$0xff] 0.0
        %461 = vst [vmem:[#allocation2 + $0x630] sm:$0xff] 0.0
        %462 = vst [vmem:[#allocation2 + $0x638] sm:$0xff] 0.0
        %463 = vst [vmem:[#allocation2 + $0x640] sm:$0xff] 0.0
        %464 = vst [vmem:[#allocation2 + $0x648] sm:$0xff] 0.0
        %465 = vst [vmem:[#allocation2 + $0x650] sm:$0xff] 0.0
        %466 = vst [vmem:[#allocation2 + $0x658] sm:$0xff] 0.0
        %467 = vst [vmem:[#allocation2 + $0x660] sm:$0xff] 0.0
        %468 = vst [vmem:[#allocation2 + $0x668] sm:$0xff] 0.0
        %469 = vst [vmem:[#allocation2 + $0x670] sm:$0xff] 0.0
        %470 = vst [vmem:[#allocation2 + $0x678] sm:$0xff] 0.0
        %471 = vst [vmem:[#allocation2 + $0x680] sm:$0xff] 0.0
        %472 = vst [vmem:[#allocation2 + $0x688] sm:$0xff] 0.0
        %473 = vst [vmem:[#allocation2 + $0x690] sm:$0xff] 0.0
        %474 = vst [vmem:[#allocation2 + $0x698] sm:$0xff] 0.0
        %475 = vst [vmem:[#allocation2 + $0x6a0] sm:$0xff] 0.0
        %476 = vst [vmem:[#allocation2 + $0x6a8] sm:$0xff] 0.0
        %477 = vst [vmem:[#allocation2 + $0x6b0] sm:$0xff] 0.0
        %478 = vst [vmem:[#allocation2 + $0x6b8] sm:$0xff] 0.0
        %479 = vst [vmem:[#allocation2 + $0x6c0] sm:$0xff] 0.0
        %480 = vst [vmem:[#allocation2 + $0x6c8] sm:$0xff] 0.0
        %481 = vst [vmem:[#allocation2 + $0x6d0] sm:$0xff] 0.0
        %482 = vst [vmem:[#allocation2 + $0x6d8] sm:$0xff] 0.0
        %483 = vst [vmem:[#allocation2 + $0x6e0] sm:$0xff] 0.0
        %484 = vst [vmem:[#allocation2 + $0x6e8] sm:$0xff] 0.0
        %485 = vst [vmem:[#allocation2 + $0x6f0] sm:$0xff] 0.0
        %486 = vst [vmem:[#allocation2 + $0x6f8] sm:$0xff] 0.0
        %487 = vst [vmem:[#allocation2 + $0x700] sm:$0xff] 0.0
        %488 = vst [vmem:[#allocation2 + $0x708] sm:$0xff] 0.0
        %489 = vst [vmem:[#allocation2 + $0x710] sm:$0xff] 0.0
        %490 = vst [vmem:[#allocation2 + $0x718] sm:$0xff] 0.0
        %491 = vst [vmem:[#allocation2 + $0x720] sm:$0xff] 0.0
        %492 = vst [vmem:[#allocation2 + $0x728] sm:$0xff] 0.0
        %493 = vst [vmem:[#allocation2 + $0x730] sm:$0xff] 0.0
        %494 = vst [vmem:[#allocation2 + $0x738] sm:$0xff] 0.0
        %495 = vst [vmem:[#allocation2 + $0x740] sm:$0xff] 0.0
        %496 = vst [vmem:[#allocation2 + $0x748] sm:$0xff] 0.0
        %497 = vst [vmem:[#allocation2 + $0x750] sm:$0xff] 0.0
        %498 = vst [vmem:[#allocation2 + $0x758] sm:$0xff] 0.0
        %499 = vst [vmem:[#allocation2 + $0x760] sm:$0xff] 0.0
        %500 = vst [vmem:[#allocation2 + $0x768] sm:$0xff] 0.0
        %501 = vst [vmem:[#allocation2 + $0x770] sm:$0xff] 0.0
        %502 = vst [vmem:[#allocation2 + $0x778] sm:$0xff] 0.0
        %503 = vst [vmem:[#allocation2 + $0x780] sm:$0xff] 0.0
        %504 = vst [vmem:[#allocation2 + $0x788] sm:$0xff] 0.0
        %505 = vst [vmem:[#allocation2 + $0x790] sm:$0xff] 0.0
        %506 = vst [vmem:[#allocation2 + $0x798] sm:$0xff] 0.0
        %507 = vst [vmem:[#allocation2 + $0x7a0] sm:$0xff] 0.0
        %508 = vst [vmem:[#allocation2 + $0x7a8] sm:$0xff] 0.0
        %509 = vst [vmem:[#allocation2 + $0x7b0] sm:$0xff] 0.0
        %510 = vst [vmem:[#allocation2 + $0x7b8] sm:$0xff] 0.0
        %511 = vst [vmem:[#allocation2 + $0x7c0] sm:$0xff] 0.0
        %512 = vst [vmem:[#allocation2 + $0x7c8] sm:$0xff] 0.0
        %513 = vst [vmem:[#allocation2 + $0x7d0] sm:$0xff] 0.0
        %514 = vst [vmem:[#allocation2 + $0x7d8] sm:$0xff] 0.0
        %515 = vst [vmem:[#allocation2 + $0x7e0] sm:$0xff] 0.0
        %516 = vst [vmem:[#allocation2 + $0x7e8] sm:$0xff] 0.0
        %517 = vst [vmem:[#allocation2 + $0x7f0] sm:$0xff] 0.0
        %518 = vst [vmem:[#allocation2 + $0x7f8] sm:$0xff] 0.0
      $region36: #{conv_bn_lrelu.2} parent=31 // pred_fallthru
        _
      %v519 = vld [vmem:[#allocation2] sm:$0xff]
      %v520 = vld [vmem:[#allocation2 + $0x8] sm:$0xff]
      %v521 = vld [vmem:[#allocation2 + $0x10] sm:$0xff]
      %v522 = vld [vmem:[#allocation2 + $0x18] sm:$0xff]
      %v523 = vld [vmem:[#allocation2 + $0x20] sm:$0xff]
      %v524 = vld [vmem:[#allocation2 + $0x28] sm:$0xff]
      %v525 = vld [vmem:[#allocation2 + $0x30] sm:$0xff]
      %v526 = vld [vmem:[#allocation2 + $0x38] sm:$0xff]
      %v527 = vld [vmem:[#allocation2 + $0x40] sm:$0xff]
      %v528 = vld [vmem:[#allocation2 + $0x48] sm:$0xff]
      %v529 = vld [vmem:[#allocation2 + $0x50] sm:$0xff]
      %v530 = vld [vmem:[#allocation2 + $0x58] sm:$0xff]
      %v531 = vld [vmem:[#allocation2 + $0x60] sm:$0xff]
      %v532 = vld [vmem:[#allocation2 + $0x68] sm:$0xff]
      %v533 = vld [vmem:[#allocation2 + $0x70] sm:$0xff]
      %v534 = vld [vmem:[#allocation2 + $0x78] sm:$0xff]
      %v535 = vld [vmem:[#allocation2 + $0x80] sm:$0xff]
      %v536 = vld [vmem:[#allocation2 + $0x88] sm:$0xff]
      %v537 = vld [vmem:[#allocation2 + $0x90] sm:$0xff]
      %v538 = vld [vmem:[#allocation2 + $0x98] sm:$0xff]
      %v539 = vld [vmem:[#allocation2 + $0xa0] sm:$0xff]
      %v540 = vld [vmem:[#allocation2 + $0xa8] sm:$0xff]
      %v541 = vld [vmem:[#allocation2 + $0xb0] sm:$0xff]
      %v542 = vld [vmem:[#allocation2 + $0xb8] sm:$0xff]
      %v543 = vld [vmem:[#allocation2 + $0xc0] sm:$0xff]
      %v544 = vld [vmem:[#allocation2 + $0xc8] sm:$0xff]
      %v545 = vld [vmem:[#allocation2 + $0xd0] sm:$0xff]
      %v546 = vld [vmem:[#allocation2 + $0xd8] sm:$0xff]
      %v547 = vld [vmem:[#allocation2 + $0xe0] sm:$0xff]
      %v548 = vld [vmem:[#allocation2 + $0xe8] sm:$0xff]
      %v549 = vld [vmem:[#allocation2 + $0xf0] sm:$0xff]
      %v550 = vld [vmem:[#allocation2 + $0xf8] sm:$0xff]
      %v551 = vld [vmem:[#allocation2 + $0x100] sm:$0xff]
      %v552 = vld [vmem:[#allocation2 + $0x108] sm:$0xff]
      %v553 = vld [vmem:[#allocation2 + $0x110] sm:$0xff]
      %v554 = vld [vmem:[#allocation2 + $0x118] sm:$0xff]
      %v555 = vld [vmem:[#allocation2 + $0x120] sm:$0xff]
      %v556 = vld [vmem:[#allocation2 + $0x128] sm:$0xff]
      %v557 = vld [vmem:[#allocation2 + $0x130] sm:$0xff]
      %v558 = vld [vmem:[#allocation2 + $0x138] sm:$0xff]
      %v559 = vld [vmem:[#allocation2 + $0x140] sm:$0xff]
      %v560 = vld [vmem:[#allocation2 + $0x148] sm:$0xff]
      %v561 = vld [vmem:[#allocation2 + $0x150] sm:$0xff]
      %v562 = vld [vmem:[#allocation2 + $0x158] sm:$0xff]
      %v563 = vld [vmem:[#allocation2 + $0x160] sm:$0xff]
      %v564 = vld [vmem:[#allocation2 + $0x168] sm:$0xff]
      %v565 = vld [vmem:[#allocation2 + $0x170] sm:$0xff]
      %v566 = vld [vmem:[#allocation2 + $0x178] sm:$0xff]
      %v567 = vld [vmem:[#allocation2 + $0x180] sm:$0xff]
      %v568 = vld [vmem:[#allocation2 + $0x188] sm:$0xff]
      %v569 = vld [vmem:[#allocation2 + $0x190] sm:$0xff]
      %v570 = vld [vmem:[#allocation2 + $0x198] sm:$0xff]
      %v571 = vld [vmem:[#allocation2 + $0x1a0] sm:$0xff]
      %v572 = vld [vmem:[#allocation2 + $0x1a8] sm:$0xff]
      %v573 = vld [vmem:[#allocation2 + $0x1b0] sm:$0xff]
      %v574 = vld [vmem:[#allocation2 + $0x1b8] sm:$0xff]
      %v575 = vld [vmem:[#allocation2 + $0x1c0] sm:$0xff]
      %v576 = vld [vmem:[#allocation2 + $0x1c8] sm:$0xff]
      %v577 = vld [vmem:[#allocation2 + $0x1d0] sm:$0xff]
      %v578 = vld [vmem:[#allocation2 + $0x1d8] sm:$0xff]
      %v579 = vld [vmem:[#allocation2 + $0x1e0] sm:$0xff]
      %v580 = vld [vmem:[#allocation2 + $0x1e8] sm:$0xff]
      %v581 = vld [vmem:[#allocation2 + $0x1f0] sm:$0xff]
      %v582 = vld [vmem:[#allocation2 + $0x1f8] sm:$0xff]
      %v583 = vld [vmem:[#allocation2 + $0x200] sm:$0xff]
      %v584 = vld [vmem:[#allocation2 + $0x208] sm:$0xff]
      %v585 = vld [vmem:[#allocation2 + $0x210] sm:$0xff]
      %v586 = vld [vmem:[#allocation2 + $0x218] sm:$0xff]
      %v587 = vld [vmem:[#allocation2 + $0x220] sm:$0xff]
      %v588 = vld [vmem:[#allocation2 + $0x228] sm:$0xff]
      %v589 = vld [vmem:[#allocation2 + $0x230] sm:$0xff]
      %v590 = vld [vmem:[#allocation2 + $0x238] sm:$0xff]
      %v591 = vld [vmem:[#allocation2 + $0x240] sm:$0xff]
      %v592 = vld [vmem:[#allocation2 + $0x248] sm:$0xff]
      %v593 = vld [vmem:[#allocation2 + $0x250] sm:$0xff]
      %v594 = vld [vmem:[#allocation2 + $0x258] sm:$0xff]
      %v595 = vld [vmem:[#allocation2 + $0x260] sm:$0xff]
      %v596 = vld [vmem:[#allocation2 + $0x268] sm:$0xff]
      %v597 = vld [vmem:[#allocation2 + $0x270] sm:$0xff]
      %v598 = vld [vmem:[#allocation2 + $0x278] sm:$0xff]
      %v599 = vld [vmem:[#allocation2 + $0x280] sm:$0xff]
      %v600 = vld [vmem:[#allocation2 + $0x288] sm:$0xff]
      %v601 = vld [vmem:[#allocation2 + $0x290] sm:$0xff]
      %v602 = vld [vmem:[#allocation2 + $0x298] sm:$0xff]
      %v603 = vld [vmem:[#allocation2 + $0x2a0] sm:$0xff]
      %v604 = vld [vmem:[#allocation2 + $0x2a8] sm:$0xff]
      %v605 = vld [vmem:[#allocation2 + $0x2b0] sm:$0xff]
      %v606 = vld [vmem:[#allocation2 + $0x2b8] sm:$0xff]
      %v607 = vld [vmem:[#allocation2 + $0x2c0] sm:$0xff]
      %v608 = vld [vmem:[#allocation2 + $0x2c8] sm:$0xff]
      %v609 = vld [vmem:[#allocation2 + $0x2d0] sm:$0xff]
      %v610 = vld [vmem:[#allocation2 + $0x2d8] sm:$0xff]
      %v611 = vld [vmem:[#allocation2 + $0x2e0] sm:$0xff]
      %v612 = vld [vmem:[#allocation2 + $0x2e8] sm:$0xff]
      %v613 = vld [vmem:[#allocation2 + $0x2f0] sm:$0xff]
      %v614 = vld [vmem:[#allocation2 + $0x2f8] sm:$0xff]
      %v615 = vld [vmem:[#allocation2 + $0x300] sm:$0xff]
      %v616 = vld [vmem:[#allocation2 + $0x308] sm:$0xff]
      %v617 = vld [vmem:[#allocation2 + $0x310] sm:$0xff]
      %v618 = vld [vmem:[#allocation2 + $0x318] sm:$0xff]
      %v619 = vld [vmem:[#allocation2 + $0x320] sm:$0xff]
      %v620 = vld [vmem:[#allocation2 + $0x328] sm:$0xff]
      %v621 = vld [vmem:[#allocation2 + $0x330] sm:$0xff]
      %v622 = vld [vmem:[#allocation2 + $0x338] sm:$0xff]
      %v623 = vld [vmem:[#allocation2 + $0x340] sm:$0xff]
      %v624 = vld [vmem:[#allocation2 + $0x348] sm:$0xff]
      %v625 = vld [vmem:[#allocation2 + $0x350] sm:$0xff]
      %v626 = vld [vmem:[#allocation2 + $0x358] sm:$0xff]
      %v627 = vld [vmem:[#allocation2 + $0x360] sm:$0xff]
      %v628 = vld [vmem:[#allocation2 + $0x368] sm:$0xff]
      %v629 = vld [vmem:[#allocation2 + $0x370] sm:$0xff]
      %v630 = vld [vmem:[#allocation2 + $0x378] sm:$0xff]
      %v631 = vld [vmem:[#allocation2 + $0x380] sm:$0xff]
      %v632 = vld [vmem:[#allocation2 + $0x388] sm:$0xff]
      %v633 = vld [vmem:[#allocation2 + $0x390] sm:$0xff]
      %v634 = vld [vmem:[#allocation2 + $0x398] sm:$0xff]
      %v635 = vld [vmem:[#allocation2 + $0x3a0] sm:$0xff]
      %v636 = vld [vmem:[#allocation2 + $0x3a8] sm:$0xff]
      %v637 = vld [vmem:[#allocation2 + $0x3b0] sm:$0xff]
      %v638 = vld [vmem:[#allocation2 + $0x3b8] sm:$0xff]
      %v639 = vld [vmem:[#allocation2 + $0x3c0] sm:$0xff]
      %v640 = vld [vmem:[#allocation2 + $0x3c8] sm:$0xff]
      %v641 = vld [vmem:[#allocation2 + $0x3d0] sm:$0xff]
      %v642 = vld [vmem:[#allocation2 + $0x3d8] sm:$0xff]
      %v643 = vld [vmem:[#allocation2 + $0x3e0] sm:$0xff]
      %v644 = vld [vmem:[#allocation2 + $0x3e8] sm:$0xff]
      %v645 = vld [vmem:[#allocation2 + $0x3f0] sm:$0xff]
      %v646 = vld [vmem:[#allocation2 + $0x3f8] sm:$0xff]
      %v647 = vld [vmem:[#allocation2 + $0x400] sm:$0xff]
      %v648 = vld [vmem:[#allocation2 + $0x408] sm:$0xff]
      %v649 = vld [vmem:[#allocation2 + $0x410] sm:$0xff]
      %v650 = vld [vmem:[#allocation2 + $0x418] sm:$0xff]
      %v651 = vld [vmem:[#allocation2 + $0x420] sm:$0xff]
      %v652 = vld [vmem:[#allocation2 + $0x428] sm:$0xff]
      %v653 = vld [vmem:[#allocation2 + $0x430] sm:$0xff]
      %v654 = vld [vmem:[#allocation2 + $0x438] sm:$0xff]
      %v655 = vld [vmem:[#allocation2 + $0x440] sm:$0xff]
      %v656 = vld [vmem:[#allocation2 + $0x448] sm:$0xff]
      %v657 = vld [vmem:[#allocation2 + $0x450] sm:$0xff]
      %v658 = vld [vmem:[#allocation2 + $0x458] sm:$0xff]
      %v659 = vld [vmem:[#allocation2 + $0x460] sm:$0xff]
      %v660 = vld [vmem:[#allocation2 + $0x468] sm:$0xff]
      %v661 = vld [vmem:[#allocation2 + $0x470] sm:$0xff]
      %v662 = vld [vmem:[#allocation2 + $0x478] sm:$0xff]
      %v663 = vld [vmem:[#allocation2 + $0x480] sm:$0xff]
      %v664 = vld [vmem:[#allocation2 + $0x488] sm:$0xff]
      %v665 = vld [vmem:[#allocation2 + $0x490] sm:$0xff]
      %v666 = vld [vmem:[#allocation2 + $0x498] sm:$0xff]
      %v667 = vld [vmem:[#allocation2 + $0x4a0] sm:$0xff]
      %v668 = vld [vmem:[#allocation2 + $0x4a8] sm:$0xff]
      %v669 = vld [vmem:[#allocation2 + $0x4b0] sm:$0xff]
      %v670 = vld [vmem:[#allocation2 + $0x4b8] sm:$0xff]
      %v671 = vld [vmem:[#allocation2 + $0x4c0] sm:$0xff]
      %v672 = vld [vmem:[#allocation2 + $0x4c8] sm:$0xff]
      %v673 = vld [vmem:[#allocation2 + $0x4d0] sm:$0xff]
      %v674 = vld [vmem:[#allocation2 + $0x4d8] sm:$0xff]
      %v675 = vld [vmem:[#allocation2 + $0x4e0] sm:$0xff]
      %v676 = vld [vmem:[#allocation2 + $0x4e8] sm:$0xff]
      %v677 = vld [vmem:[#allocation2 + $0x4f0] sm:$0xff]
      %v678 = vld [vmem:[#allocation2 + $0x4f8] sm:$0xff]
      %v679 = vld [vmem:[#allocation2 + $0x500] sm:$0xff]
      %v680 = vld [vmem:[#allocation2 + $0x508] sm:$0xff]
      %v681 = vld [vmem:[#allocation2 + $0x510] sm:$0xff]
      %v682 = vld [vmem:[#allocation2 + $0x518] sm:$0xff]
      %v683 = vld [vmem:[#allocation2 + $0x520] sm:$0xff]
      %v684 = vld [vmem:[#allocation2 + $0x528] sm:$0xff]
      %v685 = vld [vmem:[#allocation2 + $0x530] sm:$0xff]
      %v686 = vld [vmem:[#allocation2 + $0x538] sm:$0xff]
      %v687 = vld [vmem:[#allocation2 + $0x540] sm:$0xff]
      %v688 = vld [vmem:[#allocation2 + $0x548] sm:$0xff]
      %v689 = vld [vmem:[#allocation2 + $0x550] sm:$0xff]
      %v690 = vld [vmem:[#allocation2 + $0x558] sm:$0xff]
      %v691 = vld [vmem:[#allocation2 + $0x560] sm:$0xff]
      %v692 = vld [vmem:[#allocation2 + $0x568] sm:$0xff]
      %v693 = vld [vmem:[#allocation2 + $0x570] sm:$0xff]
      %v694 = vld [vmem:[#allocation2 + $0x578] sm:$0xff]
      %v695 = vld [vmem:[#allocation2 + $0x580] sm:$0xff]
      %v696 = vld [vmem:[#allocation2 + $0x588] sm:$0xff]
      %v697 = vld [vmem:[#allocation2 + $0x590] sm:$0xff]
      %v698 = vld [vmem:[#allocation2 + $0x598] sm:$0xff]
      %v699 = vld [vmem:[#allocation2 + $0x5a0] sm:$0xff]
      %v700 = vld [vmem:[#allocation2 + $0x5a8] sm:$0xff]
      %v701 = vld [vmem:[#allocation2 + $0x5b0] sm:$0xff]
      %v702 = vld [vmem:[#allocation2 + $0x5b8] sm:$0xff]
      %v703 = vld [vmem:[#allocation2 + $0x5c0] sm:$0xff]
      %v704 = vld [vmem:[#allocation2 + $0x5c8] sm:$0xff]
      %v705 = vld [vmem:[#allocation2 + $0x5d0] sm:$0xff]
      %v706 = vld [vmem:[#allocation2 + $0x5d8] sm:$0xff]
      %v707 = vld [vmem:[#allocation2 + $0x5e0] sm:$0xff]
      %v708 = vld [vmem:[#allocation2 + $0x5e8] sm:$0xff]
      %v709 = vld [vmem:[#allocation2 + $0x5f0] sm:$0xff]
      %v710 = vld [vmem:[#allocation2 + $0x5f8] sm:$0xff]
      %v711 = vld [vmem:[#allocation2 + $0x600] sm:$0xff]
      %v712 = vld [vmem:[#allocation2 + $0x608] sm:$0xff]
      %v713 = vld [vmem:[#allocation2 + $0x610] sm:$0xff]
      %v714 = vld [vmem:[#allocation2 + $0x618] sm:$0xff]
      %v715 = vld [vmem:[#allocation2 + $0x620] sm:$0xff]
      %v716 = vld [vmem:[#allocation2 + $0x628] sm:$0xff]
      %v717 = vld [vmem:[#allocation2 + $0x630] sm:$0xff]
      %v718 = vld [vmem:[#allocation2 + $0x638] sm:$0xff]
      %v719 = vld [vmem:[#allocation2 + $0x640] sm:$0xff]
      %v720 = vld [vmem:[#allocation2 + $0x648] sm:$0xff]
      %v721 = vld [vmem:[#allocation2 + $0x650] sm:$0xff]
      %v722 = vld [vmem:[#allocation2 + $0x658] sm:$0xff]
      %v723 = vld [vmem:[#allocation2 + $0x660] sm:$0xff]
      %v724 = vld [vmem:[#allocation2 + $0x668] sm:$0xff]
      %v725 = vld [vmem:[#allocation2 + $0x670] sm:$0xff]
      %v726 = vld [vmem:[#allocation2 + $0x678] sm:$0xff]
      %v727 = vld [vmem:[#allocation2 + $0x680] sm:$0xff]
      %v728 = vld [vmem:[#allocation2 + $0x688] sm:$0xff]
      %v729 = vld [vmem:[#allocation2 + $0x690] sm:$0xff]
      %v730 = vld [vmem:[#allocation2 + $0x698] sm:$0xff]
      %v731 = vld [vmem:[#allocation2 + $0x6a0] sm:$0xff]
      %v732 = vld [vmem:[#allocation2 + $0x6a8] sm:$0xff]
      %v733 = vld [vmem:[#allocation2 + $0x6b0] sm:$0xff]
      %v734 = vld [vmem:[#allocation2 + $0x6b8] sm:$0xff]
      %v735 = vld [vmem:[#allocation2 + $0x6c0] sm:$0xff]
      %v736 = vld [vmem:[#allocation2 + $0x6c8] sm:$0xff]
      %v737 = vld [vmem:[#allocation2 + $0x6d0] sm:$0xff]
      %v738 = vld [vmem:[#allocation2 + $0x6d8] sm:$0xff]
      %v739 = vld [vmem:[#allocation2 + $0x6e0] sm:$0xff]
      %v740 = vld [vmem:[#allocation2 + $0x6e8] sm:$0xff]
      %v741 = vld [vmem:[#allocation2 + $0x6f0] sm:$0xff]
      %v742 = vld [vmem:[#allocation2 + $0x6f8] sm:$0xff]
      %v743 = vld [vmem:[#allocation2 + $0x700] sm:$0xff]
      %v744 = vld [vmem:[#allocation2 + $0x708] sm:$0xff]
      %v745 = vld [vmem:[#allocation2 + $0x710] sm:$0xff]
      %v746 = vld [vmem:[#allocation2 + $0x718] sm:$0xff]
      %v747 = vld [vmem:[#allocation2 + $0x720] sm:$0xff]
      %v748 = vld [vmem:[#allocation2 + $0x728] sm:$0xff]
      %v749 = vld [vmem:[#allocation2 + $0x730] sm:$0xff]
      %v750 = vld [vmem:[#allocation2 + $0x738] sm:$0xff]
      %v751 = vld [vmem:[#allocation2 + $0x740] sm:$0xff]
      %v752 = vld [vmem:[#allocation2 + $0x748] sm:$0xff]
      %v753 = vld [vmem:[#allocation2 + $0x750] sm:$0xff]
      %v754 = vld [vmem:[#allocation2 + $0x758] sm:$0xff]
      %v755 = vld [vmem:[#allocation2 + $0x760] sm:$0xff]
      %v756 = vld [vmem:[#allocation2 + $0x768] sm:$0xff]
      %v757 = vld [vmem:[#allocation2 + $0x770] sm:$0xff]
      %v758 = vld [vmem:[#allocation2 + $0x778] sm:$0xff]
      %v759 = vld [vmem:[#allocation2 + $0x780] sm:$0xff]
      %v760 = vld [vmem:[#allocation2 + $0x788] sm:$0xff]
      %v761 = vld [vmem:[#allocation2 + $0x790] sm:$0xff]
      %v762 = vld [vmem:[#allocation2 + $0x798] sm:$0xff]
      %v763 = vld [vmem:[#allocation2 + $0x7a0] sm:$0xff]
      %v764 = vld [vmem:[#allocation2 + $0x7a8] sm:$0xff]
      %v765 = vld [vmem:[#allocation2 + $0x7b0] sm:$0xff]
      %v766 = vld [vmem:[#allocation2 + $0x7b8] sm:$0xff]
      %v767 = vld [vmem:[#allocation2 + $0x7c0] sm:$0xff]
      %v768 = vld [vmem:[#allocation2 + $0x7c8] sm:$0xff]
      %v769 = vld [vmem:[#allocation2 + $0x7d0] sm:$0xff]
      %v770 = vld [vmem:[#allocation2 + $0x7d8] sm:$0xff]
      %v771 = vld [vmem:[#allocation2 + $0x7e0] sm:$0xff]
      %v772 = vld [vmem:[#allocation2 + $0x7e8] sm:$0xff]
      %v773 = vld [vmem:[#allocation2 + $0x7f0] sm:$0xff]
      %v774 = vld [vmem:[#allocation2 + $0x7f8] sm:$0xff]
      %v775 = vld [vmem:[%s236] sm:$0xf]
      %v776 = vld [vmem:[%s236 + $0x4] sm:$0xf]
      %v777 = vld [vmem:[%s236 + $0x8] sm:$0xf]
      %v778 = vld [vmem:[%s236 + $0xc] sm:$0xf]
      %v779 = vld [vmem:[%s236 + $0x10] sm:$0xf]
      %v780 = vld [vmem:[%s236 + $0x14] sm:$0xf]
      %v781 = vld [vmem:[%s236 + $0x18] sm:$0xf]
      %v782 = vld [vmem:[%s236 + $0x1c] sm:$0xf]
      %v783 = vld [vmem:[%s236 + $0x20] sm:$0xf]
      %v784 = vld [vmem:[%s236 + $0x24] sm:$0xf]
      %v785 = vld [vmem:[%s236 + $0x28] sm:$0xf]
      %v786 = vld [vmem:[%s236 + $0x2c] sm:$0xf]
      %v787 = vld [vmem:[%s236 + $0x30] sm:$0xf]
      %v788 = vld [vmem:[%s236 + $0x34] sm:$0xf]
      %v789 = vld [vmem:[%s236 + $0x38] sm:$0xf]
      %v790 = vld [vmem:[%s236 + $0x3c] sm:$0xf]
      %v791 = vld [vmem:[%s236 + $0x40] sm:$0xf]
      %v792 = vld [vmem:[%s236 + $0x44] sm:$0xf]
      %v793 = vld [vmem:[%s236 + $0x48] sm:$0xf]
      %v794 = vld [vmem:[%s236 + $0x4c] sm:$0xf]
      %v795 = vld [vmem:[%s236 + $0x50] sm:$0xf]
      %v796 = vld [vmem:[%s236 + $0x54] sm:$0xf]
      %v797 = vld [vmem:[%s236 + $0x58] sm:$0xf]
      %v798 = vld [vmem:[%s236 + $0x5c] sm:$0xf]
      %v799 = vld [vmem:[%s236 + $0x60] sm:$0xf]
      %v800 = vld [vmem:[%s236 + $0x64] sm:$0xf]
      %v801 = vld [vmem:[%s236 + $0x68] sm:$0xf]
      %v802 = vld [vmem:[%s236 + $0x6c] sm:$0xf]
      %v803 = vld [vmem:[%s236 + $0x70] sm:$0xf]
      %v804 = vld [vmem:[%s236 + $0x74] sm:$0xf]
      %v805 = vld [vmem:[%s236 + $0x78] sm:$0xf]
      %v806 = vld [vmem:[%s236 + $0x7c] sm:$0xf]
      %v807 = vld [vmem:[%s236 + $0x80] sm:$0xf]
      %v808 = vld [vmem:[%s236 + $0x84] sm:$0xf]
      %v809 = vld [vmem:[%s236 + $0x88] sm:$0xf]
      %v810 = vld [vmem:[%s236 + $0x8c] sm:$0xf]
      %v811 = vld [vmem:[%s236 + $0x90] sm:$0xf]
      %v812 = vld [vmem:[%s236 + $0x94] sm:$0xf]
      %v813 = vld [vmem:[%s236 + $0x98] sm:$0xf]
      %v814 = vld [vmem:[%s236 + $0x9c] sm:$0xf]
      %v815 = vld [vmem:[%s236 + $0xa0] sm:$0xf]
      %v816 = vld [vmem:[%s236 + $0xa4] sm:$0xf]
      %v817 = vld [vmem:[%s236 + $0xa8] sm:$0xf]
      %v818 = vld [vmem:[%s236 + $0xac] sm:$0xf]
      %v819 = vld [vmem:[%s236 + $0xb0] sm:$0xf]
      %v820 = vld [vmem:[%s236 + $0xb4] sm:$0xf]
      %v821 = vld [vmem:[%s236 + $0xb8] sm:$0xf]
      %v822 = vld [vmem:[%s236 + $0xbc] sm:$0xf]
      %v823 = vld [vmem:[%s236 + $0xc0] sm:$0xf]
      %v824 = vld [vmem:[%s236 + $0xc4] sm:$0xf]
      %v825 = vld [vmem:[%s236 + $0xc8] sm:$0xf]
      %v826 = vld [vmem:[%s236 + $0xcc] sm:$0xf]
      %v827 = vld [vmem:[%s236 + $0xd0] sm:$0xf]
      %v828 = vld [vmem:[%s236 + $0xd4] sm:$0xf]
      %v829 = vld [vmem:[%s236 + $0xd8] sm:$0xf]
      %v830 = vld [vmem:[%s236 + $0xdc] sm:$0xf]
      %v831 = vld [vmem:[%s236 + $0xe0] sm:$0xf]
      %v832 = vld [vmem:[%s236 + $0xe4] sm:$0xf]
      %v833 = vld [vmem:[%s236 + $0xe8] sm:$0xf]
      %v834 = vld [vmem:[%s236 + $0xec] sm:$0xf]
      %v835 = vld [vmem:[%s236 + $0xf0] sm:$0xf]
      %v836 = vld [vmem:[%s236 + $0xf4] sm:$0xf]
      %v837 = vld [vmem:[%s236 + $0xf8] sm:$0xf]
      %v838 = vld [vmem:[%s236 + $0xfc] sm:$0xf]
      %v839 = vld [vmem:[%s236 + $0x100] sm:$0xf]
      %v840 = vld [vmem:[%s236 + $0x104] sm:$0xf]
      %v841 = vld [vmem:[%s236 + $0x108] sm:$0xf]
      %v842 = vld [vmem:[%s236 + $0x10c] sm:$0xf]
      %v843 = vld [vmem:[%s236 + $0x110] sm:$0xf]
      %v844 = vld [vmem:[%s236 + $0x114] sm:$0xf]
      %v845 = vld [vmem:[%s236 + $0x118] sm:$0xf]
      %v846 = vld [vmem:[%s236 + $0x11c] sm:$0xf]
      %v847 = vld [vmem:[%s236 + $0x120] sm:$0xf]
      %v848 = vld [vmem:[%s236 + $0x124] sm:$0xf]
      %v849 = vld [vmem:[%s236 + $0x128] sm:$0xf]
      %v850 = vld [vmem:[%s236 + $0x12c] sm:$0xf]
      %v851 = vld [vmem:[%s236 + $0x130] sm:$0xf]
      %v852 = vld [vmem:[%s236 + $0x134] sm:$0xf]
      %v853 = vld [vmem:[%s236 + $0x138] sm:$0xf]
      %v854 = vld [vmem:[%s236 + $0x13c] sm:$0xf]
      %v855 = vld [vmem:[%s236 + $0x140] sm:$0xf]
      %v856 = vld [vmem:[%s236 + $0x144] sm:$0xf]
      %v857 = vld [vmem:[%s236 + $0x148] sm:$0xf]
      %v858 = vld [vmem:[%s236 + $0x14c] sm:$0xf]
      %v859 = vld [vmem:[%s236 + $0x150] sm:$0xf]
      %v860 = vld [vmem:[%s236 + $0x154] sm:$0xf]
      %v861 = vld [vmem:[%s236 + $0x158] sm:$0xf]
      %v862 = vld [vmem:[%s236 + $0x15c] sm:$0xf]
      %v863 = vld [vmem:[%s236 + $0x160] sm:$0xf]
      %v864 = vld [vmem:[%s236 + $0x164] sm:$0xf]
      %v865 = vld [vmem:[%s236 + $0x168] sm:$0xf]
      %v866 = vld [vmem:[%s236 + $0x16c] sm:$0xf]
      %v867 = vld [vmem:[%s236 + $0x170] sm:$0xf]
      %v868 = vld [vmem:[%s236 + $0x174] sm:$0xf]
      %v869 = vld [vmem:[%s236 + $0x178] sm:$0xf]
      %v870 = vld [vmem:[%s236 + $0x17c] sm:$0xf]
      %v871 = vld [vmem:[%s236 + $0x180] sm:$0xf]
      %v872 = vld [vmem:[%s236 + $0x184] sm:$0xf]
      %v873 = vld [vmem:[%s236 + $0x188] sm:$0xf]
      %v874 = vld [vmem:[%s236 + $0x18c] sm:$0xf]
      %v875 = vld [vmem:[%s236 + $0x190] sm:$0xf]
      %v876 = vld [vmem:[%s236 + $0x194] sm:$0xf]
      %v877 = vld [vmem:[%s236 + $0x198] sm:$0xf]
      %v878 = vld [vmem:[%s236 + $0x19c] sm:$0xf]
      %v879 = vld [vmem:[%s236 + $0x1a0] sm:$0xf]
      %v880 = vld [vmem:[%s236 + $0x1a4] sm:$0xf]
      %v881 = vld [vmem:[%s236 + $0x1a8] sm:$0xf]
      %v882 = vld [vmem:[%s236 + $0x1ac] sm:$0xf]
      %v883 = vld [vmem:[%s236 + $0x1b0] sm:$0xf]
      %v884 = vld [vmem:[%s236 + $0x1b4] sm:$0xf]
      %v885 = vld [vmem:[%s236 + $0x1b8] sm:$0xf]
      %v886 = vld [vmem:[%s236 + $0x1bc] sm:$0xf]
      %v887 = vld [vmem:[%s236 + $0x1c0] sm:$0xf]
      %v888 = vld [vmem:[%s236 + $0x1c4] sm:$0xf]
      %v889 = vld [vmem:[%s236 + $0x1c8] sm:$0xf]
      %v890 = vld [vmem:[%s236 + $0x1cc] sm:$0xf]
      %v891 = vld [vmem:[%s236 + $0x1d0] sm:$0xf]
      %v892 = vld [vmem:[%s236 + $0x1d4] sm:$0xf]
      %v893 = vld [vmem:[%s236 + $0x1d8] sm:$0xf]
      %v894 = vld [vmem:[%s236 + $0x1dc] sm:$0xf]
      %v895 = vld [vmem:[%s236 + $0x1e0] sm:$0xf]
      %v896 = vld [vmem:[%s236 + $0x1e4] sm:$0xf]
      %v897 = vld [vmem:[%s236 + $0x1e8] sm:$0xf]
      %v898 = vld [vmem:[%s236 + $0x1ec] sm:$0xf]
      %v899 = vld [vmem:[%s236 + $0x1f0] sm:$0xf]
      %v900 = vld [vmem:[%s236 + $0x1f4] sm:$0xf]
      %v901 = vld [vmem:[%s236 + $0x1f8] sm:$0xf]
      %v902 = vld [vmem:[%s236 + $0x1fc] sm:$0xf]
      %v903 = vld [vmem:[%s236 + $0x200] sm:$0xf]
      %v904 = vld [vmem:[%s236 + $0x204] sm:$0xf]
      %v905 = vld [vmem:[%s236 + $0x208] sm:$0xf]
      %v906 = vld [vmem:[%s236 + $0x20c] sm:$0xf]
      %v907 = vld [vmem:[%s236 + $0x210] sm:$0xf]
      %v908 = vld [vmem:[%s236 + $0x214] sm:$0xf]
      %v909 = vld [vmem:[%s236 + $0x218] sm:$0xf]
      %v910 = vld [vmem:[%s236 + $0x21c] sm:$0xf]
      %v911 = vld [vmem:[%s236 + $0x220] sm:$0xf]
      %v912 = vld [vmem:[%s236 + $0x224] sm:$0xf]
      %v913 = vld [vmem:[%s236 + $0x228] sm:$0xf]
      %v914 = vld [vmem:[%s236 + $0x22c] sm:$0xf]
      %v915 = vld [vmem:[%s236 + $0x230] sm:$0xf]
      %v916 = vld [vmem:[%s236 + $0x234] sm:$0xf]
      %v917 = vld [vmem:[%s236 + $0x238] sm:$0xf]
      %v918 = vld [vmem:[%s236 + $0x23c] sm:$0xf]
      %v919 = vld [vmem:[%s236 + $0x240] sm:$0xf]
      %v920 = vld [vmem:[%s236 + $0x244] sm:$0xf]
      %v921 = vld [vmem:[%s236 + $0x248] sm:$0xf]
      %v922 = vld [vmem:[%s236 + $0x24c] sm:$0xf]
      %v923 = vld [vmem:[%s236 + $0x250] sm:$0xf]
      %v924 = vld [vmem:[%s236 + $0x254] sm:$0xf]
      %v925 = vld [vmem:[%s236 + $0x258] sm:$0xf]
      %v926 = vld [vmem:[%s236 + $0x25c] sm:$0xf]
      %v927 = vld [vmem:[%s236 + $0x260] sm:$0xf]
      %v928 = vld [vmem:[%s236 + $0x264] sm:$0xf]
      %v929 = vld [vmem:[%s236 + $0x268] sm:$0xf]
      %v930 = vld [vmem:[%s236 + $0x26c] sm:$0xf]
      %v931 = vld [vmem:[%s236 + $0x270] sm:$0xf]
      %v932 = vld [vmem:[%s236 + $0x274] sm:$0xf]
      %v933 = vld [vmem:[%s236 + $0x278] sm:$0xf]
      %v934 = vld [vmem:[%s236 + $0x27c] sm:$0xf]
      %v935 = vld [vmem:[%s236 + $0x280] sm:$0xf]
      %v936 = vld [vmem:[%s236 + $0x284] sm:$0xf]
      %v937 = vld [vmem:[%s236 + $0x288] sm:$0xf]
      %v938 = vld [vmem:[%s236 + $0x28c] sm:$0xf]
      %v939 = vld [vmem:[%s236 + $0x290] sm:$0xf]
      %v940 = vld [vmem:[%s236 + $0x294] sm:$0xf]
      %v941 = vld [vmem:[%s236 + $0x298] sm:$0xf]
      %v942 = vld [vmem:[%s236 + $0x29c] sm:$0xf]
      %v943 = vld [vmem:[%s236 + $0x2a0] sm:$0xf]
      %v944 = vld [vmem:[%s236 + $0x2a4] sm:$0xf]
      %v945 = vld [vmem:[%s236 + $0x2a8] sm:$0xf]
      %v946 = vld [vmem:[%s236 + $0x2ac] sm:$0xf]
      %v947 = vld [vmem:[%s236 + $0x2b0] sm:$0xf]
      %v948 = vld [vmem:[%s236 + $0x2b4] sm:$0xf]
      %v949 = vld [vmem:[%s236 + $0x2b8] sm:$0xf]
      %v950 = vld [vmem:[%s236 + $0x2bc] sm:$0xf]
      %v951 = vld [vmem:[%s236 + $0x2c0] sm:$0xf]
      %v952 = vld [vmem:[%s236 + $0x2c4] sm:$0xf]
      %v953 = vld [vmem:[%s236 + $0x2c8] sm:$0xf]
      %v954 = vld [vmem:[%s236 + $0x2cc] sm:$0xf]
      %v955 = vld [vmem:[%s236 + $0x2d0] sm:$0xf]
      %v956 = vld [vmem:[%s236 + $0x2d4] sm:$0xf]
      %v957 = vld [vmem:[%s236 + $0x2d8] sm:$0xf]
      %v958 = vld [vmem:[%s236 + $0x2dc] sm:$0xf]
      %v959 = vld [vmem:[%s236 + $0x2e0] sm:$0xf]
      %v960 = vld [vmem:[%s236 + $0x2e4] sm:$0xf]
      %v961 = vld [vmem:[%s236 + $0x2e8] sm:$0xf]
      %v962 = vld [vmem:[%s236 + $0x2ec] sm:$0xf]
      %v963 = vld [vmem:[%s236 + $0x2f0] sm:$0xf]
      %v964 = vld [vmem:[%s236 + $0x2f4] sm:$0xf]
      %v965 = vld [vmem:[%s236 + $0x2f8] sm:$0xf]
      %v966 = vld [vmem:[%s236 + $0x2fc] sm:$0xf]
      %v967 = vld [vmem:[%s236 + $0x300] sm:$0xf]
      %v968 = vld [vmem:[%s236 + $0x304] sm:$0xf]
      %v969 = vld [vmem:[%s236 + $0x308] sm:$0xf]
      %v970 = vld [vmem:[%s236 + $0x30c] sm:$0xf]
      %v971 = vld [vmem:[%s236 + $0x310] sm:$0xf]
      %v972 = vld [vmem:[%s236 + $0x314] sm:$0xf]
      %v973 = vld [vmem:[%s236 + $0x318] sm:$0xf]
      %v974 = vld [vmem:[%s236 + $0x31c] sm:$0xf]
      %v975 = vld [vmem:[%s236 + $0x320] sm:$0xf]
      %v976 = vld [vmem:[%s236 + $0x324] sm:$0xf]
      %v977 = vld [vmem:[%s236 + $0x328] sm:$0xf]
      %v978 = vld [vmem:[%s236 + $0x32c] sm:$0xf]
      %v979 = vld [vmem:[%s236 + $0x330] sm:$0xf]
      %v980 = vld [vmem:[%s236 + $0x334] sm:$0xf]
      %v981 = vld [vmem:[%s236 + $0x338] sm:$0xf]
      %v982 = vld [vmem:[%s236 + $0x33c] sm:$0xf]
      %v983 = vld [vmem:[%s236 + $0x340] sm:$0xf]
      %v984 = vld [vmem:[%s236 + $0x344] sm:$0xf]
      %v985 = vld [vmem:[%s236 + $0x348] sm:$0xf]
      %v986 = vld [vmem:[%s236 + $0x34c] sm:$0xf]
      %v987 = vld [vmem:[%s236 + $0x350] sm:$0xf]
      %v988 = vld [vmem:[%s236 + $0x354] sm:$0xf]
      %v989 = vld [vmem:[%s236 + $0x358] sm:$0xf]
      %v990 = vld [vmem:[%s236 + $0x35c] sm:$0xf]
      %v991 = vld [vmem:[%s236 + $0x360] sm:$0xf]
      %v992 = vld [vmem:[%s236 + $0x364] sm:$0xf]
      %v993 = vld [vmem:[%s236 + $0x368] sm:$0xf]
      %v994 = vld [vmem:[%s236 + $0x36c] sm:$0xf]
      %v995 = vld [vmem:[%s236 + $0x370] sm:$0xf]
      %v996 = vld [vmem:[%s236 + $0x374] sm:$0xf]
      %v997 = vld [vmem:[%s236 + $0x378] sm:$0xf]
      %v998 = vld [vmem:[%s236 + $0x37c] sm:$0xf]
      %v999 = vld [vmem:[%s236 + $0x380] sm:$0xf]
      %v1000 = vld [vmem:[%s236 + $0x384] sm:$0xf]
      %v1001 = vld [vmem:[%s236 + $0x388] sm:$0xf]
      %v1002 = vld [vmem:[%s236 + $0x38c] sm:$0xf]
      %v1003 = vld [vmem:[%s236 + $0x390] sm:$0xf]
      %v1004 = vld [vmem:[%s236 + $0x394] sm:$0xf]
      %v1005 = vld [vmem:[%s236 + $0x398] sm:$0xf]
      %v1006 = vld [vmem:[%s236 + $0x39c] sm:$0xf]
      %v1007 = vld [vmem:[%s236 + $0x3a0] sm:$0xf]
      %v1008 = vld [vmem:[%s236 + $0x3a4] sm:$0xf]
      %v1009 = vld [vmem:[%s236 + $0x3a8] sm:$0xf]
      %v1010 = vld [vmem:[%s236 + $0x3ac] sm:$0xf]
      %v1011 = vld [vmem:[%s236 + $0x3b0] sm:$0xf]
      %v1012 = vld [vmem:[%s236 + $0x3b4] sm:$0xf]
      %v1013 = vld [vmem:[%s236 + $0x3b8] sm:$0xf]
      %v1014 = vld [vmem:[%s236 + $0x3bc] sm:$0xf]
      %v1015 = vld [vmem:[%s236 + $0x3c0] sm:$0xf]
      %v1016 = vld [vmem:[%s236 + $0x3c4] sm:$0xf]
      %v1017 = vld [vmem:[%s236 + $0x3c8] sm:$0xf]
      %v1018 = vld [vmem:[%s236 + $0x3cc] sm:$0xf]
      %v1019 = vld [vmem:[%s236 + $0x3d0] sm:$0xf]
      %v1020 = vld [vmem:[%s236 + $0x3d4] sm:$0xf]
      %v1021 = vld [vmem:[%s236 + $0x3d8] sm:$0xf]
      %v1022 = vld [vmem:[%s236 + $0x3dc] sm:$0xf]
      %v1023 = vld [vmem:[%s236 + $0x3e0] sm:$0xf]
      %v1024 = vld [vmem:[%s236 + $0x3e4] sm:$0xf]
      %v1025 = vld [vmem:[%s236 + $0x3e8] sm:$0xf]
      %v1026 = vld [vmem:[%s236 + $0x3ec] sm:$0xf]
      %v1027 = vld [vmem:[%s236 + $0x3f0] sm:$0xf]
      %v1028 = vld [vmem:[%s236 + $0x3f4] sm:$0xf]
      %v1029 = vld [vmem:[%s236 + $0x3f8] sm:$0xf]
      %v1030 = vld [vmem:[%s236 + $0x3fc] sm:$0xf]
      %v1031 = vld [vmem:[%s245] sm:$0xf]
      %v1032 = vld [vmem:[%s245 + $0x4] sm:$0xf]
      %v1033 = vld [vmem:[%s245 + $0x8] sm:$0xf]
      %v1034 = vld [vmem:[%s245 + $0xc] sm:$0xf]
      %v1035 = vld [vmem:[%s245 + $0x10] sm:$0xf]
      %v1036 = vld [vmem:[%s245 + $0x14] sm:$0xf]
      %v1037 = vld [vmem:[%s245 + $0x18] sm:$0xf]
      %v1038 = vld [vmem:[%s245 + $0x1c] sm:$0xf]
      %v1039 = vld [vmem:[%s245 + $0x20] sm:$0xf]
      %v1040 = vld [vmem:[%s245 + $0x24] sm:$0xf]
      %v1041 = vld [vmem:[%s245 + $0x28] sm:$0xf]
      %v1042 = vld [vmem:[%s245 + $0x2c] sm:$0xf]
      %v1043 = vld [vmem:[%s245 + $0x30] sm:$0xf]
      %v1044 = vld [vmem:[%s245 + $0x34] sm:$0xf]
      %v1045 = vld [vmem:[%s245 + $0x38] sm:$0xf]
      %v1046 = vld [vmem:[%s245 + $0x3c] sm:$0xf]
      %v1303 = vunpack.c.l.b16 %v775
      %v1304 = vunpack.c.l.b16 %v776
      %v1305 = vunpack.c.l.b16 %v777
      %v1306 = vunpack.c.l.b16 %v778
      %v1307 = vunpack.c.l.b16 %v779
      %v1308 = vunpack.c.l.b16 %v780
      %v1309 = vunpack.c.l.b16 %v781
      %v1310 = vunpack.c.l.b16 %v782
      %v1311 = vunpack.c.l.b16 %v783
      %v1312 = vunpack.c.l.b16 %v784
      %v1313 = vunpack.c.l.b16 %v785
      %v1314 = vunpack.c.l.b16 %v786
      %v1315 = vunpack.c.l.b16 %v787
      %v1316 = vunpack.c.l.b16 %v788
      %v1317 = vunpack.c.l.b16 %v789
      %v1318 = vunpack.c.l.b16 %v790
      %v1319 = vunpack.c.l.b16 %v791
      %v1320 = vunpack.c.l.b16 %v792
      %v1321 = vunpack.c.l.b16 %v793
      %v1322 = vunpack.c.l.b16 %v794
      %v1323 = vunpack.c.l.b16 %v795
      %v1324 = vunpack.c.l.b16 %v796
      %v1325 = vunpack.c.l.b16 %v797
      %v1326 = vunpack.c.l.b16 %v798
      %v1327 = vunpack.c.l.b16 %v799
      %v1328 = vunpack.c.l.b16 %v800
      %v1329 = vunpack.c.l.b16 %v801
      %v1330 = vunpack.c.l.b16 %v802
      %v1331 = vunpack.c.l.b16 %v803
      %v1332 = vunpack.c.l.b16 %v804
      %v1333 = vunpack.c.l.b16 %v805
      %v1334 = vunpack.c.l.b16 %v806
      %v1335 = vunpack.c.l.b16 %v807
      %v1336 = vunpack.c.l.b16 %v808
      %v1337 = vunpack.c.l.b16 %v809
      %v1338 = vunpack.c.l.b16 %v810
      %v1339 = vunpack.c.l.b16 %v811
      %v1340 = vunpack.c.l.b16 %v812
      %v1341 = vunpack.c.l.b16 %v813
      %v1342 = vunpack.c.l.b16 %v814
      %v1343 = vunpack.c.l.b16 %v815
      %v1344 = vunpack.c.l.b16 %v816
      %v1345 = vunpack.c.l.b16 %v817
      %v1346 = vunpack.c.l.b16 %v818
      %v1347 = vunpack.c.l.b16 %v819
      %v1348 = vunpack.c.l.b16 %v820
      %v1349 = vunpack.c.l.b16 %v821
      %v1350 = vunpack.c.l.b16 %v822
      %v1351 = vunpack.c.l.b16 %v823
      %v1352 = vunpack.c.l.b16 %v824
      %v1353 = vunpack.c.l.b16 %v825
      %v1354 = vunpack.c.l.b16 %v826
      %v1355 = vunpack.c.l.b16 %v827
      %v1356 = vunpack.c.l.b16 %v828
      %v1357 = vunpack.c.l.b16 %v829
      %v1358 = vunpack.c.l.b16 %v830
      %v1359 = vunpack.c.l.b16 %v831
      %v1360 = vunpack.c.l.b16 %v832
      %v1361 = vunpack.c.l.b16 %v833
      %v1362 = vunpack.c.l.b16 %v834
      %v1363 = vunpack.c.l.b16 %v835
      %v1364 = vunpack.c.l.b16 %v836
      %v1365 = vunpack.c.l.b16 %v837
      %v1366 = vunpack.c.l.b16 %v838
      %v1367 = vunpack.c.l.b16 %v839
      %v1368 = vunpack.c.l.b16 %v840
      %v1369 = vunpack.c.l.b16 %v841
      %v1370 = vunpack.c.l.b16 %v842
      %v1371 = vunpack.c.l.b16 %v843
      %v1372 = vunpack.c.l.b16 %v844
      %v1373 = vunpack.c.l.b16 %v845
      %v1374 = vunpack.c.l.b16 %v846
      %v1375 = vunpack.c.l.b16 %v847
      %v1376 = vunpack.c.l.b16 %v848
      %v1377 = vunpack.c.l.b16 %v849
      %v1378 = vunpack.c.l.b16 %v850
      %v1379 = vunpack.c.l.b16 %v851
      %v1380 = vunpack.c.l.b16 %v852
      %v1381 = vunpack.c.l.b16 %v853
      %v1382 = vunpack.c.l.b16 %v854
      %v1383 = vunpack.c.l.b16 %v855
      %v1384 = vunpack.c.l.b16 %v856
      %v1385 = vunpack.c.l.b16 %v857
      %v1386 = vunpack.c.l.b16 %v858
      %v1387 = vunpack.c.l.b16 %v859
      %v1388 = vunpack.c.l.b16 %v860
      %v1389 = vunpack.c.l.b16 %v861
      %v1390 = vunpack.c.l.b16 %v862
      %v1391 = vunpack.c.l.b16 %v863
      %v1392 = vunpack.c.l.b16 %v864
      %v1393 = vunpack.c.l.b16 %v865
      %v1394 = vunpack.c.l.b16 %v866
      %v1395 = vunpack.c.l.b16 %v867
      %v1396 = vunpack.c.l.b16 %v868
      %v1397 = vunpack.c.l.b16 %v869
      %v1398 = vunpack.c.l.b16 %v870
      %v1399 = vunpack.c.l.b16 %v871
      %v1400 = vunpack.c.l.b16 %v872
      %v1401 = vunpack.c.l.b16 %v873
      %v1402 = vunpack.c.l.b16 %v874
      %v1403 = vunpack.c.l.b16 %v875
      %v1404 = vunpack.c.l.b16 %v876
      %v1405 = vunpack.c.l.b16 %v877
      %v1406 = vunpack.c.l.b16 %v878
      %v1407 = vunpack.c.l.b16 %v879
      %v1408 = vunpack.c.l.b16 %v880
      %v1409 = vunpack.c.l.b16 %v881
      %v1410 = vunpack.c.l.b16 %v882
      %v1411 = vunpack.c.l.b16 %v883
      %v1412 = vunpack.c.l.b16 %v884
      %v1413 = vunpack.c.l.b16 %v885
      %v1414 = vunpack.c.l.b16 %v886
      %v1415 = vunpack.c.l.b16 %v887
      %v1416 = vunpack.c.l.b16 %v888
      %v1417 = vunpack.c.l.b16 %v889
      %v1418 = vunpack.c.l.b16 %v890
      %v1419 = vunpack.c.l.b16 %v891
      %v1420 = vunpack.c.l.b16 %v892
      %v1421 = vunpack.c.l.b16 %v893
      %v1422 = vunpack.c.l.b16 %v894
      %v1423 = vunpack.c.l.b16 %v895
      %v1424 = vunpack.c.l.b16 %v896
      %v1425 = vunpack.c.l.b16 %v897
      %v1426 = vunpack.c.l.b16 %v898
      %v1427 = vunpack.c.l.b16 %v899
      %v1428 = vunpack.c.l.b16 %v900
      %v1429 = vunpack.c.l.b16 %v901
      %v1430 = vunpack.c.l.b16 %v902
      %v1431 = vunpack.c.l.b16 %v903
      %v1432 = vunpack.c.l.b16 %v904
      %v1433 = vunpack.c.l.b16 %v905
      %v1434 = vunpack.c.l.b16 %v906
      %v1435 = vunpack.c.l.b16 %v907
      %v1436 = vunpack.c.l.b16 %v908
      %v1437 = vunpack.c.l.b16 %v909
      %v1438 = vunpack.c.l.b16 %v910
      %v1439 = vunpack.c.l.b16 %v911
      %v1440 = vunpack.c.l.b16 %v912
      %v1441 = vunpack.c.l.b16 %v913
      %v1442 = vunpack.c.l.b16 %v914
      %v1443 = vunpack.c.l.b16 %v915
      %v1444 = vunpack.c.l.b16 %v916
      %v1445 = vunpack.c.l.b16 %v917
      %v1446 = vunpack.c.l.b16 %v918
      %v1447 = vunpack.c.l.b16 %v919
      %v1448 = vunpack.c.l.b16 %v920
      %v1449 = vunpack.c.l.b16 %v921
      %v1450 = vunpack.c.l.b16 %v922
      %v1451 = vunpack.c.l.b16 %v923
      %v1452 = vunpack.c.l.b16 %v924
      %v1453 = vunpack.c.l.b16 %v925
      %v1454 = vunpack.c.l.b16 %v926
      %v1455 = vunpack.c.l.b16 %v927
      %v1456 = vunpack.c.l.b16 %v928
      %v1457 = vunpack.c.l.b16 %v929
      %v1458 = vunpack.c.l.b16 %v930
      %v1459 = vunpack.c.l.b16 %v931
      %v1460 = vunpack.c.l.b16 %v932
      %v1461 = vunpack.c.l.b16 %v933
      %v1462 = vunpack.c.l.b16 %v934
      %v1463 = vunpack.c.l.b16 %v935
      %v1464 = vunpack.c.l.b16 %v936
      %v1465 = vunpack.c.l.b16 %v937
      %v1466 = vunpack.c.l.b16 %v938
      %v1467 = vunpack.c.l.b16 %v939
      %v1468 = vunpack.c.l.b16 %v940
      %v1469 = vunpack.c.l.b16 %v941
      %v1470 = vunpack.c.l.b16 %v942
      %v1471 = vunpack.c.l.b16 %v943
      %v1472 = vunpack.c.l.b16 %v944
      %v1473 = vunpack.c.l.b16 %v945
      %v1474 = vunpack.c.l.b16 %v946
      %v1475 = vunpack.c.l.b16 %v947
      %v1476 = vunpack.c.l.b16 %v948
      %v1477 = vunpack.c.l.b16 %v949
      %v1478 = vunpack.c.l.b16 %v950
      %v1479 = vunpack.c.l.b16 %v951
      %v1480 = vunpack.c.l.b16 %v952
      %v1481 = vunpack.c.l.b16 %v953
      %v1482 = vunpack.c.l.b16 %v954
      %v1483 = vunpack.c.l.b16 %v955
      %v1484 = vunpack.c.l.b16 %v956
      %v1485 = vunpack.c.l.b16 %v957
      %v1486 = vunpack.c.l.b16 %v958
      %v1487 = vunpack.c.l.b16 %v959
      %v1488 = vunpack.c.l.b16 %v960
      %v1489 = vunpack.c.l.b16 %v961
      %v1490 = vunpack.c.l.b16 %v962
      %v1491 = vunpack.c.l.b16 %v963
      %v1492 = vunpack.c.l.b16 %v964
      %v1493 = vunpack.c.l.b16 %v965
      %v1494 = vunpack.c.l.b16 %v966
      %v1495 = vunpack.c.l.b16 %v967
      %v1496 = vunpack.c.l.b16 %v968
      %v1497 = vunpack.c.l.b16 %v969
      %v1498 = vunpack.c.l.b16 %v970
      %v1499 = vunpack.c.l.b16 %v971
      %v1500 = vunpack.c.l.b16 %v972
      %v1501 = vunpack.c.l.b16 %v973
      %v1502 = vunpack.c.l.b16 %v974
      %v1503 = vunpack.c.l.b16 %v975
      %v1504 = vunpack.c.l.b16 %v976
      %v1505 = vunpack.c.l.b16 %v977
      %v1506 = vunpack.c.l.b16 %v978
      %v1507 = vunpack.c.l.b16 %v979
      %v1508 = vunpack.c.l.b16 %v980
      %v1509 = vunpack.c.l.b16 %v981
      %v1510 = vunpack.c.l.b16 %v982
      %v1511 = vunpack.c.l.b16 %v983
      %v1512 = vunpack.c.l.b16 %v984
      %v1513 = vunpack.c.l.b16 %v985
      %v1514 = vunpack.c.l.b16 %v986
      %v1515 = vunpack.c.l.b16 %v987
      %v1516 = vunpack.c.l.b16 %v988
      %v1517 = vunpack.c.l.b16 %v989
      %v1518 = vunpack.c.l.b16 %v990
      %v1519 = vunpack.c.l.b16 %v991
      %v1520 = vunpack.c.l.b16 %v992
      %v1521 = vunpack.c.l.b16 %v993
      %v1522 = vunpack.c.l.b16 %v994
      %v1523 = vunpack.c.l.b16 %v995
      %v1524 = vunpack.c.l.b16 %v996
      %v1525 = vunpack.c.l.b16 %v997
      %v1526 = vunpack.c.l.b16 %v998
      %v1527 = vunpack.c.l.b16 %v999
      %v1528 = vunpack.c.l.b16 %v1000
      %v1529 = vunpack.c.l.b16 %v1001
      %v1530 = vunpack.c.l.b16 %v1002
      %v1531 = vunpack.c.l.b16 %v1003
      %v1532 = vunpack.c.l.b16 %v1004
      %v1533 = vunpack.c.l.b16 %v1005
      %v1534 = vunpack.c.l.b16 %v1006
      %v1535 = vunpack.c.l.b16 %v1007
      %v1536 = vunpack.c.l.b16 %v1008
      %v1537 = vunpack.c.l.b16 %v1009
      %v1538 = vunpack.c.l.b16 %v1010
      %v1539 = vunpack.c.l.b16 %v1011
      %v1540 = vunpack.c.l.b16 %v1012
      %v1541 = vunpack.c.l.b16 %v1013
      %v1542 = vunpack.c.l.b16 %v1014
      %v1543 = vunpack.c.l.b16 %v1015
      %v1544 = vunpack.c.l.b16 %v1016
      %v1545 = vunpack.c.l.b16 %v1017
      %v1546 = vunpack.c.l.b16 %v1018
      %v1547 = vunpack.c.l.b16 %v1019
      %v1548 = vunpack.c.l.b16 %v1020
      %v1549 = vunpack.c.l.b16 %v1021
      %v1550 = vunpack.c.l.b16 %v1022
      %v1551 = vunpack.c.l.b16 %v1023
      %v1552 = vunpack.c.l.b16 %v1024
      %v1553 = vunpack.c.l.b16 %v1025
      %v1554 = vunpack.c.l.b16 %v1026
      %v1555 = vunpack.c.l.b16 %v1027
      %v1556 = vunpack.c.l.b16 %v1028
      %v1557 = vunpack.c.l.b16 %v1029
      %v1558 = vunpack.c.l.b16 %v1030
      %v1559 = vpack.c.b16 %v1304, %v1303
      %v1560 = vpack.c.b16 %v1306, %v1305
      %v1561 = vpack.c.b16 %v1308, %v1307
      %v1562 = vpack.c.b16 %v1310, %v1309
      %v1563 = vpack.c.b16 %v1312, %v1311
      %v1564 = vpack.c.b16 %v1314, %v1313
      %v1565 = vpack.c.b16 %v1316, %v1315
      %v1566 = vpack.c.b16 %v1318, %v1317
      %v1567 = vpack.c.b16 %v1320, %v1319
      %v1568 = vpack.c.b16 %v1322, %v1321
      %v1569 = vpack.c.b16 %v1324, %v1323
      %v1570 = vpack.c.b16 %v1326, %v1325
      %v1571 = vpack.c.b16 %v1328, %v1327
      %v1572 = vpack.c.b16 %v1330, %v1329
      %v1573 = vpack.c.b16 %v1332, %v1331
      %v1574 = vpack.c.b16 %v1334, %v1333
      %v1575 = vpack.c.b16 %v1336, %v1335
      %v1576 = vpack.c.b16 %v1338, %v1337
      %v1577 = vpack.c.b16 %v1340, %v1339
      %v1578 = vpack.c.b16 %v1342, %v1341
      %v1579 = vpack.c.b16 %v1344, %v1343
      %v1580 = vpack.c.b16 %v1346, %v1345
      %v1581 = vpack.c.b16 %v1348, %v1347
      %v1582 = vpack.c.b16 %v1350, %v1349
      %v1583 = vpack.c.b16 %v1352, %v1351
      %v1584 = vpack.c.b16 %v1354, %v1353
      %v1585 = vpack.c.b16 %v1356, %v1355
      %v1586 = vpack.c.b16 %v1358, %v1357
      %v1587 = vpack.c.b16 %v1360, %v1359
      %v1588 = vpack.c.b16 %v1362, %v1361
      %v1589 = vpack.c.b16 %v1364, %v1363
      %v1590 = vpack.c.b16 %v1366, %v1365
      %v1591 = vpack.c.b16 %v1368, %v1367
      %v1592 = vpack.c.b16 %v1370, %v1369
      %v1593 = vpack.c.b16 %v1372, %v1371
      %v1594 = vpack.c.b16 %v1374, %v1373
      %v1595 = vpack.c.b16 %v1376, %v1375
      %v1596 = vpack.c.b16 %v1378, %v1377
      %v1597 = vpack.c.b16 %v1380, %v1379
      %v1598 = vpack.c.b16 %v1382, %v1381
      %v1599 = vpack.c.b16 %v1384, %v1383
      %v1600 = vpack.c.b16 %v1386, %v1385
      %v1601 = vpack.c.b16 %v1388, %v1387
      %v1602 = vpack.c.b16 %v1390, %v1389
      %v1603 = vpack.c.b16 %v1392, %v1391
      %v1604 = vpack.c.b16 %v1394, %v1393
      %v1605 = vpack.c.b16 %v1396, %v1395
      %v1606 = vpack.c.b16 %v1398, %v1397
      %v1607 = vpack.c.b16 %v1400, %v1399
      %v1608 = vpack.c.b16 %v1402, %v1401
      %v1609 = vpack.c.b16 %v1404, %v1403
      %v1610 = vpack.c.b16 %v1406, %v1405
      %v1611 = vpack.c.b16 %v1408, %v1407
      %v1612 = vpack.c.b16 %v1410, %v1409
      %v1613 = vpack.c.b16 %v1412, %v1411
      %v1614 = vpack.c.b16 %v1414, %v1413
      %v1615 = vpack.c.b16 %v1416, %v1415
      %v1616 = vpack.c.b16 %v1418, %v1417
      %v1617 = vpack.c.b16 %v1420, %v1419
      %v1618 = vpack.c.b16 %v1422, %v1421
      %v1619 = vpack.c.b16 %v1424, %v1423
      %v1620 = vpack.c.b16 %v1426, %v1425
      %v1621 = vpack.c.b16 %v1428, %v1427
      %v1622 = vpack.c.b16 %v1430, %v1429
      %v1623 = vpack.c.b16 %v1432, %v1431
      %v1624 = vpack.c.b16 %v1434, %v1433
      %v1625 = vpack.c.b16 %v1436, %v1435
      %v1626 = vpack.c.b16 %v1438, %v1437
      %v1627 = vpack.c.b16 %v1440, %v1439
      %v1628 = vpack.c.b16 %v1442, %v1441
      %v1629 = vpack.c.b16 %v1444, %v1443
      %v1630 = vpack.c.b16 %v1446, %v1445
      %v1631 = vpack.c.b16 %v1448, %v1447
      %v1632 = vpack.c.b16 %v1450, %v1449
      %v1633 = vpack.c.b16 %v1452, %v1451
      %v1634 = vpack.c.b16 %v1454, %v1453
      %v1635 = vpack.c.b16 %v1456, %v1455
      %v1636 = vpack.c.b16 %v1458, %v1457
      %v1637 = vpack.c.b16 %v1460, %v1459
      %v1638 = vpack.c.b16 %v1462, %v1461
      %v1639 = vpack.c.b16 %v1464, %v1463
      %v1640 = vpack.c.b16 %v1466, %v1465
      %v1641 = vpack.c.b16 %v1468, %v1467
      %v1642 = vpack.c.b16 %v1470, %v1469
      %v1643 = vpack.c.b16 %v1472, %v1471
      %v1644 = vpack.c.b16 %v1474, %v1473
      %v1645 = vpack.c.b16 %v1476, %v1475
      %v1646 = vpack.c.b16 %v1478, %v1477
      %v1647 = vpack.c.b16 %v1480, %v1479
      %v1648 = vpack.c.b16 %v1482, %v1481
      %v1649 = vpack.c.b16 %v1484, %v1483
      %v1650 = vpack.c.b16 %v1486, %v1485
      %v1651 = vpack.c.b16 %v1488, %v1487
      %v1652 = vpack.c.b16 %v1490, %v1489
      %v1653 = vpack.c.b16 %v1492, %v1491
      %v1654 = vpack.c.b16 %v1494, %v1493
      %v1655 = vpack.c.b16 %v1496, %v1495
      %v1656 = vpack.c.b16 %v1498, %v1497
      %v1657 = vpack.c.b16 %v1500, %v1499
      %v1658 = vpack.c.b16 %v1502, %v1501
      %v1659 = vpack.c.b16 %v1504, %v1503
      %v1660 = vpack.c.b16 %v1506, %v1505
      %v1661 = vpack.c.b16 %v1508, %v1507
      %v1662 = vpack.c.b16 %v1510, %v1509
      %v1663 = vpack.c.b16 %v1512, %v1511
      %v1664 = vpack.c.b16 %v1514, %v1513
      %v1665 = vpack.c.b16 %v1516, %v1515
      %v1666 = vpack.c.b16 %v1518, %v1517
      %v1667 = vpack.c.b16 %v1520, %v1519
      %v1668 = vpack.c.b16 %v1522, %v1521
      %v1669 = vpack.c.b16 %v1524, %v1523
      %v1670 = vpack.c.b16 %v1526, %v1525
      %v1671 = vpack.c.b16 %v1528, %v1527
      %v1672 = vpack.c.b16 %v1530, %v1529
      %v1673 = vpack.c.b16 %v1532, %v1531
      %v1674 = vpack.c.b16 %v1534, %v1533
      %v1675 = vpack.c.b16 %v1536, %v1535
      %v1676 = vpack.c.b16 %v1538, %v1537
      %v1677 = vpack.c.b16 %v1540, %v1539
      %v1678 = vpack.c.b16 %v1542, %v1541
      %v1679 = vpack.c.b16 %v1544, %v1543
      %v1680 = vpack.c.b16 %v1546, %v1545
      %v1681 = vpack.c.b16 %v1548, %v1547
      %v1682 = vpack.c.b16 %v1550, %v1549
      %v1683 = vpack.c.b16 %v1552, %v1551
      %v1684 = vpack.c.b16 %v1554, %v1553
      %v1685 = vpack.c.b16 %v1556, %v1555
      %v1686 = vpack.c.b16 %v1558, %v1557
      %v1831 = vunpack.c.l.b16 %v1031
      %v1832 = vunpack.c.l.b16 %v1032
      %v1833 = vunpack.c.l.b16 %v1033
      %v1834 = vunpack.c.l.b16 %v1034
      %v1835 = vunpack.c.l.b16 %v1035
      %v1836 = vunpack.c.l.b16 %v1036
      %v1837 = vunpack.c.l.b16 %v1037
      %v1838 = vunpack.c.l.b16 %v1038
      %v1839 = vunpack.c.l.b16 %v1039
      %v1840 = vunpack.c.l.b16 %v1040
      %v1841 = vunpack.c.l.b16 %v1041
      %v1842 = vunpack.c.l.b16 %v1042
      %v1843 = vunpack.c.l.b16 %v1043
      %v1844 = vunpack.c.l.b16 %v1044
      %v1845 = vunpack.c.l.b16 %v1045
      %v1846 = vunpack.c.l.b16 %v1046
      %v1847 = vpack.c.b16 %v1832, %v1831
      %v1848 = vpack.c.b16 %v1834, %v1833
      %v1849 = vpack.c.b16 %v1836, %v1835
      %v1850 = vpack.c.b16 %v1838, %v1837
      %v1851 = vpack.c.b16 %v1840, %v1839
      %v1852 = vpack.c.b16 %v1842, %v1841
      %v1853 = vpack.c.b16 %v1844, %v1843
      %v1854 = vpack.c.b16 %v1846, %v1845
      %1863 = vmatpush.bf16.msra.mxu0 %v1854
      %1864 = vmatpush.bf16.msra.mxu0 %v1853
      %1865 = vmatpush.bf16.msra.mxu0 %v1852
      %1866 = vmatpush.bf16.msra.mxu0 %v1851
      %1867 = vmatpush.bf16.msra.mxu0 %v1850
      %1868 = vmatpush.bf16.msra.mxu0 %v1849
      %1869 = vmatpush.bf16.msra.mxu0 %v1848
      %1870 = vmatpush.bf16.msra.mxu0 %v1847
      %1871 = vmatmul.bf16.gmra.mxu0 %v1559
      %v1872 = vpop.f32.mrf.mxu0
      %v1873 = vadd.f32 0.0, %v1872
      %v1874 = vpop.f32.mrf.mxu0
      %v1875 = vadd.f32 0.0, %v1874
      %1876 = vmatmul.bf16.gmra.mxu0 %v1560
      %v1877 = vpop.f32.mrf.mxu0
      %v1878 = vadd.f32 0.0, %v1877
      %v1879 = vpop.f32.mrf.mxu0
      %v1880 = vadd.f32 0.0, %v1879
      %1881 = vmatmul.bf16.gmra.mxu0 %v1561
      %v1882 = vpop.f32.mrf.mxu0
      %v1883 = vadd.f32 0.0, %v1882
      %v1884 = vpop.f32.mrf.mxu0
      %v1885 = vadd.f32 0.0, %v1884
      %1886 = vmatmul.bf16.gmra.mxu0 %v1562
      %v1887 = vpop.f32.mrf.mxu0
      %v1888 = vadd.f32 0.0, %v1887
      %v1889 = vpop.f32.mrf.mxu0
      %v1890 = vadd.f32 0.0, %v1889
      %1891 = vmatmul.bf16.gmra.mxu0 %v1563
      %v1892 = vpop.f32.mrf.mxu0
      %v1893 = vadd.f32 0.0, %v1892
      %v1894 = vpop.f32.mrf.mxu0
      %v1895 = vadd.f32 0.0, %v1894
      %1896 = vmatmul.bf16.gmra.mxu0 %v1564
      %v1897 = vpop.f32.mrf.mxu0
      %v1898 = vadd.f32 0.0, %v1897
      %v1899 = vpop.f32.mrf.mxu0
      %v1900 = vadd.f32 0.0, %v1899
      %1901 = vmatmul.bf16.gmra.mxu0 %v1565
      %v1902 = vpop.f32.mrf.mxu0
      %v1903 = vadd.f32 0.0, %v1902
      %v1904 = vpop.f32.mrf.mxu0
      %v1905 = vadd.f32 0.0, %v1904
      %1906 = vmatmul.bf16.gmra.mxu0 %v1566
      %v1907 = vpop.f32.mrf.mxu0
      %v1908 = vadd.f32 0.0, %v1907
      %v1909 = vpop.f32.mrf.mxu0
      %v1910 = vadd.f32 0.0, %v1909
      %1911 = vmatmul.bf16.gmra.mxu0 %v1567
      %v1912 = vpop.f32.mrf.mxu0
      %v1913 = vadd.f32 0.0, %v1912
      %v1914 = vpop.f32.mrf.mxu0
      %v1915 = vadd.f32 0.0, %v1914
      %1916 = vmatmul.bf16.gmra.mxu0 %v1568
      %v1917 = vpop.f32.mrf.mxu0
      %v1918 = vadd.f32 0.0, %v1917
      %v1919 = vpop.f32.mrf.mxu0
      %v1920 = vadd.f32 0.0, %v1919
      %1921 = vmatmul.bf16.gmra.mxu0 %v1569
      %v1922 = vpop.f32.mrf.mxu0
      %v1923 = vadd.f32 0.0, %v1922
      %v1924 = vpop.f32.mrf.mxu0
      %v1925 = vadd.f32 0.0, %v1924
      %1926 = vmatmul.bf16.gmra.mxu0 %v1570
      %v1927 = vpop.f32.mrf.mxu0
      %v1928 = vadd.f32 0.0, %v1927
      %v1929 = vpop.f32.mrf.mxu0
      %v1930 = vadd.f32 0.0, %v1929
      %1931 = vmatmul.bf16.gmra.mxu0 %v1571
      %v1932 = vpop.f32.mrf.mxu0
      %v1933 = vadd.f32 0.0, %v1932
      %v1934 = vpop.f32.mrf.mxu0
      %v1935 = vadd.f32 0.0, %v1934
      %1936 = vmatmul.bf16.gmra.mxu0 %v1572
      %v1937 = vpop.f32.mrf.mxu0
      %v1938 = vadd.f32 0.0, %v1937
      %v1939 = vpop.f32.mrf.mxu0
      %v1940 = vadd.f32 0.0, %v1939
      %1941 = vmatmul.bf16.gmra.mxu0 %v1573
      %v1942 = vpop.f32.mrf.mxu0
      %v1943 = vadd.f32 0.0, %v1942
      %v1944 = vpop.f32.mrf.mxu0
      %v1945 = vadd.f32 0.0, %v1944
      %1946 = vmatmul.bf16.gmra.mxu0 %v1574
      %v1947 = vpop.f32.mrf.mxu0
      %v1948 = vadd.f32 0.0, %v1947
      %v1949 = vpop.f32.mrf.mxu0
      %v1950 = vadd.f32 0.0, %v1949
      %1951 = vmatmul.bf16.gmra.mxu0 %v1575
      %v1952 = vpop.f32.mrf.mxu0
      %v1953 = vadd.f32 0.0, %v1952
      %v1954 = vpop.f32.mrf.mxu0
      %v1955 = vadd.f32 0.0, %v1954
      %1956 = vmatmul.bf16.gmra.mxu0 %v1576
      %v1957 = vpop.f32.mrf.mxu0
      %v1958 = vadd.f32 0.0, %v1957
      %v1959 = vpop.f32.mrf.mxu0
      %v1960 = vadd.f32 0.0, %v1959
      %1961 = vmatmul.bf16.gmra.mxu0 %v1577
      %v1962 = vpop.f32.mrf.mxu0
      %v1963 = vadd.f32 0.0, %v1962
      %v1964 = vpop.f32.mrf.mxu0
      %v1965 = vadd.f32 0.0, %v1964
      %1966 = vmatmul.bf16.gmra.mxu0 %v1578
      %v1967 = vpop.f32.mrf.mxu0
      %v1968 = vadd.f32 0.0, %v1967
      %v1969 = vpop.f32.mrf.mxu0
      %v1970 = vadd.f32 0.0, %v1969
      %1971 = vmatmul.bf16.gmra.mxu0 %v1579
      %v1972 = vpop.f32.mrf.mxu0
      %v1973 = vadd.f32 0.0, %v1972
      %v1974 = vpop.f32.mrf.mxu0
      %v1975 = vadd.f32 0.0, %v1974
      %1976 = vmatmul.bf16.gmra.mxu0 %v1580
      %v1977 = vpop.f32.mrf.mxu0
      %v1978 = vadd.f32 0.0, %v1977
      %v1979 = vpop.f32.mrf.mxu0
      %v1980 = vadd.f32 0.0, %v1979
      %1981 = vmatmul.bf16.gmra.mxu0 %v1581
      %v1982 = vpop.f32.mrf.mxu0
      %v1983 = vadd.f32 0.0, %v1982
      %v1984 = vpop.f32.mrf.mxu0
      %v1985 = vadd.f32 0.0, %v1984
      %1986 = vmatmul.bf16.gmra.mxu0 %v1582
      %v1987 = vpop.f32.mrf.mxu0
      %v1988 = vadd.f32 0.0, %v1987
      %v1989 = vpop.f32.mrf.mxu0
      %v1990 = vadd.f32 0.0, %v1989
      %1991 = vmatmul.bf16.gmra.mxu0 %v1583
      %v1992 = vpop.f32.mrf.mxu0
      %v1993 = vadd.f32 0.0, %v1992
      %v1994 = vpop.f32.mrf.mxu0
      %v1995 = vadd.f32 0.0, %v1994
      %1996 = vmatmul.bf16.gmra.mxu0 %v1584
      %v1997 = vpop.f32.mrf.mxu0
      %v1998 = vadd.f32 0.0, %v1997
      %v1999 = vpop.f32.mrf.mxu0
      %v2000 = vadd.f32 0.0, %v1999
      %2001 = vmatmul.bf16.gmra.mxu0 %v1585
      %v2002 = vpop.f32.mrf.mxu0
      %v2003 = vadd.f32 0.0, %v2002
      %v2004 = vpop.f32.mrf.mxu0
      %v2005 = vadd.f32 0.0, %v2004
      %2006 = vmatmul.bf16.gmra.mxu0 %v1586
      %v2007 = vpop.f32.mrf.mxu0
      %v2008 = vadd.f32 0.0, %v2007
      %v2009 = vpop.f32.mrf.mxu0
      %v2010 = vadd.f32 0.0, %v2009
      %2011 = vmatmul.bf16.gmra.mxu0 %v1587
      %v2012 = vpop.f32.mrf.mxu0
      %v2013 = vadd.f32 0.0, %v2012
      %v2014 = vpop.f32.mrf.mxu0
      %v2015 = vadd.f32 0.0, %v2014
      %2016 = vmatmul.bf16.gmra.mxu0 %v1588
      %v2017 = vpop.f32.mrf.mxu0
      %v2018 = vadd.f32 0.0, %v2017
      %v2019 = vpop.f32.mrf.mxu0
      %v2020 = vadd.f32 0.0, %v2019
      %2021 = vmatmul.bf16.gmra.mxu0 %v1589
      %v2022 = vpop.f32.mrf.mxu0
      %v2023 = vadd.f32 0.0, %v2022
      %v2024 = vpop.f32.mrf.mxu0
      %v2025 = vadd.f32 0.0, %v2024
      %2026 = vmatmul.bf16.gmra.mxu0 %v1590
      %v2027 = vpop.f32.mrf.mxu0
      %v2028 = vadd.f32 0.0, %v2027
      %v2029 = vpop.f32.mrf.mxu0
      %v2030 = vadd.f32 0.0, %v2029
      %2031 = vmatmul.bf16.gmra.mxu0 %v1591
      %v2032 = vpop.f32.mrf.mxu0
      %v2033 = vadd.f32 0.0, %v2032
      %v2034 = vpop.f32.mrf.mxu0
      %v2035 = vadd.f32 0.0, %v2034
      %2036 = vmatmul.bf16.gmra.mxu0 %v1592
      %v2037 = vpop.f32.mrf.mxu0
      %v2038 = vadd.f32 0.0, %v2037
      %v2039 = vpop.f32.mrf.mxu0
      %v2040 = vadd.f32 0.0, %v2039
      %2041 = vmatmul.bf16.gmra.mxu0 %v1593
      %v2042 = vpop.f32.mrf.mxu0
      %v2043 = vadd.f32 0.0, %v2042
      %v2044 = vpop.f32.mrf.mxu0
      %v2045 = vadd.f32 0.0, %v2044
      %2046 = vmatmul.bf16.gmra.mxu0 %v1594
      %v2047 = vpop.f32.mrf.mxu0
      %v2048 = vadd.f32 0.0, %v2047
      %v2049 = vpop.f32.mrf.mxu0
      %v2050 = vadd.f32 0.0, %v2049
      %2051 = vmatmul.bf16.gmra.mxu0 %v1595
      %v2052 = vpop.f32.mrf.mxu0
      %v2053 = vadd.f32 0.0, %v2052
      %v2054 = vpop.f32.mrf.mxu0
      %v2055 = vadd.f32 0.0, %v2054
      %2056 = vmatmul.bf16.gmra.mxu0 %v1596
      %v2057 = vpop.f32.mrf.mxu0
      %v2058 = vadd.f32 0.0, %v2057
      %v2059 = vpop.f32.mrf.mxu0
      %v2060 = vadd.f32 0.0, %v2059
      %2061 = vmatmul.bf16.gmra.mxu0 %v1597
      %v2062 = vpop.f32.mrf.mxu0
      %v2063 = vadd.f32 0.0, %v2062
      %v2064 = vpop.f32.mrf.mxu0
      %v2065 = vadd.f32 0.0, %v2064
      %2066 = vmatmul.bf16.gmra.mxu0 %v1598
      %v2067 = vpop.f32.mrf.mxu0
      %v2068 = vadd.f32 0.0, %v2067
      %v2069 = vpop.f32.mrf.mxu0
      %v2070 = vadd.f32 0.0, %v2069
      %2071 = vmatmul.bf16.gmra.mxu0 %v1599
      %v2072 = vpop.f32.mrf.mxu0
      %v2073 = vadd.f32 0.0, %v2072
      %v2074 = vpop.f32.mrf.mxu0
      %v2075 = vadd.f32 0.0, %v2074
      %2076 = vmatmul.bf16.gmra.mxu0 %v1600
      %v2077 = vpop.f32.mrf.mxu0
      %v2078 = vadd.f32 0.0, %v2077
      %v2079 = vpop.f32.mrf.mxu0
      %v2080 = vadd.f32 0.0, %v2079
      %2081 = vmatmul.bf16.gmra.mxu0 %v1601
      %v2082 = vpop.f32.mrf.mxu0
      %v2083 = vadd.f32 0.0, %v2082
      %v2084 = vpop.f32.mrf.mxu0
      %v2085 = vadd.f32 0.0, %v2084
      %2086 = vmatmul.bf16.gmra.mxu0 %v1602
      %v2087 = vpop.f32.mrf.mxu0
      %v2088 = vadd.f32 0.0, %v2087
      %v2089 = vpop.f32.mrf.mxu0
      %v2090 = vadd.f32 0.0, %v2089
      %2091 = vmatmul.bf16.gmra.mxu0 %v1603
      %v2092 = vpop.f32.mrf.mxu0
      %v2093 = vadd.f32 0.0, %v2092
      %v2094 = vpop.f32.mrf.mxu0
      %v2095 = vadd.f32 0.0, %v2094
      %2096 = vmatmul.bf16.gmra.mxu0 %v1604
      %v2097 = vpop.f32.mrf.mxu0
      %v2098 = vadd.f32 0.0, %v2097
      %v2099 = vpop.f32.mrf.mxu0
      %v2100 = vadd.f32 0.0, %v2099
      %2101 = vmatmul.bf16.gmra.mxu0 %v1605
      %v2102 = vpop.f32.mrf.mxu0
      %v2103 = vadd.f32 0.0, %v2102
      %v2104 = vpop.f32.mrf.mxu0
      %v2105 = vadd.f32 0.0, %v2104
      %2106 = vmatmul.bf16.gmra.mxu0 %v1606
      %v2107 = vpop.f32.mrf.mxu0
      %v2108 = vadd.f32 0.0, %v2107
      %v2109 = vpop.f32.mrf.mxu0
      %v2110 = vadd.f32 0.0, %v2109
      %2111 = vmatmul.bf16.gmra.mxu0 %v1607
      %v2112 = vpop.f32.mrf.mxu0
      %v2113 = vadd.f32 0.0, %v2112
      %v2114 = vpop.f32.mrf.mxu0
      %v2115 = vadd.f32 0.0, %v2114
      %2116 = vmatmul.bf16.gmra.mxu0 %v1608
      %v2117 = vpop.f32.mrf.mxu0
      %v2118 = vadd.f32 0.0, %v2117
      %v2119 = vpop.f32.mrf.mxu0
      %v2120 = vadd.f32 0.0, %v2119
      %2121 = vmatmul.bf16.gmra.mxu0 %v1609
      %v2122 = vpop.f32.mrf.mxu0
      %v2123 = vadd.f32 0.0, %v2122
      %v2124 = vpop.f32.mrf.mxu0
      %v2125 = vadd.f32 0.0, %v2124
      %2126 = vmatmul.bf16.gmra.mxu0 %v1610
      %v2127 = vpop.f32.mrf.mxu0
      %v2128 = vadd.f32 0.0, %v2127
      %v2129 = vpop.f32.mrf.mxu0
      %v2130 = vadd.f32 0.0, %v2129
      %2131 = vmatmul.bf16.gmra.mxu0 %v1611
      %v2132 = vpop.f32.mrf.mxu0
      %v2133 = vadd.f32 0.0, %v2132
      %v2134 = vpop.f32.mrf.mxu0
      %v2135 = vadd.f32 0.0, %v2134
      %2136 = vmatmul.bf16.gmra.mxu0 %v1612
      %v2137 = vpop.f32.mrf.mxu0
      %v2138 = vadd.f32 0.0, %v2137
      %v2139 = vpop.f32.mrf.mxu0
      %v2140 = vadd.f32 0.0, %v2139
      %2141 = vmatmul.bf16.gmra.mxu0 %v1613
      %v2142 = vpop.f32.mrf.mxu0
      %v2143 = vadd.f32 0.0, %v2142
      %v2144 = vpop.f32.mrf.mxu0
      %v2145 = vadd.f32 0.0, %v2144
      %2146 = vmatmul.bf16.gmra.mxu0 %v1614
      %v2147 = vpop.f32.mrf.mxu0
      %v2148 = vadd.f32 0.0, %v2147
      %v2149 = vpop.f32.mrf.mxu0
      %v2150 = vadd.f32 0.0, %v2149
      %2151 = vmatmul.bf16.gmra.mxu0 %v1615
      %v2152 = vpop.f32.mrf.mxu0
      %v2153 = vadd.f32 0.0, %v2152
      %v2154 = vpop.f32.mrf.mxu0
      %v2155 = vadd.f32 0.0, %v2154
      %2156 = vmatmul.bf16.gmra.mxu0 %v1616
      %v2157 = vpop.f32.mrf.mxu0
      %v2158 = vadd.f32 0.0, %v2157
      %v2159 = vpop.f32.mrf.mxu0
      %v2160 = vadd.f32 0.0, %v2159
      %2161 = vmatmul.bf16.gmra.mxu0 %v1617
      %v2162 = vpop.f32.mrf.mxu0
      %v2163 = vadd.f32 0.0, %v2162
      %v2164 = vpop.f32.mrf.mxu0
      %v2165 = vadd.f32 0.0, %v2164
      %2166 = vmatmul.bf16.gmra.mxu0 %v1618
      %v2167 = vpop.f32.mrf.mxu0
      %v2168 = vadd.f32 0.0, %v2167
      %v2169 = vpop.f32.mrf.mxu0
      %v2170 = vadd.f32 0.0, %v2169
      %2171 = vmatmul.bf16.gmra.mxu0 %v1619
      %v2172 = vpop.f32.mrf.mxu0
      %v2173 = vadd.f32 0.0, %v2172
      %v2174 = vpop.f32.mrf.mxu0
      %v2175 = vadd.f32 0.0, %v2174
      %2176 = vmatmul.bf16.gmra.mxu0 %v1620
      %v2177 = vpop.f32.mrf.mxu0
      %v2178 = vadd.f32 0.0, %v2177
      %v2179 = vpop.f32.mrf.mxu0
      %v2180 = vadd.f32 0.0, %v2179
      %2181 = vmatmul.bf16.gmra.mxu0 %v1621
      %v2182 = vpop.f32.mrf.mxu0
      %v2183 = vadd.f32 0.0, %v2182
      %v2184 = vpop.f32.mrf.mxu0
      %v2185 = vadd.f32 0.0, %v2184
      %2186 = vmatmul.bf16.gmra.mxu0 %v1622
      %v2187 = vpop.f32.mrf.mxu0
      %v2188 = vadd.f32 0.0, %v2187
      %v2189 = vpop.f32.mrf.mxu0
      %v2190 = vadd.f32 0.0, %v2189
      %2191 = vmatmul.bf16.gmra.mxu0 %v1623
      %v2192 = vpop.f32.mrf.mxu0
      %v2193 = vadd.f32 0.0, %v2192
      %v2194 = vpop.f32.mrf.mxu0
      %v2195 = vadd.f32 0.0, %v2194
      %2196 = vmatmul.bf16.gmra.mxu0 %v1624
      %v2197 = vpop.f32.mrf.mxu0
      %v2198 = vadd.f32 0.0, %v2197
      %v2199 = vpop.f32.mrf.mxu0
      %v2200 = vadd.f32 0.0, %v2199
      %2201 = vmatmul.bf16.gmra.mxu0 %v1625
      %v2202 = vpop.f32.mrf.mxu0
      %v2203 = vadd.f32 0.0, %v2202
      %v2204 = vpop.f32.mrf.mxu0
      %v2205 = vadd.f32 0.0, %v2204
      %2206 = vmatmul.bf16.gmra.mxu0 %v1626
      %v2207 = vpop.f32.mrf.mxu0
      %v2208 = vadd.f32 0.0, %v2207
      %v2209 = vpop.f32.mrf.mxu0
      %v2210 = vadd.f32 0.0, %v2209
      %2211 = vmatmul.bf16.gmra.mxu0 %v1627
      %v2212 = vpop.f32.mrf.mxu0
      %v2213 = vadd.f32 0.0, %v2212
      %v2214 = vpop.f32.mrf.mxu0
      %v2215 = vadd.f32 0.0, %v2214
      %2216 = vmatmul.bf16.gmra.mxu0 %v1628
      %v2217 = vpop.f32.mrf.mxu0
      %v2218 = vadd.f32 0.0, %v2217
      %v2219 = vpop.f32.mrf.mxu0
      %v2220 = vadd.f32 0.0, %v2219
      %2221 = vmatmul.bf16.gmra.mxu0 %v1629
      %v2222 = vpop.f32.mrf.mxu0
      %v2223 = vadd.f32 0.0, %v2222
      %v2224 = vpop.f32.mrf.mxu0
      %v2225 = vadd.f32 0.0, %v2224
      %2226 = vmatmul.bf16.gmra.mxu0 %v1630
      %v2227 = vpop.f32.mrf.mxu0
      %v2228 = vadd.f32 0.0, %v2227
      %v2229 = vpop.f32.mrf.mxu0
      %v2230 = vadd.f32 0.0, %v2229
      %2231 = vmatmul.bf16.gmra.mxu0 %v1631
      %v2232 = vpop.f32.mrf.mxu0
      %v2233 = vadd.f32 0.0, %v2232
      %v2234 = vpop.f32.mrf.mxu0
      %v2235 = vadd.f32 0.0, %v2234
      %2236 = vmatmul.bf16.gmra.mxu0 %v1632
      %v2237 = vpop.f32.mrf.mxu0
      %v2238 = vadd.f32 0.0, %v2237
      %v2239 = vpop.f32.mrf.mxu0
      %v2240 = vadd.f32 0.0, %v2239
      %2241 = vmatmul.bf16.gmra.mxu0 %v1633
      %v2242 = vpop.f32.mrf.mxu0
      %v2243 = vadd.f32 0.0, %v2242
      %v2244 = vpop.f32.mrf.mxu0
      %v2245 = vadd.f32 0.0, %v2244
      %2246 = vmatmul.bf16.gmra.mxu0 %v1634
      %v2247 = vpop.f32.mrf.mxu0
      %v2248 = vadd.f32 0.0, %v2247
      %v2249 = vpop.f32.mrf.mxu0
      %v2250 = vadd.f32 0.0, %v2249
      %2251 = vmatmul.bf16.gmra.mxu0 %v1635
      %v2252 = vpop.f32.mrf.mxu0
      %v2253 = vadd.f32 0.0, %v2252
      %v2254 = vpop.f32.mrf.mxu0
      %v2255 = vadd.f32 0.0, %v2254
      %2256 = vmatmul.bf16.gmra.mxu0 %v1636
      %v2257 = vpop.f32.mrf.mxu0
      %v2258 = vadd.f32 0.0, %v2257
      %v2259 = vpop.f32.mrf.mxu0
      %v2260 = vadd.f32 0.0, %v2259
      %2261 = vmatmul.bf16.gmra.mxu0 %v1637
      %v2262 = vpop.f32.mrf.mxu0
      %v2263 = vadd.f32 0.0, %v2262
      %v2264 = vpop.f32.mrf.mxu0
      %v2265 = vadd.f32 0.0, %v2264
      %2266 = vmatmul.bf16.gmra.mxu0 %v1638
      %v2267 = vpop.f32.mrf.mxu0
      %v2268 = vadd.f32 0.0, %v2267
      %v2269 = vpop.f32.mrf.mxu0
      %v2270 = vadd.f32 0.0, %v2269
      %2271 = vmatmul.bf16.gmra.mxu0 %v1639
      %v2272 = vpop.f32.mrf.mxu0
      %v2273 = vadd.f32 0.0, %v2272
      %v2274 = vpop.f32.mrf.mxu0
      %v2275 = vadd.f32 0.0, %v2274
      %2276 = vmatmul.bf16.gmra.mxu0 %v1640
      %v2277 = vpop.f32.mrf.mxu0
      %v2278 = vadd.f32 0.0, %v2277
      %v2279 = vpop.f32.mrf.mxu0
      %v2280 = vadd.f32 0.0, %v2279
      %2281 = vmatmul.bf16.gmra.mxu0 %v1641
      %v2282 = vpop.f32.mrf.mxu0
      %v2283 = vadd.f32 0.0, %v2282
      %v2284 = vpop.f32.mrf.mxu0
      %v2285 = vadd.f32 0.0, %v2284
      %2286 = vmatmul.bf16.gmra.mxu0 %v1642
      %v2287 = vpop.f32.mrf.mxu0
      %v2288 = vadd.f32 0.0, %v2287
      %v2289 = vpop.f32.mrf.mxu0
      %v2290 = vadd.f32 0.0, %v2289
      %2291 = vmatmul.bf16.gmra.mxu0 %v1643
      %v2292 = vpop.f32.mrf.mxu0
      %v2293 = vadd.f32 0.0, %v2292
      %v2294 = vpop.f32.mrf.mxu0
      %v2295 = vadd.f32 0.0, %v2294
      %2296 = vmatmul.bf16.gmra.mxu0 %v1644
      %v2297 = vpop.f32.mrf.mxu0
      %v2298 = vadd.f32 0.0, %v2297
      %v2299 = vpop.f32.mrf.mxu0
      %v2300 = vadd.f32 0.0, %v2299
      %2301 = vmatmul.bf16.gmra.mxu0 %v1645
      %v2302 = vpop.f32.mrf.mxu0
      %v2303 = vadd.f32 0.0, %v2302
      %v2304 = vpop.f32.mrf.mxu0
      %v2305 = vadd.f32 0.0, %v2304
      %2306 = vmatmul.bf16.gmra.mxu0 %v1646
      %v2307 = vpop.f32.mrf.mxu0
      %v2308 = vadd.f32 0.0, %v2307
      %v2309 = vpop.f32.mrf.mxu0
      %v2310 = vadd.f32 0.0, %v2309
      %2311 = vmatmul.bf16.gmra.mxu0 %v1647
      %v2312 = vpop.f32.mrf.mxu0
      %v2313 = vadd.f32 0.0, %v2312
      %v2314 = vpop.f32.mrf.mxu0
      %v2315 = vadd.f32 0.0, %v2314
      %2316 = vmatmul.bf16.gmra.mxu0 %v1648
      %v2317 = vpop.f32.mrf.mxu0
      %v2318 = vadd.f32 0.0, %v2317
      %v2319 = vpop.f32.mrf.mxu0
      %v2320 = vadd.f32 0.0, %v2319
      %2321 = vmatmul.bf16.gmra.mxu0 %v1649
      %v2322 = vpop.f32.mrf.mxu0
      %v2323 = vadd.f32 0.0, %v2322
      %v2324 = vpop.f32.mrf.mxu0
      %v2325 = vadd.f32 0.0, %v2324
      %2326 = vmatmul.bf16.gmra.mxu0 %v1650
      %v2327 = vpop.f32.mrf.mxu0
      %v2328 = vadd.f32 0.0, %v2327
      %v2329 = vpop.f32.mrf.mxu0
      %v2330 = vadd.f32 0.0, %v2329
      %2331 = vmatmul.bf16.gmra.mxu0 %v1651
      %v2332 = vpop.f32.mrf.mxu0
      %v2333 = vadd.f32 0.0, %v2332
      %v2334 = vpop.f32.mrf.mxu0
      %v2335 = vadd.f32 0.0, %v2334
      %2336 = vmatmul.bf16.gmra.mxu0 %v1652
      %v2337 = vpop.f32.mrf.mxu0
      %v2338 = vadd.f32 0.0, %v2337
      %v2339 = vpop.f32.mrf.mxu0
      %v2340 = vadd.f32 0.0, %v2339
      %2341 = vmatmul.bf16.gmra.mxu0 %v1653
      %v2342 = vpop.f32.mrf.mxu0
      %v2343 = vadd.f32 0.0, %v2342
      %v2344 = vpop.f32.mrf.mxu0
      %v2345 = vadd.f32 0.0, %v2344
      %2346 = vmatmul.bf16.gmra.mxu0 %v1654
      %v2347 = vpop.f32.mrf.mxu0
      %v2348 = vadd.f32 0.0, %v2347
      %v2349 = vpop.f32.mrf.mxu0
      %v2350 = vadd.f32 0.0, %v2349
      %2351 = vmatmul.bf16.gmra.mxu0 %v1655
      %v2352 = vpop.f32.mrf.mxu0
      %v2353 = vadd.f32 0.0, %v2352
      %v2354 = vpop.f32.mrf.mxu0
      %v2355 = vadd.f32 0.0, %v2354
      %2356 = vmatmul.bf16.gmra.mxu0 %v1656
      %v2357 = vpop.f32.mrf.mxu0
      %v2358 = vadd.f32 0.0, %v2357
      %v2359 = vpop.f32.mrf.mxu0
      %v2360 = vadd.f32 0.0, %v2359
      %2361 = vmatmul.bf16.gmra.mxu0 %v1657
      %v2362 = vpop.f32.mrf.mxu0
      %v2363 = vadd.f32 0.0, %v2362
      %v2364 = vpop.f32.mrf.mxu0
      %v2365 = vadd.f32 0.0, %v2364
      %2366 = vmatmul.bf16.gmra.mxu0 %v1658
      %v2367 = vpop.f32.mrf.mxu0
      %v2368 = vadd.f32 0.0, %v2367
      %v2369 = vpop.f32.mrf.mxu0
      %v2370 = vadd.f32 0.0, %v2369
      %2371 = vmatmul.bf16.gmra.mxu0 %v1659
      %v2372 = vpop.f32.mrf.mxu0
      %v2373 = vadd.f32 0.0, %v2372
      %v2374 = vpop.f32.mrf.mxu0
      %v2375 = vadd.f32 0.0, %v2374
      %2376 = vmatmul.bf16.gmra.mxu0 %v1660
      %v2377 = vpop.f32.mrf.mxu0
      %v2378 = vadd.f32 0.0, %v2377
      %v2379 = vpop.f32.mrf.mxu0
      %v2380 = vadd.f32 0.0, %v2379
      %2381 = vmatmul.bf16.gmra.mxu0 %v1661
      %v2382 = vpop.f32.mrf.mxu0
      %v2383 = vadd.f32 0.0, %v2382
      %v2384 = vpop.f32.mrf.mxu0
      %v2385 = vadd.f32 0.0, %v2384
      %2386 = vmatmul.bf16.gmra.mxu0 %v1662
      %v2387 = vpop.f32.mrf.mxu0
      %v2388 = vadd.f32 0.0, %v2387
      %v2389 = vpop.f32.mrf.mxu0
      %v2390 = vadd.f32 0.0, %v2389
      %2391 = vmatmul.bf16.gmra.mxu0 %v1663
      %v2392 = vpop.f32.mrf.mxu0
      %v2393 = vadd.f32 0.0, %v2392
      %v2394 = vpop.f32.mrf.mxu0
      %v2395 = vadd.f32 0.0, %v2394
      %2396 = vmatmul.bf16.gmra.mxu0 %v1664
      %v2397 = vpop.f32.mrf.mxu0
      %v2398 = vadd.f32 0.0, %v2397
      %v2399 = vpop.f32.mrf.mxu0
      %v2400 = vadd.f32 0.0, %v2399
      %2401 = vmatmul.bf16.gmra.mxu0 %v1665
      %v2402 = vpop.f32.mrf.mxu0
      %v2403 = vadd.f32 0.0, %v2402
      %v2404 = vpop.f32.mrf.mxu0
      %v2405 = vadd.f32 0.0, %v2404
      %2406 = vmatmul.bf16.gmra.mxu0 %v1666
      %v2407 = vpop.f32.mrf.mxu0
      %v2408 = vadd.f32 0.0, %v2407
      %v2409 = vpop.f32.mrf.mxu0
      %v2410 = vadd.f32 0.0, %v2409
      %2411 = vmatmul.bf16.gmra.mxu0 %v1667
      %v2412 = vpop.f32.mrf.mxu0
      %v2413 = vadd.f32 0.0, %v2412
      %v2414 = vpop.f32.mrf.mxu0
      %v2415 = vadd.f32 0.0, %v2414
      %2416 = vmatmul.bf16.gmra.mxu0 %v1668
      %v2417 = vpop.f32.mrf.mxu0
      %v2418 = vadd.f32 0.0, %v2417
      %v2419 = vpop.f32.mrf.mxu0
      %v2420 = vadd.f32 0.0, %v2419
      %2421 = vmatmul.bf16.gmra.mxu0 %v1669
      %v2422 = vpop.f32.mrf.mxu0
      %v2423 = vadd.f32 0.0, %v2422
      %v2424 = vpop.f32.mrf.mxu0
      %v2425 = vadd.f32 0.0, %v2424
      %2426 = vmatmul.bf16.gmra.mxu0 %v1670
      %v2427 = vpop.f32.mrf.mxu0
      %v2428 = vadd.f32 0.0, %v2427
      %v2429 = vpop.f32.mrf.mxu0
      %v2430 = vadd.f32 0.0, %v2429
      %2431 = vmatmul.bf16.gmra.mxu0 %v1671
      %v2432 = vpop.f32.mrf.mxu0
      %v2433 = vadd.f32 0.0, %v2432
      %v2434 = vpop.f32.mrf.mxu0
      %v2435 = vadd.f32 0.0, %v2434
      %2436 = vmatmul.bf16.gmra.mxu0 %v1672
      %v2437 = vpop.f32.mrf.mxu0
      %v2438 = vadd.f32 0.0, %v2437
      %v2439 = vpop.f32.mrf.mxu0
      %v2440 = vadd.f32 0.0, %v2439
      %2441 = vmatmul.bf16.gmra.mxu0 %v1673
      %v2442 = vpop.f32.mrf.mxu0
      %v2443 = vadd.f32 0.0, %v2442
      %v2444 = vpop.f32.mrf.mxu0
      %v2445 = vadd.f32 0.0, %v2444
      %2446 = vmatmul.bf16.gmra.mxu0 %v1674
      %v2447 = vpop.f32.mrf.mxu0
      %v2448 = vadd.f32 0.0, %v2447
      %v2449 = vpop.f32.mrf.mxu0
      %v2450 = vadd.f32 0.0, %v2449
      %2451 = vmatmul.bf16.gmra.mxu0 %v1675
      %v2452 = vpop.f32.mrf.mxu0
      %v2453 = vadd.f32 0.0, %v2452
      %v2454 = vpop.f32.mrf.mxu0
      %v2455 = vadd.f32 0.0, %v2454
      %2456 = vmatmul.bf16.gmra.mxu0 %v1676
      %v2457 = vpop.f32.mrf.mxu0
      %v2458 = vadd.f32 0.0, %v2457
      %v2459 = vpop.f32.mrf.mxu0
      %v2460 = vadd.f32 0.0, %v2459
      %2461 = vmatmul.bf16.gmra.mxu0 %v1677
      %v2462 = vpop.f32.mrf.mxu0
      %v2463 = vadd.f32 0.0, %v2462
      %v2464 = vpop.f32.mrf.mxu0
      %v2465 = vadd.f32 0.0, %v2464
      %2466 = vmatmul.bf16.gmra.mxu0 %v1678
      %v2467 = vpop.f32.mrf.mxu0
      %v2468 = vadd.f32 0.0, %v2467
      %v2469 = vpop.f32.mrf.mxu0
      %v2470 = vadd.f32 0.0, %v2469
      %2471 = vmatmul.bf16.gmra.mxu0 %v1679
      %v2472 = vpop.f32.mrf.mxu0
      %v2473 = vadd.f32 0.0, %v2472
      %v2474 = vpop.f32.mrf.mxu0
      %v2475 = vadd.f32 0.0, %v2474
      %2476 = vmatmul.bf16.gmra.mxu0 %v1680
      %v2477 = vpop.f32.mrf.mxu0
      %v2478 = vadd.f32 0.0, %v2477
      %v2479 = vpop.f32.mrf.mxu0
      %v2480 = vadd.f32 0.0, %v2479
      %2481 = vmatmul.bf16.gmra.mxu0 %v1681
      %v2482 = vpop.f32.mrf.mxu0
      %v2483 = vadd.f32 0.0, %v2482
      %v2484 = vpop.f32.mrf.mxu0
      %v2485 = vadd.f32 0.0, %v2484
      %2486 = vmatmul.bf16.gmra.mxu0 %v1682
      %v2487 = vpop.f32.mrf.mxu0
      %v2488 = vadd.f32 0.0, %v2487
      %v2489 = vpop.f32.mrf.mxu0
      %v2490 = vadd.f32 0.0, %v2489
      %2491 = vmatmul.bf16.gmra.mxu0 %v1683
      %v2492 = vpop.f32.mrf.mxu0
      %v2493 = vadd.f32 0.0, %v2492
      %v2494 = vpop.f32.mrf.mxu0
      %v2495 = vadd.f32 0.0, %v2494
      %2496 = vmatmul.bf16.gmra.mxu0 %v1684
      %v2497 = vpop.f32.mrf.mxu0
      %v2498 = vadd.f32 0.0, %v2497
      %v2499 = vpop.f32.mrf.mxu0
      %v2500 = vadd.f32 0.0, %v2499
      %2501 = vmatmul.bf16.gmra.mxu0 %v1685
      %v2502 = vpop.f32.mrf.mxu0
      %v2503 = vadd.f32 0.0, %v2502
      %v2504 = vpop.f32.mrf.mxu0
      %v2505 = vadd.f32 0.0, %v2504
      %2506 = vmatmul.bf16.gmra.mxu0 %v1686
      %v2507 = vpop.f32.mrf.mxu0
      %v2508 = vadd.f32 0.0, %v2507
      %v2509 = vpop.f32.mrf.mxu0
      %v2510 = vadd.f32 0.0, %v2509
      %2511 = vdwg.mxu0
      %v2512 = vadd.f32 %v519, %v1873
      %v2513 = vadd.f32 %v520, %v1875
      %v2514 = vadd.f32 %v521, %v1878
      %v2515 = vadd.f32 %v522, %v1880
      %v2516 = vadd.f32 %v523, %v1883
      %v2517 = vadd.f32 %v524, %v1885
      %v2518 = vadd.f32 %v525, %v1888
      %v2519 = vadd.f32 %v526, %v1890
      %v2520 = vadd.f32 %v527, %v1893
      %v2521 = vadd.f32 %v528, %v1895
      %v2522 = vadd.f32 %v529, %v1898
      %v2523 = vadd.f32 %v530, %v1900
      %v2524 = vadd.f32 %v531, %v1903
      %v2525 = vadd.f32 %v532, %v1905
      %v2526 = vadd.f32 %v533, %v1908
      %v2527 = vadd.f32 %v534, %v1910
      %v2528 = vadd.f32 %v535, %v1913
      %v2529 = vadd.f32 %v536, %v1915
      %v2530 = vadd.f32 %v537, %v1918
      %v2531 = vadd.f32 %v538, %v1920
      %v2532 = vadd.f32 %v539, %v1923
      %v2533 = vadd.f32 %v540, %v1925
      %v2534 = vadd.f32 %v541, %v1928
      %v2535 = vadd.f32 %v542, %v1930
      %v2536 = vadd.f32 %v543, %v1933
      %v2537 = vadd.f32 %v544, %v1935
      %v2538 = vadd.f32 %v545, %v1938
      %v2539 = vadd.f32 %v546, %v1940
      %v2540 = vadd.f32 %v547, %v1943
      %v2541 = vadd.f32 %v548, %v1945
      %v2542 = vadd.f32 %v549, %v1948
      %v2543 = vadd.f32 %v550, %v1950
      %v2544 = vadd.f32 %v551, %v1953
      %v2545 = vadd.f32 %v552, %v1955
      %v2546 = vadd.f32 %v553, %v1958
      %v2547 = vadd.f32 %v554, %v1960
      %v2548 = vadd.f32 %v555, %v1963
      %v2549 = vadd.f32 %v556, %v1965
      %v2550 = vadd.f32 %v557, %v1968
      %v2551 = vadd.f32 %v558, %v1970
      %v2552 = vadd.f32 %v559, %v1973
      %v2553 = vadd.f32 %v560, %v1975
      %v2554 = vadd.f32 %v561, %v1978
      %v2555 = vadd.f32 %v562, %v1980
      %v2556 = vadd.f32 %v563, %v1983
      %v2557 = vadd.f32 %v564, %v1985
      %v2558 = vadd.f32 %v565, %v1988
      %v2559 = vadd.f32 %v566, %v1990
      %v2560 = vadd.f32 %v567, %v1993
      %v2561 = vadd.f32 %v568, %v1995
      %v2562 = vadd.f32 %v569, %v1998
      %v2563 = vadd.f32 %v570, %v2000
      %v2564 = vadd.f32 %v571, %v2003
      %v2565 = vadd.f32 %v572, %v2005
      %v2566 = vadd.f32 %v573, %v2008
      %v2567 = vadd.f32 %v574, %v2010
      %v2568 = vadd.f32 %v575, %v2013
      %v2569 = vadd.f32 %v576, %v2015
      %v2570 = vadd.f32 %v577, %v2018
      %v2571 = vadd.f32 %v578, %v2020
      %v2572 = vadd.f32 %v579, %v2023
      %v2573 = vadd.f32 %v580, %v2025
      %v2574 = vadd.f32 %v581, %v2028
      %v2575 = vadd.f32 %v582, %v2030
      %v2576 = vadd.f32 %v583, %v2033
      %v2577 = vadd.f32 %v584, %v2035
      %v2578 = vadd.f32 %v585, %v2038
      %v2579 = vadd.f32 %v586, %v2040
      %v2580 = vadd.f32 %v587, %v2043
      %v2581 = vadd.f32 %v588, %v2045
      %v2582 = vadd.f32 %v589, %v2048
      %v2583 = vadd.f32 %v590, %v2050
      %v2584 = vadd.f32 %v591, %v2053
      %v2585 = vadd.f32 %v592, %v2055
      %v2586 = vadd.f32 %v593, %v2058
      %v2587 = vadd.f32 %v594, %v2060
      %v2588 = vadd.f32 %v595, %v2063
      %v2589 = vadd.f32 %v596, %v2065
      %v2590 = vadd.f32 %v597, %v2068
      %v2591 = vadd.f32 %v598, %v2070
      %v2592 = vadd.f32 %v599, %v2073
      %v2593 = vadd.f32 %v600, %v2075
      %v2594 = vadd.f32 %v601, %v2078
      %v2595 = vadd.f32 %v602, %v2080
      %v2596 = vadd.f32 %v603, %v2083
      %v2597 = vadd.f32 %v604, %v2085
      %v2598 = vadd.f32 %v605, %v2088
      %v2599 = vadd.f32 %v606, %v2090
      %v2600 = vadd.f32 %v607, %v2093
      %v2601 = vadd.f32 %v608, %v2095
      %v2602 = vadd.f32 %v609, %v2098
      %v2603 = vadd.f32 %v610, %v2100
      %v2604 = vadd.f32 %v611, %v2103
      %v2605 = vadd.f32 %v612, %v2105
      %v2606 = vadd.f32 %v613, %v2108
      %v2607 = vadd.f32 %v614, %v2110
      %v2608 = vadd.f32 %v615, %v2113
      %v2609 = vadd.f32 %v616, %v2115
      %v2610 = vadd.f32 %v617, %v2118
      %v2611 = vadd.f32 %v618, %v2120
      %v2612 = vadd.f32 %v619, %v2123
      %v2613 = vadd.f32 %v620, %v2125
      %v2614 = vadd.f32 %v621, %v2128
      %v2615 = vadd.f32 %v622, %v2130
      %v2616 = vadd.f32 %v623, %v2133
      %v2617 = vadd.f32 %v624, %v2135
      %v2618 = vadd.f32 %v625, %v2138
      %v2619 = vadd.f32 %v626, %v2140
      %v2620 = vadd.f32 %v627, %v2143
      %v2621 = vadd.f32 %v628, %v2145
      %v2622 = vadd.f32 %v629, %v2148
      %v2623 = vadd.f32 %v630, %v2150
      %v2624 = vadd.f32 %v631, %v2153
      %v2625 = vadd.f32 %v632, %v2155
      %v2626 = vadd.f32 %v633, %v2158
      %v2627 = vadd.f32 %v634, %v2160
      %v2628 = vadd.f32 %v635, %v2163
      %v2629 = vadd.f32 %v636, %v2165
      %v2630 = vadd.f32 %v637, %v2168
      %v2631 = vadd.f32 %v638, %v2170
      %v2632 = vadd.f32 %v639, %v2173
      %v2633 = vadd.f32 %v640, %v2175
      %v2634 = vadd.f32 %v641, %v2178
      %v2635 = vadd.f32 %v642, %v2180
      %v2636 = vadd.f32 %v643, %v2183
      %v2637 = vadd.f32 %v644, %v2185
      %v2638 = vadd.f32 %v645, %v2188
      %v2639 = vadd.f32 %v646, %v2190
      %v2640 = vadd.f32 %v647, %v2193
      %v2641 = vadd.f32 %v648, %v2195
      %v2642 = vadd.f32 %v649, %v2198
      %v2643 = vadd.f32 %v650, %v2200
      %v2644 = vadd.f32 %v651, %v2203
      %v2645 = vadd.f32 %v652, %v2205
      %v2646 = vadd.f32 %v653, %v2208
      %v2647 = vadd.f32 %v654, %v2210
      %v2648 = vadd.f32 %v655, %v2213
      %v2649 = vadd.f32 %v656, %v2215
      %v2650 = vadd.f32 %v657, %v2218
      %v2651 = vadd.f32 %v658, %v2220
      %v2652 = vadd.f32 %v659, %v2223
      %v2653 = vadd.f32 %v660, %v2225
      %v2654 = vadd.f32 %v661, %v2228
      %v2655 = vadd.f32 %v662, %v2230
      %v2656 = vadd.f32 %v663, %v2233
      %v2657 = vadd.f32 %v664, %v2235
      %v2658 = vadd.f32 %v665, %v2238
      %v2659 = vadd.f32 %v666, %v2240
      %v2660 = vadd.f32 %v667, %v2243
      %v2661 = vadd.f32 %v668, %v2245
      %v2662 = vadd.f32 %v669, %v2248
      %v2663 = vadd.f32 %v670, %v2250
      %v2664 = vadd.f32 %v671, %v2253
      %v2665 = vadd.f32 %v672, %v2255
      %v2666 = vadd.f32 %v673, %v2258
      %v2667 = vadd.f32 %v674, %v2260
      %v2668 = vadd.f32 %v675, %v2263
      %v2669 = vadd.f32 %v676, %v2265
      %v2670 = vadd.f32 %v677, %v2268
      %v2671 = vadd.f32 %v678, %v2270
      %v2672 = vadd.f32 %v679, %v2273
      %v2673 = vadd.f32 %v680, %v2275
      %v2674 = vadd.f32 %v681, %v2278
      %v2675 = vadd.f32 %v682, %v2280
      %v2676 = vadd.f32 %v683, %v2283
      %v2677 = vadd.f32 %v684, %v2285
      %v2678 = vadd.f32 %v685, %v2288
      %v2679 = vadd.f32 %v686, %v2290
      %v2680 = vadd.f32 %v687, %v2293
      %v2681 = vadd.f32 %v688, %v2295
      %v2682 = vadd.f32 %v689, %v2298
      %v2683 = vadd.f32 %v690, %v2300
      %v2684 = vadd.f32 %v691, %v2303
      %v2685 = vadd.f32 %v692, %v2305
      %v2686 = vadd.f32 %v693, %v2308
      %v2687 = vadd.f32 %v694, %v2310
      %v2688 = vadd.f32 %v695, %v2313
      %v2689 = vadd.f32 %v696, %v2315
      %v2690 = vadd.f32 %v697, %v2318
      %v2691 = vadd.f32 %v698, %v2320
      %v2692 = vadd.f32 %v699, %v2323
      %v2693 = vadd.f32 %v700, %v2325
      %v2694 = vadd.f32 %v701, %v2328
      %v2695 = vadd.f32 %v702, %v2330
      %v2696 = vadd.f32 %v703, %v2333
      %v2697 = vadd.f32 %v704, %v2335
      %v2698 = vadd.f32 %v705, %v2338
      %v2699 = vadd.f32 %v706, %v2340
      %v2700 = vadd.f32 %v707, %v2343
      %v2701 = vadd.f32 %v708, %v2345
      %v2702 = vadd.f32 %v709, %v2348
      %v2703 = vadd.f32 %v710, %v2350
      %v2704 = vadd.f32 %v711, %v2353
      %v2705 = vadd.f32 %v712, %v2355
      %v2706 = vadd.f32 %v713, %v2358
      %v2707 = vadd.f32 %v714, %v2360
      %v2708 = vadd.f32 %v715, %v2363
      %v2709 = vadd.f32 %v716, %v2365
      %v2710 = vadd.f32 %v717, %v2368
      %v2711 = vadd.f32 %v718, %v2370
      %v2712 = vadd.f32 %v719, %v2373
      %v2713 = vadd.f32 %v720, %v2375
      %v2714 = vadd.f32 %v721, %v2378
      %v2715 = vadd.f32 %v722, %v2380
      %v2716 = vadd.f32 %v723, %v2383
      %v2717 = vadd.f32 %v724, %v2385
      %v2718 = vadd.f32 %v725, %v2388
      %v2719 = vadd.f32 %v726, %v2390
      %v2720 = vadd.f32 %v727, %v2393
      %v2721 = vadd.f32 %v728, %v2395
      %v2722 = vadd.f32 %v729, %v2398
      %v2723 = vadd.f32 %v730, %v2400
      %v2724 = vadd.f32 %v731, %v2403
      %v2725 = vadd.f32 %v732, %v2405
      %v2726 = vadd.f32 %v733, %v2408
      %v2727 = vadd.f32 %v734, %v2410
      %v2728 = vadd.f32 %v735, %v2413
      %v2729 = vadd.f32 %v736, %v2415
      %v2730 = vadd.f32 %v737, %v2418
      %v2731 = vadd.f32 %v738, %v2420
      %v2732 = vadd.f32 %v739, %v2423
      %v2733 = vadd.f32 %v740, %v2425
      %v2734 = vadd.f32 %v741, %v2428
      %v2735 = vadd.f32 %v742, %v2430
      %v2736 = vadd.f32 %v743, %v2433
      %v2737 = vadd.f32 %v744, %v2435
      %v2738 = vadd.f32 %v745, %v2438
      %v2739 = vadd.f32 %v746, %v2440
      %v2740 = vadd.f32 %v747, %v2443
      %v2741 = vadd.f32 %v748, %v2445
      %v2742 = vadd.f32 %v749, %v2448
      %v2743 = vadd.f32 %v750, %v2450
      %v2744 = vadd.f32 %v751, %v2453
      %v2745 = vadd.f32 %v752, %v2455
      %v2746 = vadd.f32 %v753, %v2458
      %v2747 = vadd.f32 %v754, %v2460
      %v2748 = vadd.f32 %v755, %v2463
      %v2749 = vadd.f32 %v756, %v2465
      %v2750 = vadd.f32 %v757, %v2468
      %v2751 = vadd.f32 %v758, %v2470
      %v2752 = vadd.f32 %v759, %v2473
      %v2753 = vadd.f32 %v760, %v2475
      %v2754 = vadd.f32 %v761, %v2478
      %v2755 = vadd.f32 %v762, %v2480
      %v2756 = vadd.f32 %v763, %v2483
      %v2757 = vadd.f32 %v764, %v2485
      %v2758 = vadd.f32 %v765, %v2488
      %v2759 = vadd.f32 %v766, %v2490
      %v2760 = vadd.f32 %v767, %v2493
      %v2761 = vadd.f32 %v768, %v2495
      %v2762 = vadd.f32 %v769, %v2498
      %v2763 = vadd.f32 %v770, %v2500
      %v2764 = vadd.f32 %v771, %v2503
      %v2765 = vadd.f32 %v772, %v2505
      %v2766 = vadd.f32 %v773, %v2508
      %v2767 = vadd.f32 %v774, %v2510
      %2768 = vst [vmem:[#allocation2] sm:$0xff] %v2512
      %2769 = vst [vmem:[#allocation2 + $0x8] sm:$0xff] %v2513
      %2770 = vst [vmem:[#allocation2 + $0x10] sm:$0xff] %v2514
      %2771 = vst [vmem:[#allocation2 + $0x18] sm:$0xff] %v2515
      %2772 = vst [vmem:[#allocation2 + $0x20] sm:$0xff] %v2516
      %2773 = vst [vmem:[#allocation2 + $0x28] sm:$0xff] %v2517
      %2774 = vst [vmem:[#allocation2 + $0x30] sm:$0xff] %v2518
      %2775 = vst [vmem:[#allocation2 + $0x38] sm:$0xff] %v2519
      %2776 = vst [vmem:[#allocation2 + $0x40] sm:$0xff] %v2520
      %2777 = vst [vmem:[#allocation2 + $0x48] sm:$0xff] %v2521
      %2778 = vst [vmem:[#allocation2 + $0x50] sm:$0xff] %v2522
      %2779 = vst [vmem:[#allocation2 + $0x58] sm:$0xff] %v2523
      %2780 = vst [vmem:[#allocation2 + $0x60] sm:$0xff] %v2524
      %2781 = vst [vmem:[#allocation2 + $0x68] sm:$0xff] %v2525
      %2782 = vst [vmem:[#allocation2 + $0x70] sm:$0xff] %v2526
      %2783 = vst [vmem:[#allocation2 + $0x78] sm:$0xff] %v2527
      %2784 = vst [vmem:[#allocation2 + $0x80] sm:$0xff] %v2528
      %2785 = vst [vmem:[#allocation2 + $0x88] sm:$0xff] %v2529
      %2786 = vst [vmem:[#allocation2 + $0x90] sm:$0xff] %v2530
      %2787 = vst [vmem:[#allocation2 + $0x98] sm:$0xff] %v2531
      %2788 = vst [vmem:[#allocation2 + $0xa0] sm:$0xff] %v2532
      %2789 = vst [vmem:[#allocation2 + $0xa8] sm:$0xff] %v2533
      %2790 = vst [vmem:[#allocation2 + $0xb0] sm:$0xff] %v2534
      %2791 = vst [vmem:[#allocation2 + $0xb8] sm:$0xff] %v2535
      %2792 = vst [vmem:[#allocation2 + $0xc0] sm:$0xff] %v2536
      %2793 = vst [vmem:[#allocation2 + $0xc8] sm:$0xff] %v2537
      %2794 = vst [vmem:[#allocation2 + $0xd0] sm:$0xff] %v2538
      %2795 = vst [vmem:[#allocation2 + $0xd8] sm:$0xff] %v2539
      %2796 = vst [vmem:[#allocation2 + $0xe0] sm:$0xff] %v2540
      %2797 = vst [vmem:[#allocation2 + $0xe8] sm:$0xff] %v2541
      %2798 = vst [vmem:[#allocation2 + $0xf0] sm:$0xff] %v2542
      %2799 = vst [vmem:[#allocation2 + $0xf8] sm:$0xff] %v2543
      %2800 = vst [vmem:[#allocation2 + $0x100] sm:$0xff] %v2544
      %2801 = vst [vmem:[#allocation2 + $0x108] sm:$0xff] %v2545
      %2802 = vst [vmem:[#allocation2 + $0x110] sm:$0xff] %v2546
      %2803 = vst [vmem:[#allocation2 + $0x118] sm:$0xff] %v2547
      %2804 = vst [vmem:[#allocation2 + $0x120] sm:$0xff] %v2548
      %2805 = vst [vmem:[#allocation2 + $0x128] sm:$0xff] %v2549
      %2806 = vst [vmem:[#allocation2 + $0x130] sm:$0xff] %v2550
      %2807 = vst [vmem:[#allocation2 + $0x138] sm:$0xff] %v2551
      %2808 = vst [vmem:[#allocation2 + $0x140] sm:$0xff] %v2552
      %2809 = vst [vmem:[#allocation2 + $0x148] sm:$0xff] %v2553
      %2810 = vst [vmem:[#allocation2 + $0x150] sm:$0xff] %v2554
      %2811 = vst [vmem:[#allocation2 + $0x158] sm:$0xff] %v2555
      %2812 = vst [vmem:[#allocation2 + $0x160] sm:$0xff] %v2556
      %2813 = vst [vmem:[#allocation2 + $0x168] sm:$0xff] %v2557
      %2814 = vst [vmem:[#allocation2 + $0x170] sm:$0xff] %v2558
      %2815 = vst [vmem:[#allocation2 + $0x178] sm:$0xff] %v2559
      %2816 = vst [vmem:[#allocation2 + $0x180] sm:$0xff] %v2560
      %2817 = vst [vmem:[#allocation2 + $0x188] sm:$0xff] %v2561
      %2818 = vst [vmem:[#allocation2 + $0x190] sm:$0xff] %v2562
      %2819 = vst [vmem:[#allocation2 + $0x198] sm:$0xff] %v2563
      %2820 = vst [vmem:[#allocation2 + $0x1a0] sm:$0xff] %v2564
      %2821 = vst [vmem:[#allocation2 + $0x1a8] sm:$0xff] %v2565
      %2822 = vst [vmem:[#allocation2 + $0x1b0] sm:$0xff] %v2566
      %2823 = vst [vmem:[#allocation2 + $0x1b8] sm:$0xff] %v2567
      %2824 = vst [vmem:[#allocation2 + $0x1c0] sm:$0xff] %v2568
      %2825 = vst [vmem:[#allocation2 + $0x1c8] sm:$0xff] %v2569
      %2826 = vst [vmem:[#allocation2 + $0x1d0] sm:$0xff] %v2570
      %2827 = vst [vmem:[#allocation2 + $0x1d8] sm:$0xff] %v2571
      %2828 = vst [vmem:[#allocation2 + $0x1e0] sm:$0xff] %v2572
      %2829 = vst [vmem:[#allocation2 + $0x1e8] sm:$0xff] %v2573
      %2830 = vst [vmem:[#allocation2 + $0x1f0] sm:$0xff] %v2574
      %2831 = vst [vmem:[#allocation2 + $0x1f8] sm:$0xff] %v2575
      %2832 = vst [vmem:[#allocation2 + $0x200] sm:$0xff] %v2576
      %2833 = vst [vmem:[#allocation2 + $0x208] sm:$0xff] %v2577
      %2834 = vst [vmem:[#allocation2 + $0x210] sm:$0xff] %v2578
      %2835 = vst [vmem:[#allocation2 + $0x218] sm:$0xff] %v2579
      %2836 = vst [vmem:[#allocation2 + $0x220] sm:$0xff] %v2580
      %2837 = vst [vmem:[#allocation2 + $0x228] sm:$0xff] %v2581
      %2838 = vst [vmem:[#allocation2 + $0x230] sm:$0xff] %v2582
      %2839 = vst [vmem:[#allocation2 + $0x238] sm:$0xff] %v2583
      %2840 = vst [vmem:[#allocation2 + $0x240] sm:$0xff] %v2584
      %2841 = vst [vmem:[#allocation2 + $0x248] sm:$0xff] %v2585
      %2842 = vst [vmem:[#allocation2 + $0x250] sm:$0xff] %v2586
      %2843 = vst [vmem:[#allocation2 + $0x258] sm:$0xff] %v2587
      %2844 = vst [vmem:[#allocation2 + $0x260] sm:$0xff] %v2588
      %2845 = vst [vmem:[#allocation2 + $0x268] sm:$0xff] %v2589
      %2846 = vst [vmem:[#allocation2 + $0x270] sm:$0xff] %v2590
      %2847 = vst [vmem:[#allocation2 + $0x278] sm:$0xff] %v2591
      %2848 = vst [vmem:[#allocation2 + $0x280] sm:$0xff] %v2592
      %2849 = vst [vmem:[#allocation2 + $0x288] sm:$0xff] %v2593
      %2850 = vst [vmem:[#allocation2 + $0x290] sm:$0xff] %v2594
      %2851 = vst [vmem:[#allocation2 + $0x298] sm:$0xff] %v2595
      %2852 = vst [vmem:[#allocation2 + $0x2a0] sm:$0xff] %v2596
      %2853 = vst [vmem:[#allocation2 + $0x2a8] sm:$0xff] %v2597
      %2854 = vst [vmem:[#allocation2 + $0x2b0] sm:$0xff] %v2598
      %2855 = vst [vmem:[#allocation2 + $0x2b8] sm:$0xff] %v2599
      %2856 = vst [vmem:[#allocation2 + $0x2c0] sm:$0xff] %v2600
      %2857 = vst [vmem:[#allocation2 + $0x2c8] sm:$0xff] %v2601
      %2858 = vst [vmem:[#allocation2 + $0x2d0] sm:$0xff] %v2602
      %2859 = vst [vmem:[#allocation2 + $0x2d8] sm:$0xff] %v2603
      %2860 = vst [vmem:[#allocation2 + $0x2e0] sm:$0xff] %v2604
      %2861 = vst [vmem:[#allocation2 + $0x2e8] sm:$0xff] %v2605
      %2862 = vst [vmem:[#allocation2 + $0x2f0] sm:$0xff] %v2606
      %2863 = vst [vmem:[#allocation2 + $0x2f8] sm:$0xff] %v2607
      %2864 = vst [vmem:[#allocation2 + $0x300] sm:$0xff] %v2608
      %2865 = vst [vmem:[#allocation2 + $0x308] sm:$0xff] %v2609
      %2866 = vst [vmem:[#allocation2 + $0x310] sm:$0xff] %v2610
      %2867 = vst [vmem:[#allocation2 + $0x318] sm:$0xff] %v2611
      %2868 = vst [vmem:[#allocation2 + $0x320] sm:$0xff] %v2612
      %2869 = vst [vmem:[#allocation2 + $0x328] sm:$0xff] %v2613
      %2870 = vst [vmem:[#allocation2 + $0x330] sm:$0xff] %v2614
      %2871 = vst [vmem:[#allocation2 + $0x338] sm:$0xff] %v2615
      %2872 = vst [vmem:[#allocation2 + $0x340] sm:$0xff] %v2616
      %2873 = vst [vmem:[#allocation2 + $0x348] sm:$0xff] %v2617
      %2874 = vst [vmem:[#allocation2 + $0x350] sm:$0xff] %v2618
      %2875 = vst [vmem:[#allocation2 + $0x358] sm:$0xff] %v2619
      %2876 = vst [vmem:[#allocation2 + $0x360] sm:$0xff] %v2620
      %2877 = vst [vmem:[#allocation2 + $0x368] sm:$0xff] %v2621
      %2878 = vst [vmem:[#allocation2 + $0x370] sm:$0xff] %v2622
      %2879 = vst [vmem:[#allocation2 + $0x378] sm:$0xff] %v2623
      %2880 = vst [vmem:[#allocation2 + $0x380] sm:$0xff] %v2624
      %2881 = vst [vmem:[#allocation2 + $0x388] sm:$0xff] %v2625
      %2882 = vst [vmem:[#allocation2 + $0x390] sm:$0xff] %v2626
      %2883 = vst [vmem:[#allocation2 + $0x398] sm:$0xff] %v2627
      %2884 = vst [vmem:[#allocation2 + $0x3a0] sm:$0xff] %v2628
      %2885 = vst [vmem:[#allocation2 + $0x3a8] sm:$0xff] %v2629
      %2886 = vst [vmem:[#allocation2 + $0x3b0] sm:$0xff] %v2630
      %2887 = vst [vmem:[#allocation2 + $0x3b8] sm:$0xff] %v2631
      %2888 = vst [vmem:[#allocation2 + $0x3c0] sm:$0xff] %v2632
      %2889 = vst [vmem:[#allocation2 + $0x3c8] sm:$0xff] %v2633
      %2890 = vst [vmem:[#allocation2 + $0x3d0] sm:$0xff] %v2634
      %2891 = vst [vmem:[#allocation2 + $0x3d8] sm:$0xff] %v2635
      %2892 = vst [vmem:[#allocation2 + $0x3e0] sm:$0xff] %v2636
      %2893 = vst [vmem:[#allocation2 + $0x3e8] sm:$0xff] %v2637
      %2894 = vst [vmem:[#allocation2 + $0x3f0] sm:$0xff] %v2638
      %2895 = vst [vmem:[#allocation2 + $0x3f8] sm:$0xff] %v2639
      %2896 = vst [vmem:[#allocation2 + $0x400] sm:$0xff] %v2640
      %2897 = vst [vmem:[#allocation2 + $0x408] sm:$0xff] %v2641
      %2898 = vst [vmem:[#allocation2 + $0x410] sm:$0xff] %v2642
      %2899 = vst [vmem:[#allocation2 + $0x418] sm:$0xff] %v2643
      %2900 = vst [vmem:[#allocation2 + $0x420] sm:$0xff] %v2644
      %2901 = vst [vmem:[#allocation2 + $0x428] sm:$0xff] %v2645
      %2902 = vst [vmem:[#allocation2 + $0x430] sm:$0xff] %v2646
      %2903 = vst [vmem:[#allocation2 + $0x438] sm:$0xff] %v2647
      %2904 = vst [vmem:[#allocation2 + $0x440] sm:$0xff] %v2648
      %2905 = vst [vmem:[#allocation2 + $0x448] sm:$0xff] %v2649
      %2906 = vst [vmem:[#allocation2 + $0x450] sm:$0xff] %v2650
      %2907 = vst [vmem:[#allocation2 + $0x458] sm:$0xff] %v2651
      %2908 = vst [vmem:[#allocation2 + $0x460] sm:$0xff] %v2652
      %2909 = vst [vmem:[#allocation2 + $0x468] sm:$0xff] %v2653
      %2910 = vst [vmem:[#allocation2 + $0x470] sm:$0xff] %v2654
      %2911 = vst [vmem:[#allocation2 + $0x478] sm:$0xff] %v2655
      %2912 = vst [vmem:[#allocation2 + $0x480] sm:$0xff] %v2656
      %2913 = vst [vmem:[#allocation2 + $0x488] sm:$0xff] %v2657
      %2914 = vst [vmem:[#allocation2 + $0x490] sm:$0xff] %v2658
      %2915 = vst [vmem:[#allocation2 + $0x498] sm:$0xff] %v2659
      %2916 = vst [vmem:[#allocation2 + $0x4a0] sm:$0xff] %v2660
      %2917 = vst [vmem:[#allocation2 + $0x4a8] sm:$0xff] %v2661
      %2918 = vst [vmem:[#allocation2 + $0x4b0] sm:$0xff] %v2662
      %2919 = vst [vmem:[#allocation2 + $0x4b8] sm:$0xff] %v2663
      %2920 = vst [vmem:[#allocation2 + $0x4c0] sm:$0xff] %v2664
      %2921 = vst [vmem:[#allocation2 + $0x4c8] sm:$0xff] %v2665
      %2922 = vst [vmem:[#allocation2 + $0x4d0] sm:$0xff] %v2666
      %2923 = vst [vmem:[#allocation2 + $0x4d8] sm:$0xff] %v2667
      %2924 = vst [vmem:[#allocation2 + $0x4e0] sm:$0xff] %v2668
      %2925 = vst [vmem:[#allocation2 + $0x4e8] sm:$0xff] %v2669
      %2926 = vst [vmem:[#allocation2 + $0x4f0] sm:$0xff] %v2670
      %2927 = vst [vmem:[#allocation2 + $0x4f8] sm:$0xff] %v2671
      %2928 = vst [vmem:[#allocation2 + $0x500] sm:$0xff] %v2672
      %2929 = vst [vmem:[#allocation2 + $0x508] sm:$0xff] %v2673
      %2930 = vst [vmem:[#allocation2 + $0x510] sm:$0xff] %v2674
      %2931 = vst [vmem:[#allocation2 + $0x518] sm:$0xff] %v2675
      %2932 = vst [vmem:[#allocation2 + $0x520] sm:$0xff] %v2676
      %2933 = vst [vmem:[#allocation2 + $0x528] sm:$0xff] %v2677
      %2934 = vst [vmem:[#allocation2 + $0x530] sm:$0xff] %v2678
      %2935 = vst [vmem:[#allocation2 + $0x538] sm:$0xff] %v2679
      %2936 = vst [vmem:[#allocation2 + $0x540] sm:$0xff] %v2680
      %2937 = vst [vmem:[#allocation2 + $0x548] sm:$0xff] %v2681
      %2938 = vst [vmem:[#allocation2 + $0x550] sm:$0xff] %v2682
      %2939 = vst [vmem:[#allocation2 + $0x558] sm:$0xff] %v2683
      %2940 = vst [vmem:[#allocation2 + $0x560] sm:$0xff] %v2684
      %2941 = vst [vmem:[#allocation2 + $0x568] sm:$0xff] %v2685
      %2942 = vst [vmem:[#allocation2 + $0x570] sm:$0xff] %v2686
      %2943 = vst [vmem:[#allocation2 + $0x578] sm:$0xff] %v2687
      %2944 = vst [vmem:[#allocation2 + $0x580] sm:$0xff] %v2688
      %2945 = vst [vmem:[#allocation2 + $0x588] sm:$0xff] %v2689
      %2946 = vst [vmem:[#allocation2 + $0x590] sm:$0xff] %v2690
      %2947 = vst [vmem:[#allocation2 + $0x598] sm:$0xff] %v2691
      %2948 = vst [vmem:[#allocation2 + $0x5a0] sm:$0xff] %v2692
      %2949 = vst [vmem:[#allocation2 + $0x5a8] sm:$0xff] %v2693
      %2950 = vst [vmem:[#allocation2 + $0x5b0] sm:$0xff] %v2694
      %2951 = vst [vmem:[#allocation2 + $0x5b8] sm:$0xff] %v2695
      %2952 = vst [vmem:[#allocation2 + $0x5c0] sm:$0xff] %v2696
      %2953 = vst [vmem:[#allocation2 + $0x5c8] sm:$0xff] %v2697
      %2954 = vst [vmem:[#allocation2 + $0x5d0] sm:$0xff] %v2698
      %2955 = vst [vmem:[#allocation2 + $0x5d8] sm:$0xff] %v2699
      %2956 = vst [vmem:[#allocation2 + $0x5e0] sm:$0xff] %v2700
      %2957 = vst [vmem:[#allocation2 + $0x5e8] sm:$0xff] %v2701
      %2958 = vst [vmem:[#allocation2 + $0x5f0] sm:$0xff] %v2702
      %2959 = vst [vmem:[#allocation2 + $0x5f8] sm:$0xff] %v2703
      %2960 = vst [vmem:[#allocation2 + $0x600] sm:$0xff] %v2704
      %2961 = vst [vmem:[#allocation2 + $0x608] sm:$0xff] %v2705
      %2962 = vst [vmem:[#allocation2 + $0x610] sm:$0xff] %v2706
      %2963 = vst [vmem:[#allocation2 + $0x618] sm:$0xff] %v2707
      %2964 = vst [vmem:[#allocation2 + $0x620] sm:$0xff] %v2708
      %2965 = vst [vmem:[#allocation2 + $0x628] sm:$0xff] %v2709
      %2966 = vst [vmem:[#allocation2 + $0x630] sm:$0xff] %v2710
      %2967 = vst [vmem:[#allocation2 + $0x638] sm:$0xff] %v2711
      %2968 = vst [vmem:[#allocation2 + $0x640] sm:$0xff] %v2712
      %2969 = vst [vmem:[#allocation2 + $0x648] sm:$0xff] %v2713
      %2970 = vst [vmem:[#allocation2 + $0x650] sm:$0xff] %v2714
      %2971 = vst [vmem:[#allocation2 + $0x658] sm:$0xff] %v2715
      %2972 = vst [vmem:[#allocation2 + $0x660] sm:$0xff] %v2716
      %2973 = vst [vmem:[#allocation2 + $0x668] sm:$0xff] %v2717
      %2974 = vst [vmem:[#allocation2 + $0x670] sm:$0xff] %v2718
      %2975 = vst [vmem:[#allocation2 + $0x678] sm:$0xff] %v2719
      %2976 = vst [vmem:[#allocation2 + $0x680] sm:$0xff] %v2720
      %2977 = vst [vmem:[#allocation2 + $0x688] sm:$0xff] %v2721
      %2978 = vst [vmem:[#allocation2 + $0x690] sm:$0xff] %v2722
      %2979 = vst [vmem:[#allocation2 + $0x698] sm:$0xff] %v2723
      %2980 = vst [vmem:[#allocation2 + $0x6a0] sm:$0xff] %v2724
      %2981 = vst [vmem:[#allocation2 + $0x6a8] sm:$0xff] %v2725
      %2982 = vst [vmem:[#allocation2 + $0x6b0] sm:$0xff] %v2726
      %2983 = vst [vmem:[#allocation2 + $0x6b8] sm:$0xff] %v2727
      %2984 = vst [vmem:[#allocation2 + $0x6c0] sm:$0xff] %v2728
      %2985 = vst [vmem:[#allocation2 + $0x6c8] sm:$0xff] %v2729
      %2986 = vst [vmem:[#allocation2 + $0x6d0] sm:$0xff] %v2730
      %2987 = vst [vmem:[#allocation2 + $0x6d8] sm:$0xff] %v2731
      %2988 = vst [vmem:[#allocation2 + $0x6e0] sm:$0xff] %v2732
      %2989 = vst [vmem:[#allocation2 + $0x6e8] sm:$0xff] %v2733
      %2990 = vst [vmem:[#allocation2 + $0x6f0] sm:$0xff] %v2734
      %2991 = vst [vmem:[#allocation2 + $0x6f8] sm:$0xff] %v2735
      %2992 = vst [vmem:[#allocation2 + $0x700] sm:$0xff] %v2736
      %2993 = vst [vmem:[#allocation2 + $0x708] sm:$0xff] %v2737
      %2994 = vst [vmem:[#allocation2 + $0x710] sm:$0xff] %v2738
      %2995 = vst [vmem:[#allocation2 + $0x718] sm:$0xff] %v2739
      %2996 = vst [vmem:[#allocation2 + $0x720] sm:$0xff] %v2740
      %2997 = vst [vmem:[#allocation2 + $0x728] sm:$0xff] %v2741
      %2998 = vst [vmem:[#allocation2 + $0x730] sm:$0xff] %v2742
      %2999 = vst [vmem:[#allocation2 + $0x738] sm:$0xff] %v2743
      %3000 = vst [vmem:[#allocation2 + $0x740] sm:$0xff] %v2744
      %3001 = vst [vmem:[#allocation2 + $0x748] sm:$0xff] %v2745
      %3002 = vst [vmem:[#allocation2 + $0x750] sm:$0xff] %v2746
      %3003 = vst [vmem:[#allocation2 + $0x758] sm:$0xff] %v2747
      %3004 = vst [vmem:[#allocation2 + $0x760] sm:$0xff] %v2748
      %3005 = vst [vmem:[#allocation2 + $0x768] sm:$0xff] %v2749
      %3006 = vst [vmem:[#allocation2 + $0x770] sm:$0xff] %v2750
      %3007 = vst [vmem:[#allocation2 + $0x778] sm:$0xff] %v2751
      %3008 = vst [vmem:[#allocation2 + $0x780] sm:$0xff] %v2752
      %3009 = vst [vmem:[#allocation2 + $0x788] sm:$0xff] %v2753
      %3010 = vst [vmem:[#allocation2 + $0x790] sm:$0xff] %v2754
      %3011 = vst [vmem:[#allocation2 + $0x798] sm:$0xff] %v2755
      %3012 = vst [vmem:[#allocation2 + $0x7a0] sm:$0xff] %v2756
      %3013 = vst [vmem:[#allocation2 + $0x7a8] sm:$0xff] %v2757
      %3014 = vst [vmem:[#allocation2 + $0x7b0] sm:$0xff] %v2758
      %3015 = vst [vmem:[#allocation2 + $0x7b8] sm:$0xff] %v2759
      %3016 = vst [vmem:[#allocation2 + $0x7c0] sm:$0xff] %v2760
      %3017 = vst [vmem:[#allocation2 + $0x7c8] sm:$0xff] %v2761
      %3018 = vst [vmem:[#allocation2 + $0x7d0] sm:$0xff] %v2762
      %3019 = vst [vmem:[#allocation2 + $0x7d8] sm:$0xff] %v2763
      %3020 = vst [vmem:[#allocation2 + $0x7e0] sm:$0xff] %v2764
      %3021 = vst [vmem:[#allocation2 + $0x7e8] sm:$0xff] %v2765
      %3022 = vst [vmem:[#allocation2 + $0x7f0] sm:$0xff] %v2766
      %3023 = vst [vmem:[#allocation2 + $0x7f8] sm:$0xff] %v2767
      // Predicated region
      $region37: #{conv_bn_lrelu.2} parent=31 // pred_check
        %p3024 = pneg %p259
      $region38: #{conv_bn_lrelu.2} parent=31 // pred_check_branch
        %3026 = sbr.rel (%p3024) target = $region40
      $region39: #{conv_bn_lrelu.2} parent=31 // pred_region
        %v3027 = vld [vmem:[#allocation2] sm:$0xff]
        %v3028 = vld [vmem:[#allocation2 + $0x8] sm:$0xff]
        %v3029 = vld [vmem:[#allocation2 + $0x10] sm:$0xff]
        %v3030 = vld [vmem:[#allocation2 + $0x18] sm:$0xff]
        %v3031 = vld [vmem:[#allocation2 + $0x20] sm:$0xff]
        %v3032 = vld [vmem:[#allocation2 + $0x28] sm:$0xff]
        %v3033 = vld [vmem:[#allocation2 + $0x30] sm:$0xff]
        %v3034 = vld [vmem:[#allocation2 + $0x38] sm:$0xff]
        %v3035 = vld [vmem:[#allocation2 + $0x40] sm:$0xff]
        %v3036 = vld [vmem:[#allocation2 + $0x48] sm:$0xff]
        %v3037 = vld [vmem:[#allocation2 + $0x50] sm:$0xff]
        %v3038 = vld [vmem:[#allocation2 + $0x58] sm:$0xff]
        %v3039 = vld [vmem:[#allocation2 + $0x60] sm:$0xff]
        %v3040 = vld [vmem:[#allocation2 + $0x68] sm:$0xff]
        %v3041 = vld [vmem:[#allocation2 + $0x70] sm:$0xff]
        %v3042 = vld [vmem:[#allocation2 + $0x78] sm:$0xff]
        %v3043 = vld [vmem:[#allocation2 + $0x80] sm:$0xff]
        %v3044 = vld [vmem:[#allocation2 + $0x88] sm:$0xff]
        %v3045 = vld [vmem:[#allocation2 + $0x90] sm:$0xff]
        %v3046 = vld [vmem:[#allocation2 + $0x98] sm:$0xff]
        %v3047 = vld [vmem:[#allocation2 + $0xa0] sm:$0xff]
        %v3048 = vld [vmem:[#allocation2 + $0xa8] sm:$0xff]
        %v3049 = vld [vmem:[#allocation2 + $0xb0] sm:$0xff]
        %v3050 = vld [vmem:[#allocation2 + $0xb8] sm:$0xff]
        %v3051 = vld [vmem:[#allocation2 + $0xc0] sm:$0xff]
        %v3052 = vld [vmem:[#allocation2 + $0xc8] sm:$0xff]
        %v3053 = vld [vmem:[#allocation2 + $0xd0] sm:$0xff]
        %v3054 = vld [vmem:[#allocation2 + $0xd8] sm:$0xff]
        %v3055 = vld [vmem:[#allocation2 + $0xe0] sm:$0xff]
        %v3056 = vld [vmem:[#allocation2 + $0xe8] sm:$0xff]
        %v3057 = vld [vmem:[#allocation2 + $0xf0] sm:$0xff]
        %v3058 = vld [vmem:[#allocation2 + $0xf8] sm:$0xff]
        %v3059 = vld [vmem:[#allocation2 + $0x100] sm:$0xff]
        %v3060 = vld [vmem:[#allocation2 + $0x108] sm:$0xff]
        %v3061 = vld [vmem:[#allocation2 + $0x110] sm:$0xff]
        %v3062 = vld [vmem:[#allocation2 + $0x118] sm:$0xff]
        %v3063 = vld [vmem:[#allocation2 + $0x120] sm:$0xff]
        %v3064 = vld [vmem:[#allocation2 + $0x128] sm:$0xff]
        %v3065 = vld [vmem:[#allocation2 + $0x130] sm:$0xff]
        %v3066 = vld [vmem:[#allocation2 + $0x138] sm:$0xff]
        %v3067 = vld [vmem:[#allocation2 + $0x140] sm:$0xff]
        %v3068 = vld [vmem:[#allocation2 + $0x148] sm:$0xff]
        %v3069 = vld [vmem:[#allocation2 + $0x150] sm:$0xff]
        %v3070 = vld [vmem:[#allocation2 + $0x158] sm:$0xff]
        %v3071 = vld [vmem:[#allocation2 + $0x160] sm:$0xff]
        %v3072 = vld [vmem:[#allocation2 + $0x168] sm:$0xff]
        %v3073 = vld [vmem:[#allocation2 + $0x170] sm:$0xff]
        %v3074 = vld [vmem:[#allocation2 + $0x178] sm:$0xff]
        %v3075 = vld [vmem:[#allocation2 + $0x180] sm:$0xff]
        %v3076 = vld [vmem:[#allocation2 + $0x188] sm:$0xff]
        %v3077 = vld [vmem:[#allocation2 + $0x190] sm:$0xff]
        %v3078 = vld [vmem:[#allocation2 + $0x198] sm:$0xff]
        %v3079 = vld [vmem:[#allocation2 + $0x1a0] sm:$0xff]
        %v3080 = vld [vmem:[#allocation2 + $0x1a8] sm:$0xff]
        %v3081 = vld [vmem:[#allocation2 + $0x1b0] sm:$0xff]
        %v3082 = vld [vmem:[#allocation2 + $0x1b8] sm:$0xff]
        %v3083 = vld [vmem:[#allocation2 + $0x1c0] sm:$0xff]
        %v3084 = vld [vmem:[#allocation2 + $0x1c8] sm:$0xff]
        %v3085 = vld [vmem:[#allocation2 + $0x1d0] sm:$0xff]
        %v3086 = vld [vmem:[#allocation2 + $0x1d8] sm:$0xff]
        %v3087 = vld [vmem:[#allocation2 + $0x1e0] sm:$0xff]
        %v3088 = vld [vmem:[#allocation2 + $0x1e8] sm:$0xff]
        %v3089 = vld [vmem:[#allocation2 + $0x1f0] sm:$0xff]
        %v3090 = vld [vmem:[#allocation2 + $0x1f8] sm:$0xff]
        %v3091 = vld [vmem:[#allocation2 + $0x200] sm:$0xff]
        %v3092 = vld [vmem:[#allocation2 + $0x208] sm:$0xff]
        %v3093 = vld [vmem:[#allocation2 + $0x210] sm:$0xff]
        %v3094 = vld [vmem:[#allocation2 + $0x218] sm:$0xff]
        %v3095 = vld [vmem:[#allocation2 + $0x220] sm:$0xff]
        %v3096 = vld [vmem:[#allocation2 + $0x228] sm:$0xff]
        %v3097 = vld [vmem:[#allocation2 + $0x230] sm:$0xff]
        %v3098 = vld [vmem:[#allocation2 + $0x238] sm:$0xff]
        %v3099 = vld [vmem:[#allocation2 + $0x240] sm:$0xff]
        %v3100 = vld [vmem:[#allocation2 + $0x248] sm:$0xff]
        %v3101 = vld [vmem:[#allocation2 + $0x250] sm:$0xff]
        %v3102 = vld [vmem:[#allocation2 + $0x258] sm:$0xff]
        %v3103 = vld [vmem:[#allocation2 + $0x260] sm:$0xff]
        %v3104 = vld [vmem:[#allocation2 + $0x268] sm:$0xff]
        %v3105 = vld [vmem:[#allocation2 + $0x270] sm:$0xff]
        %v3106 = vld [vmem:[#allocation2 + $0x278] sm:$0xff]
        %v3107 = vld [vmem:[#allocation2 + $0x280] sm:$0xff]
        %v3108 = vld [vmem:[#allocation2 + $0x288] sm:$0xff]
        %v3109 = vld [vmem:[#allocation2 + $0x290] sm:$0xff]
        %v3110 = vld [vmem:[#allocation2 + $0x298] sm:$0xff]
        %v3111 = vld [vmem:[#allocation2 + $0x2a0] sm:$0xff]
        %v3112 = vld [vmem:[#allocation2 + $0x2a8] sm:$0xff]
        %v3113 = vld [vmem:[#allocation2 + $0x2b0] sm:$0xff]
        %v3114 = vld [vmem:[#allocation2 + $0x2b8] sm:$0xff]
        %v3115 = vld [vmem:[#allocation2 + $0x2c0] sm:$0xff]
        %v3116 = vld [vmem:[#allocation2 + $0x2c8] sm:$0xff]
        %v3117 = vld [vmem:[#allocation2 + $0x2d0] sm:$0xff]
        %v3118 = vld [vmem:[#allocation2 + $0x2d8] sm:$0xff]
        %v3119 = vld [vmem:[#allocation2 + $0x2e0] sm:$0xff]
        %v3120 = vld [vmem:[#allocation2 + $0x2e8] sm:$0xff]
        %v3121 = vld [vmem:[#allocation2 + $0x2f0] sm:$0xff]
        %v3122 = vld [vmem:[#allocation2 + $0x2f8] sm:$0xff]
        %v3123 = vld [vmem:[#allocation2 + $0x300] sm:$0xff]
        %v3124 = vld [vmem:[#allocation2 + $0x308] sm:$0xff]
        %v3125 = vld [vmem:[#allocation2 + $0x310] sm:$0xff]
        %v3126 = vld [vmem:[#allocation2 + $0x318] sm:$0xff]
        %v3127 = vld [vmem:[#allocation2 + $0x320] sm:$0xff]
        %v3128 = vld [vmem:[#allocation2 + $0x328] sm:$0xff]
        %v3129 = vld [vmem:[#allocation2 + $0x330] sm:$0xff]
        %v3130 = vld [vmem:[#allocation2 + $0x338] sm:$0xff]
        %v3131 = vld [vmem:[#allocation2 + $0x340] sm:$0xff]
        %v3132 = vld [vmem:[#allocation2 + $0x348] sm:$0xff]
        %v3133 = vld [vmem:[#allocation2 + $0x350] sm:$0xff]
        %v3134 = vld [vmem:[#allocation2 + $0x358] sm:$0xff]
        %v3135 = vld [vmem:[#allocation2 + $0x360] sm:$0xff]
        %v3136 = vld [vmem:[#allocation2 + $0x368] sm:$0xff]
        %v3137 = vld [vmem:[#allocation2 + $0x370] sm:$0xff]
        %v3138 = vld [vmem:[#allocation2 + $0x378] sm:$0xff]
        %v3139 = vld [vmem:[#allocation2 + $0x380] sm:$0xff]
        %v3140 = vld [vmem:[#allocation2 + $0x388] sm:$0xff]
        %v3141 = vld [vmem:[#allocation2 + $0x390] sm:$0xff]
        %v3142 = vld [vmem:[#allocation2 + $0x398] sm:$0xff]
        %v3143 = vld [vmem:[#allocation2 + $0x3a0] sm:$0xff]
        %v3144 = vld [vmem:[#allocation2 + $0x3a8] sm:$0xff]
        %v3145 = vld [vmem:[#allocation2 + $0x3b0] sm:$0xff]
        %v3146 = vld [vmem:[#allocation2 + $0x3b8] sm:$0xff]
        %v3147 = vld [vmem:[#allocation2 + $0x3c0] sm:$0xff]
        %v3148 = vld [vmem:[#allocation2 + $0x3c8] sm:$0xff]
        %v3149 = vld [vmem:[#allocation2 + $0x3d0] sm:$0xff]
        %v3150 = vld [vmem:[#allocation2 + $0x3d8] sm:$0xff]
        %v3151 = vld [vmem:[#allocation2 + $0x3e0] sm:$0xff]
        %v3152 = vld [vmem:[#allocation2 + $0x3e8] sm:$0xff]
        %v3153 = vld [vmem:[#allocation2 + $0x3f0] sm:$0xff]
        %v3154 = vld [vmem:[#allocation2 + $0x3f8] sm:$0xff]
        %v3155 = vld [vmem:[#allocation2 + $0x400] sm:$0xff]
        %v3156 = vld [vmem:[#allocation2 + $0x408] sm:$0xff]
        %v3157 = vld [vmem:[#allocation2 + $0x410] sm:$0xff]
        %v3158 = vld [vmem:[#allocation2 + $0x418] sm:$0xff]
        %v3159 = vld [vmem:[#allocation2 + $0x420] sm:$0xff]
        %v3160 = vld [vmem:[#allocation2 + $0x428] sm:$0xff]
        %v3161 = vld [vmem:[#allocation2 + $0x430] sm:$0xff]
        %v3162 = vld [vmem:[#allocation2 + $0x438] sm:$0xff]
        %v3163 = vld [vmem:[#allocation2 + $0x440] sm:$0xff]
        %v3164 = vld [vmem:[#allocation2 + $0x448] sm:$0xff]
        %v3165 = vld [vmem:[#allocation2 + $0x450] sm:$0xff]
        %v3166 = vld [vmem:[#allocation2 + $0x458] sm:$0xff]
        %v3167 = vld [vmem:[#allocation2 + $0x460] sm:$0xff]
        %v3168 = vld [vmem:[#allocation2 + $0x468] sm:$0xff]
        %v3169 = vld [vmem:[#allocation2 + $0x470] sm:$0xff]
        %v3170 = vld [vmem:[#allocation2 + $0x478] sm:$0xff]
        %v3171 = vld [vmem:[#allocation2 + $0x480] sm:$0xff]
        %v3172 = vld [vmem:[#allocation2 + $0x488] sm:$0xff]
        %v3173 = vld [vmem:[#allocation2 + $0x490] sm:$0xff]
        %v3174 = vld [vmem:[#allocation2 + $0x498] sm:$0xff]
        %v3175 = vld [vmem:[#allocation2 + $0x4a0] sm:$0xff]
        %v3176 = vld [vmem:[#allocation2 + $0x4a8] sm:$0xff]
        %v3177 = vld [vmem:[#allocation2 + $0x4b0] sm:$0xff]
        %v3178 = vld [vmem:[#allocation2 + $0x4b8] sm:$0xff]
        %v3179 = vld [vmem:[#allocation2 + $0x4c0] sm:$0xff]
        %v3180 = vld [vmem:[#allocation2 + $0x4c8] sm:$0xff]
        %v3181 = vld [vmem:[#allocation2 + $0x4d0] sm:$0xff]
        %v3182 = vld [vmem:[#allocation2 + $0x4d8] sm:$0xff]
        %v3183 = vld [vmem:[#allocation2 + $0x4e0] sm:$0xff]
        %v3184 = vld [vmem:[#allocation2 + $0x4e8] sm:$0xff]
        %v3185 = vld [vmem:[#allocation2 + $0x4f0] sm:$0xff]
        %v3186 = vld [vmem:[#allocation2 + $0x4f8] sm:$0xff]
        %v3187 = vld [vmem:[#allocation2 + $0x500] sm:$0xff]
        %v3188 = vld [vmem:[#allocation2 + $0x508] sm:$0xff]
        %v3189 = vld [vmem:[#allocation2 + $0x510] sm:$0xff]
        %v3190 = vld [vmem:[#allocation2 + $0x518] sm:$0xff]
        %v3191 = vld [vmem:[#allocation2 + $0x520] sm:$0xff]
        %v3192 = vld [vmem:[#allocation2 + $0x528] sm:$0xff]
        %v3193 = vld [vmem:[#allocation2 + $0x530] sm:$0xff]
        %v3194 = vld [vmem:[#allocation2 + $0x538] sm:$0xff]
        %v3195 = vld [vmem:[#allocation2 + $0x540] sm:$0xff]
        %v3196 = vld [vmem:[#allocation2 + $0x548] sm:$0xff]
        %v3197 = vld [vmem:[#allocation2 + $0x550] sm:$0xff]
        %v3198 = vld [vmem:[#allocation2 + $0x558] sm:$0xff]
        %v3199 = vld [vmem:[#allocation2 + $0x560] sm:$0xff]
        %v3200 = vld [vmem:[#allocation2 + $0x568] sm:$0xff]
        %v3201 = vld [vmem:[#allocation2 + $0x570] sm:$0xff]
        %v3202 = vld [vmem:[#allocation2 + $0x578] sm:$0xff]
        %v3203 = vld [vmem:[#allocation2 + $0x580] sm:$0xff]
        %v3204 = vld [vmem:[#allocation2 + $0x588] sm:$0xff]
        %v3205 = vld [vmem:[#allocation2 + $0x590] sm:$0xff]
        %v3206 = vld [vmem:[#allocation2 + $0x598] sm:$0xff]
        %v3207 = vld [vmem:[#allocation2 + $0x5a0] sm:$0xff]
        %v3208 = vld [vmem:[#allocation2 + $0x5a8] sm:$0xff]
        %v3209 = vld [vmem:[#allocation2 + $0x5b0] sm:$0xff]
        %v3210 = vld [vmem:[#allocation2 + $0x5b8] sm:$0xff]
        %v3211 = vld [vmem:[#allocation2 + $0x5c0] sm:$0xff]
        %v3212 = vld [vmem:[#allocation2 + $0x5c8] sm:$0xff]
        %v3213 = vld [vmem:[#allocation2 + $0x5d0] sm:$0xff]
        %v3214 = vld [vmem:[#allocation2 + $0x5d8] sm:$0xff]
        %v3215 = vld [vmem:[#allocation2 + $0x5e0] sm:$0xff]
        %v3216 = vld [vmem:[#allocation2 + $0x5e8] sm:$0xff]
        %v3217 = vld [vmem:[#allocation2 + $0x5f0] sm:$0xff]
        %v3218 = vld [vmem:[#allocation2 + $0x5f8] sm:$0xff]
        %v3219 = vld [vmem:[#allocation2 + $0x600] sm:$0xff]
        %v3220 = vld [vmem:[#allocation2 + $0x608] sm:$0xff]
        %v3221 = vld [vmem:[#allocation2 + $0x610] sm:$0xff]
        %v3222 = vld [vmem:[#allocation2 + $0x618] sm:$0xff]
        %v3223 = vld [vmem:[#allocation2 + $0x620] sm:$0xff]
        %v3224 = vld [vmem:[#allocation2 + $0x628] sm:$0xff]
        %v3225 = vld [vmem:[#allocation2 + $0x630] sm:$0xff]
        %v3226 = vld [vmem:[#allocation2 + $0x638] sm:$0xff]
        %v3227 = vld [vmem:[#allocation2 + $0x640] sm:$0xff]
        %v3228 = vld [vmem:[#allocation2 + $0x648] sm:$0xff]
        %v3229 = vld [vmem:[#allocation2 + $0x650] sm:$0xff]
        %v3230 = vld [vmem:[#allocation2 + $0x658] sm:$0xff]
        %v3231 = vld [vmem:[#allocation2 + $0x660] sm:$0xff]
        %v3232 = vld [vmem:[#allocation2 + $0x668] sm:$0xff]
        %v3233 = vld [vmem:[#allocation2 + $0x670] sm:$0xff]
        %v3234 = vld [vmem:[#allocation2 + $0x678] sm:$0xff]
        %v3235 = vld [vmem:[#allocation2 + $0x680] sm:$0xff]
        %v3236 = vld [vmem:[#allocation2 + $0x688] sm:$0xff]
        %v3237 = vld [vmem:[#allocation2 + $0x690] sm:$0xff]
        %v3238 = vld [vmem:[#allocation2 + $0x698] sm:$0xff]
        %v3239 = vld [vmem:[#allocation2 + $0x6a0] sm:$0xff]
        %v3240 = vld [vmem:[#allocation2 + $0x6a8] sm:$0xff]
        %v3241 = vld [vmem:[#allocation2 + $0x6b0] sm:$0xff]
        %v3242 = vld [vmem:[#allocation2 + $0x6b8] sm:$0xff]
        %v3243 = vld [vmem:[#allocation2 + $0x6c0] sm:$0xff]
        %v3244 = vld [vmem:[#allocation2 + $0x6c8] sm:$0xff]
        %v3245 = vld [vmem:[#allocation2 + $0x6d0] sm:$0xff]
        %v3246 = vld [vmem:[#allocation2 + $0x6d8] sm:$0xff]
        %v3247 = vld [vmem:[#allocation2 + $0x6e0] sm:$0xff]
        %v3248 = vld [vmem:[#allocation2 + $0x6e8] sm:$0xff]
        %v3249 = vld [vmem:[#allocation2 + $0x6f0] sm:$0xff]
        %v3250 = vld [vmem:[#allocation2 + $0x6f8] sm:$0xff]
        %v3251 = vld [vmem:[#allocation2 + $0x700] sm:$0xff]
        %v3252 = vld [vmem:[#allocation2 + $0x708] sm:$0xff]
        %v3253 = vld [vmem:[#allocation2 + $0x710] sm:$0xff]
        %v3254 = vld [vmem:[#allocation2 + $0x718] sm:$0xff]
        %v3255 = vld [vmem:[#allocation2 + $0x720] sm:$0xff]
        %v3256 = vld [vmem:[#allocation2 + $0x728] sm:$0xff]
        %v3257 = vld [vmem:[#allocation2 + $0x730] sm:$0xff]
        %v3258 = vld [vmem:[#allocation2 + $0x738] sm:$0xff]
        %v3259 = vld [vmem:[#allocation2 + $0x740] sm:$0xff]
        %v3260 = vld [vmem:[#allocation2 + $0x748] sm:$0xff]
        %v3261 = vld [vmem:[#allocation2 + $0x750] sm:$0xff]
        %v3262 = vld [vmem:[#allocation2 + $0x758] sm:$0xff]
        %v3263 = vld [vmem:[#allocation2 + $0x760] sm:$0xff]
        %v3264 = vld [vmem:[#allocation2 + $0x768] sm:$0xff]
        %v3265 = vld [vmem:[#allocation2 + $0x770] sm:$0xff]
        %v3266 = vld [vmem:[#allocation2 + $0x778] sm:$0xff]
        %v3267 = vld [vmem:[#allocation2 + $0x780] sm:$0xff]
        %v3268 = vld [vmem:[#allocation2 + $0x788] sm:$0xff]
        %v3269 = vld [vmem:[#allocation2 + $0x790] sm:$0xff]
        %v3270 = vld [vmem:[#allocation2 + $0x798] sm:$0xff]
        %v3271 = vld [vmem:[#allocation2 + $0x7a0] sm:$0xff]
        %v3272 = vld [vmem:[#allocation2 + $0x7a8] sm:$0xff]
        %v3273 = vld [vmem:[#allocation2 + $0x7b0] sm:$0xff]
        %v3274 = vld [vmem:[#allocation2 + $0x7b8] sm:$0xff]
        %v3275 = vld [vmem:[#allocation2 + $0x7c0] sm:$0xff]
        %v3276 = vld [vmem:[#allocation2 + $0x7c8] sm:$0xff]
        %v3277 = vld [vmem:[#allocation2 + $0x7d0] sm:$0xff]
        %v3278 = vld [vmem:[#allocation2 + $0x7d8] sm:$0xff]
        %v3279 = vld [vmem:[#allocation2 + $0x7e0] sm:$0xff]
        %v3280 = vld [vmem:[#allocation2 + $0x7e8] sm:$0xff]
        %v3281 = vld [vmem:[#allocation2 + $0x7f0] sm:$0xff]
        %v3282 = vld [vmem:[#allocation2 + $0x7f8] sm:$0xff]
        %v3283 = vld [vmem:[%s249] sm:$0x1]
        %v3285 = vperm.slane %v3283, 0
        %v3287 = vadd.f32 %v3027, %v3285
        %v3288 = vadd.f32 %v3028, %v3285
        %v3289 = vadd.f32 %v3029, %v3285
        %v3290 = vadd.f32 %v3030, %v3285
        %v3291 = vadd.f32 %v3031, %v3285
        %v3292 = vadd.f32 %v3032, %v3285
        %v3293 = vadd.f32 %v3033, %v3285
        %v3294 = vadd.f32 %v3034, %v3285
        %v3295 = vadd.f32 %v3035, %v3285
        %v3296 = vadd.f32 %v3036, %v3285
        %v3297 = vadd.f32 %v3037, %v3285
        %v3298 = vadd.f32 %v3038, %v3285
        %v3299 = vadd.f32 %v3039, %v3285
        %v3300 = vadd.f32 %v3040, %v3285
        %v3301 = vadd.f32 %v3041, %v3285
        %v3302 = vadd.f32 %v3042, %v3285
        %v3303 = vadd.f32 %v3043, %v3285
        %v3304 = vadd.f32 %v3044, %v3285
        %v3305 = vadd.f32 %v3045, %v3285
        %v3306 = vadd.f32 %v3046, %v3285
        %v3307 = vadd.f32 %v3047, %v3285
        %v3308 = vadd.f32 %v3048, %v3285
        %v3309 = vadd.f32 %v3049, %v3285
        %v3310 = vadd.f32 %v3050, %v3285
        %v3311 = vadd.f32 %v3051, %v3285
        %v3312 = vadd.f32 %v3052, %v3285
        %v3313 = vadd.f32 %v3053, %v3285
        %v3314 = vadd.f32 %v3054, %v3285
        %v3315 = vadd.f32 %v3055, %v3285
        %v3316 = vadd.f32 %v3056, %v3285
        %v3317 = vadd.f32 %v3057, %v3285
        %v3318 = vadd.f32 %v3058, %v3285
        %v3319 = vadd.f32 %v3059, %v3285
        %v3320 = vadd.f32 %v3060, %v3285
        %v3321 = vadd.f32 %v3061, %v3285
        %v3322 = vadd.f32 %v3062, %v3285
        %v3323 = vadd.f32 %v3063, %v3285
        %v3324 = vadd.f32 %v3064, %v3285
        %v3325 = vadd.f32 %v3065, %v3285
        %v3326 = vadd.f32 %v3066, %v3285
        %v3327 = vadd.f32 %v3067, %v3285
        %v3328 = vadd.f32 %v3068, %v3285
        %v3329 = vadd.f32 %v3069, %v3285
        %v3330 = vadd.f32 %v3070, %v3285
        %v3331 = vadd.f32 %v3071, %v3285
        %v3332 = vadd.f32 %v3072, %v3285
        %v3333 = vadd.f32 %v3073, %v3285
        %v3334 = vadd.f32 %v3074, %v3285
        %v3335 = vadd.f32 %v3075, %v3285
        %v3336 = vadd.f32 %v3076, %v3285
        %v3337 = vadd.f32 %v3077, %v3285
        %v3338 = vadd.f32 %v3078, %v3285
        %v3339 = vadd.f32 %v3079, %v3285
        %v3340 = vadd.f32 %v3080, %v3285
        %v3341 = vadd.f32 %v3081, %v3285
        %v3342 = vadd.f32 %v3082, %v3285
        %v3343 = vadd.f32 %v3083, %v3285
        %v3344 = vadd.f32 %v3084, %v3285
        %v3345 = vadd.f32 %v3085, %v3285
        %v3346 = vadd.f32 %v3086, %v3285
        %v3347 = vadd.f32 %v3087, %v3285
        %v3348 = vadd.f32 %v3088, %v3285
        %v3349 = vadd.f32 %v3089, %v3285
        %v3350 = vadd.f32 %v3090, %v3285
        %v3351 = vadd.f32 %v3091, %v3285
        %v3352 = vadd.f32 %v3092, %v3285
        %v3353 = vadd.f32 %v3093, %v3285
        %v3354 = vadd.f32 %v3094, %v3285
        %v3355 = vadd.f32 %v3095, %v3285
        %v3356 = vadd.f32 %v3096, %v3285
        %v3357 = vadd.f32 %v3097, %v3285
        %v3358 = vadd.f32 %v3098, %v3285
        %v3359 = vadd.f32 %v3099, %v3285
        %v3360 = vadd.f32 %v3100, %v3285
        %v3361 = vadd.f32 %v3101, %v3285
        %v3362 = vadd.f32 %v3102, %v3285
        %v3363 = vadd.f32 %v3103, %v3285
        %v3364 = vadd.f32 %v3104, %v3285
        %v3365 = vadd.f32 %v3105, %v3285
        %v3366 = vadd.f32 %v3106, %v3285
        %v3367 = vadd.f32 %v3107, %v3285
        %v3368 = vadd.f32 %v3108, %v3285
        %v3369 = vadd.f32 %v3109, %v3285
        %v3370 = vadd.f32 %v3110, %v3285
        %v3371 = vadd.f32 %v3111, %v3285
        %v3372 = vadd.f32 %v3112, %v3285
        %v3373 = vadd.f32 %v3113, %v3285
        %v3374 = vadd.f32 %v3114, %v3285
        %v3375 = vadd.f32 %v3115, %v3285
        %v3376 = vadd.f32 %v3116, %v3285
        %v3377 = vadd.f32 %v3117, %v3285
        %v3378 = vadd.f32 %v3118, %v3285
        %v3379 = vadd.f32 %v3119, %v3285
        %v3380 = vadd.f32 %v3120, %v3285
        %v3381 = vadd.f32 %v3121, %v3285
        %v3382 = vadd.f32 %v3122, %v3285
        %v3383 = vadd.f32 %v3123, %v3285
        %v3384 = vadd.f32 %v3124, %v3285
        %v3385 = vadd.f32 %v3125, %v3285
        %v3386 = vadd.f32 %v3126, %v3285
        %v3387 = vadd.f32 %v3127, %v3285
        %v3388 = vadd.f32 %v3128, %v3285
        %v3389 = vadd.f32 %v3129, %v3285
        %v3390 = vadd.f32 %v3130, %v3285
        %v3391 = vadd.f32 %v3131, %v3285
        %v3392 = vadd.f32 %v3132, %v3285
        %v3393 = vadd.f32 %v3133, %v3285
        %v3394 = vadd.f32 %v3134, %v3285
        %v3395 = vadd.f32 %v3135, %v3285
        %v3396 = vadd.f32 %v3136, %v3285
        %v3397 = vadd.f32 %v3137, %v3285
        %v3398 = vadd.f32 %v3138, %v3285
        %v3399 = vadd.f32 %v3139, %v3285
        %v3400 = vadd.f32 %v3140, %v3285
        %v3401 = vadd.f32 %v3141, %v3285
        %v3402 = vadd.f32 %v3142, %v3285
        %v3403 = vadd.f32 %v3143, %v3285
        %v3404 = vadd.f32 %v3144, %v3285
        %v3405 = vadd.f32 %v3145, %v3285
        %v3406 = vadd.f32 %v3146, %v3285
        %v3407 = vadd.f32 %v3147, %v3285
        %v3408 = vadd.f32 %v3148, %v3285
        %v3409 = vadd.f32 %v3149, %v3285
        %v3410 = vadd.f32 %v3150, %v3285
        %v3411 = vadd.f32 %v3151, %v3285
        %v3412 = vadd.f32 %v3152, %v3285
        %v3413 = vadd.f32 %v3153, %v3285
        %v3414 = vadd.f32 %v3154, %v3285
        %v3415 = vadd.f32 %v3155, %v3285
        %v3416 = vadd.f32 %v3156, %v3285
        %v3417 = vadd.f32 %v3157, %v3285
        %v3418 = vadd.f32 %v3158, %v3285
        %v3419 = vadd.f32 %v3159, %v3285
        %v3420 = vadd.f32 %v3160, %v3285
        %v3421 = vadd.f32 %v3161, %v3285
        %v3422 = vadd.f32 %v3162, %v3285
        %v3423 = vadd.f32 %v3163, %v3285
        %v3424 = vadd.f32 %v3164, %v3285
        %v3425 = vadd.f32 %v3165, %v3285
        %v3426 = vadd.f32 %v3166, %v3285
        %v3427 = vadd.f32 %v3167, %v3285
        %v3428 = vadd.f32 %v3168, %v3285
        %v3429 = vadd.f32 %v3169, %v3285
        %v3430 = vadd.f32 %v3170, %v3285
        %v3431 = vadd.f32 %v3171, %v3285
        %v3432 = vadd.f32 %v3172, %v3285
        %v3433 = vadd.f32 %v3173, %v3285
        %v3434 = vadd.f32 %v3174, %v3285
        %v3435 = vadd.f32 %v3175, %v3285
        %v3436 = vadd.f32 %v3176, %v3285
        %v3437 = vadd.f32 %v3177, %v3285
        %v3438 = vadd.f32 %v3178, %v3285
        %v3439 = vadd.f32 %v3179, %v3285
        %v3440 = vadd.f32 %v3180, %v3285
        %v3441 = vadd.f32 %v3181, %v3285
        %v3442 = vadd.f32 %v3182, %v3285
        %v3443 = vadd.f32 %v3183, %v3285
        %v3444 = vadd.f32 %v3184, %v3285
        %v3445 = vadd.f32 %v3185, %v3285
        %v3446 = vadd.f32 %v3186, %v3285
        %v3447 = vadd.f32 %v3187, %v3285
        %v3448 = vadd.f32 %v3188, %v3285
        %v3449 = vadd.f32 %v3189, %v3285
        %v3450 = vadd.f32 %v3190, %v3285
        %v3451 = vadd.f32 %v3191, %v3285
        %v3452 = vadd.f32 %v3192, %v3285
        %v3453 = vadd.f32 %v3193, %v3285
        %v3454 = vadd.f32 %v3194, %v3285
        %v3455 = vadd.f32 %v3195, %v3285
        %v3456 = vadd.f32 %v3196, %v3285
        %v3457 = vadd.f32 %v3197, %v3285
        %v3458 = vadd.f32 %v3198, %v3285
        %v3459 = vadd.f32 %v3199, %v3285
        %v3460 = vadd.f32 %v3200, %v3285
        %v3461 = vadd.f32 %v3201, %v3285
        %v3462 = vadd.f32 %v3202, %v3285
        %v3463 = vadd.f32 %v3203, %v3285
        %v3464 = vadd.f32 %v3204, %v3285
        %v3465 = vadd.f32 %v3205, %v3285
        %v3466 = vadd.f32 %v3206, %v3285
        %v3467 = vadd.f32 %v3207, %v3285
        %v3468 = vadd.f32 %v3208, %v3285
        %v3469 = vadd.f32 %v3209, %v3285
        %v3470 = vadd.f32 %v3210, %v3285
        %v3471 = vadd.f32 %v3211, %v3285
        %v3472 = vadd.f32 %v3212, %v3285
        %v3473 = vadd.f32 %v3213, %v3285
        %v3474 = vadd.f32 %v3214, %v3285
        %v3475 = vadd.f32 %v3215, %v3285
        %v3476 = vadd.f32 %v3216, %v3285
        %v3477 = vadd.f32 %v3217, %v3285
        %v3478 = vadd.f32 %v3218, %v3285
        %v3479 = vadd.f32 %v3219, %v3285
        %v3480 = vadd.f32 %v3220, %v3285
        %v3481 = vadd.f32 %v3221, %v3285
        %v3482 = vadd.f32 %v3222, %v3285
        %v3483 = vadd.f32 %v3223, %v3285
        %v3484 = vadd.f32 %v3224, %v3285
        %v3485 = vadd.f32 %v3225, %v3285
        %v3486 = vadd.f32 %v3226, %v3285
        %v3487 = vadd.f32 %v3227, %v3285
        %v3488 = vadd.f32 %v3228, %v3285
        %v3489 = vadd.f32 %v3229, %v3285
        %v3490 = vadd.f32 %v3230, %v3285
        %v3491 = vadd.f32 %v3231, %v3285
        %v3492 = vadd.f32 %v3232, %v3285
        %v3493 = vadd.f32 %v3233, %v3285
        %v3494 = vadd.f32 %v3234, %v3285
        %v3495 = vadd.f32 %v3235, %v3285
        %v3496 = vadd.f32 %v3236, %v3285
        %v3497 = vadd.f32 %v3237, %v3285
        %v3498 = vadd.f32 %v3238, %v3285
        %v3499 = vadd.f32 %v3239, %v3285
        %v3500 = vadd.f32 %v3240, %v3285
        %v3501 = vadd.f32 %v3241, %v3285
        %v3502 = vadd.f32 %v3242, %v3285
        %v3503 = vadd.f32 %v3243, %v3285
        %v3504 = vadd.f32 %v3244, %v3285
        %v3505 = vadd.f32 %v3245, %v3285
        %v3506 = vadd.f32 %v3246, %v3285
        %v3507 = vadd.f32 %v3247, %v3285
        %v3508 = vadd.f32 %v3248, %v3285
        %v3509 = vadd.f32 %v3249, %v3285
        %v3510 = vadd.f32 %v3250, %v3285
        %v3511 = vadd.f32 %v3251, %v3285
        %v3512 = vadd.f32 %v3252, %v3285
        %v3513 = vadd.f32 %v3253, %v3285
        %v3514 = vadd.f32 %v3254, %v3285
        %v3515 = vadd.f32 %v3255, %v3285
        %v3516 = vadd.f32 %v3256, %v3285
        %v3517 = vadd.f32 %v3257, %v3285
        %v3518 = vadd.f32 %v3258, %v3285
        %v3519 = vadd.f32 %v3259, %v3285
        %v3520 = vadd.f32 %v3260, %v3285
        %v3521 = vadd.f32 %v3261, %v3285
        %v3522 = vadd.f32 %v3262, %v3285
        %v3523 = vadd.f32 %v3263, %v3285
        %v3524 = vadd.f32 %v3264, %v3285
        %v3525 = vadd.f32 %v3265, %v3285
        %v3526 = vadd.f32 %v3266, %v3285
        %v3527 = vadd.f32 %v3267, %v3285
        %v3528 = vadd.f32 %v3268, %v3285
        %v3529 = vadd.f32 %v3269, %v3285
        %v3530 = vadd.f32 %v3270, %v3285
        %v3531 = vadd.f32 %v3271, %v3285
        %v3532 = vadd.f32 %v3272, %v3285
        %v3533 = vadd.f32 %v3273, %v3285
        %v3534 = vadd.f32 %v3274, %v3285
        %v3535 = vadd.f32 %v3275, %v3285
        %v3536 = vadd.f32 %v3276, %v3285
        %v3537 = vadd.f32 %v3277, %v3285
        %v3538 = vadd.f32 %v3278, %v3285
        %v3539 = vadd.f32 %v3279, %v3285
        %v3540 = vadd.f32 %v3280, %v3285
        %v3541 = vadd.f32 %v3281, %v3285
        %v3542 = vadd.f32 %v3282, %v3285
        %3543 = vst [vmem:[%s257] sm:$0xff] %v3287
        %3544 = vst [vmem:[%s257 + $0x8] sm:$0xff] %v3288
        %3545 = vst [vmem:[%s257 + $0x10] sm:$0xff] %v3289
        %3546 = vst [vmem:[%s257 + $0x18] sm:$0xff] %v3290
        %3547 = vst [vmem:[%s257 + $0x20] sm:$0xff] %v3291
        %3548 = vst [vmem:[%s257 + $0x28] sm:$0xff] %v3292
        %3549 = vst [vmem:[%s257 + $0x30] sm:$0xff] %v3293
        %3550 = vst [vmem:[%s257 + $0x38] sm:$0xff] %v3294
        %3551 = vst [vmem:[%s257 + $0x40] sm:$0xff] %v3295
        %3552 = vst [vmem:[%s257 + $0x48] sm:$0xff] %v3296
        %3553 = vst [vmem:[%s257 + $0x50] sm:$0xff] %v3297
        %3554 = vst [vmem:[%s257 + $0x58] sm:$0xff] %v3298
        %3555 = vst [vmem:[%s257 + $0x60] sm:$0xff] %v3299
        %3556 = vst [vmem:[%s257 + $0x68] sm:$0xff] %v3300
        %3557 = vst [vmem:[%s257 + $0x70] sm:$0xff] %v3301
        %3558 = vst [vmem:[%s257 + $0x78] sm:$0xff] %v3302
        %3559 = vst [vmem:[%s257 + $0x80] sm:$0xff] %v3303
        %3560 = vst [vmem:[%s257 + $0x88] sm:$0xff] %v3304
        %3561 = vst [vmem:[%s257 + $0x90] sm:$0xff] %v3305
        %3562 = vst [vmem:[%s257 + $0x98] sm:$0xff] %v3306
        %3563 = vst [vmem:[%s257 + $0xa0] sm:$0xff] %v3307
        %3564 = vst [vmem:[%s257 + $0xa8] sm:$0xff] %v3308
        %3565 = vst [vmem:[%s257 + $0xb0] sm:$0xff] %v3309
        %3566 = vst [vmem:[%s257 + $0xb8] sm:$0xff] %v3310
        %3567 = vst [vmem:[%s257 + $0xc0] sm:$0xff] %v3311
        %3568 = vst [vmem:[%s257 + $0xc8] sm:$0xff] %v3312
        %3569 = vst [vmem:[%s257 + $0xd0] sm:$0xff] %v3313
        %3570 = vst [vmem:[%s257 + $0xd8] sm:$0xff] %v3314
        %3571 = vst [vmem:[%s257 + $0xe0] sm:$0xff] %v3315
        %3572 = vst [vmem:[%s257 + $0xe8] sm:$0xff] %v3316
        %3573 = vst [vmem:[%s257 + $0xf0] sm:$0xff] %v3317
        %3574 = vst [vmem:[%s257 + $0xf8] sm:$0xff] %v3318
        %3575 = vst [vmem:[%s257 + $0x100] sm:$0xff] %v3319
        %3576 = vst [vmem:[%s257 + $0x108] sm:$0xff] %v3320
        %3577 = vst [vmem:[%s257 + $0x110] sm:$0xff] %v3321
        %3578 = vst [vmem:[%s257 + $0x118] sm:$0xff] %v3322
        %3579 = vst [vmem:[%s257 + $0x120] sm:$0xff] %v3323
        %3580 = vst [vmem:[%s257 + $0x128] sm:$0xff] %v3324
        %3581 = vst [vmem:[%s257 + $0x130] sm:$0xff] %v3325
        %3582 = vst [vmem:[%s257 + $0x138] sm:$0xff] %v3326
        %3583 = vst [vmem:[%s257 + $0x140] sm:$0xff] %v3327
        %3584 = vst [vmem:[%s257 + $0x148] sm:$0xff] %v3328
        %3585 = vst [vmem:[%s257 + $0x150] sm:$0xff] %v3329
        %3586 = vst [vmem:[%s257 + $0x158] sm:$0xff] %v3330
        %3587 = vst [vmem:[%s257 + $0x160] sm:$0xff] %v3331
        %3588 = vst [vmem:[%s257 + $0x168] sm:$0xff] %v3332
        %3589 = vst [vmem:[%s257 + $0x170] sm:$0xff] %v3333
        %3590 = vst [vmem:[%s257 + $0x178] sm:$0xff] %v3334
        %3591 = vst [vmem:[%s257 + $0x180] sm:$0xff] %v3335
        %3592 = vst [vmem:[%s257 + $0x188] sm:$0xff] %v3336
        %3593 = vst [vmem:[%s257 + $0x190] sm:$0xff] %v3337
        %3594 = vst [vmem:[%s257 + $0x198] sm:$0xff] %v3338
        %3595 = vst [vmem:[%s257 + $0x1a0] sm:$0xff] %v3339
        %3596 = vst [vmem:[%s257 + $0x1a8] sm:$0xff] %v3340
        %3597 = vst [vmem:[%s257 + $0x1b0] sm:$0xff] %v3341
        %3598 = vst [vmem:[%s257 + $0x1b8] sm:$0xff] %v3342
        %3599 = vst [vmem:[%s257 + $0x1c0] sm:$0xff] %v3343
        %3600 = vst [vmem:[%s257 + $0x1c8] sm:$0xff] %v3344
        %3601 = vst [vmem:[%s257 + $0x1d0] sm:$0xff] %v3345
        %3602 = vst [vmem:[%s257 + $0x1d8] sm:$0xff] %v3346
        %3603 = vst [vmem:[%s257 + $0x1e0] sm:$0xff] %v3347
        %3604 = vst [vmem:[%s257 + $0x1e8] sm:$0xff] %v3348
        %3605 = vst [vmem:[%s257 + $0x1f0] sm:$0xff] %v3349
        %3606 = vst [vmem:[%s257 + $0x1f8] sm:$0xff] %v3350
        %3607 = vst [vmem:[%s257 + $0x200] sm:$0xff] %v3351
        %3608 = vst [vmem:[%s257 + $0x208] sm:$0xff] %v3352
        %3609 = vst [vmem:[%s257 + $0x210] sm:$0xff] %v3353
        %3610 = vst [vmem:[%s257 + $0x218] sm:$0xff] %v3354
        %3611 = vst [vmem:[%s257 + $0x220] sm:$0xff] %v3355
        %3612 = vst [vmem:[%s257 + $0x228] sm:$0xff] %v3356
        %3613 = vst [vmem:[%s257 + $0x230] sm:$0xff] %v3357
        %3614 = vst [vmem:[%s257 + $0x238] sm:$0xff] %v3358
        %3615 = vst [vmem:[%s257 + $0x240] sm:$0xff] %v3359
        %3616 = vst [vmem:[%s257 + $0x248] sm:$0xff] %v3360
        %3617 = vst [vmem:[%s257 + $0x250] sm:$0xff] %v3361
        %3618 = vst [vmem:[%s257 + $0x258] sm:$0xff] %v3362
        %3619 = vst [vmem:[%s257 + $0x260] sm:$0xff] %v3363
        %3620 = vst [vmem:[%s257 + $0x268] sm:$0xff] %v3364
        %3621 = vst [vmem:[%s257 + $0x270] sm:$0xff] %v3365
        %3622 = vst [vmem:[%s257 + $0x278] sm:$0xff] %v3366
        %3623 = vst [vmem:[%s257 + $0x280] sm:$0xff] %v3367
        %3624 = vst [vmem:[%s257 + $0x288] sm:$0xff] %v3368
        %3625 = vst [vmem:[%s257 + $0x290] sm:$0xff] %v3369
        %3626 = vst [vmem:[%s257 + $0x298] sm:$0xff] %v3370
        %3627 = vst [vmem:[%s257 + $0x2a0] sm:$0xff] %v3371
        %3628 = vst [vmem:[%s257 + $0x2a8] sm:$0xff] %v3372
        %3629 = vst [vmem:[%s257 + $0x2b0] sm:$0xff] %v3373
        %3630 = vst [vmem:[%s257 + $0x2b8] sm:$0xff] %v3374
        %3631 = vst [vmem:[%s257 + $0x2c0] sm:$0xff] %v3375
        %3632 = vst [vmem:[%s257 + $0x2c8] sm:$0xff] %v3376
        %3633 = vst [vmem:[%s257 + $0x2d0] sm:$0xff] %v3377
        %3634 = vst [vmem:[%s257 + $0x2d8] sm:$0xff] %v3378
        %3635 = vst [vmem:[%s257 + $0x2e0] sm:$0xff] %v3379
        %3636 = vst [vmem:[%s257 + $0x2e8] sm:$0xff] %v3380
        %3637 = vst [vmem:[%s257 + $0x2f0] sm:$0xff] %v3381
        %3638 = vst [vmem:[%s257 + $0x2f8] sm:$0xff] %v3382
        %3639 = vst [vmem:[%s257 + $0x300] sm:$0xff] %v3383
        %3640 = vst [vmem:[%s257 + $0x308] sm:$0xff] %v3384
        %3641 = vst [vmem:[%s257 + $0x310] sm:$0xff] %v3385
        %3642 = vst [vmem:[%s257 + $0x318] sm:$0xff] %v3386
        %3643 = vst [vmem:[%s257 + $0x320] sm:$0xff] %v3387
        %3644 = vst [vmem:[%s257 + $0x328] sm:$0xff] %v3388
        %3645 = vst [vmem:[%s257 + $0x330] sm:$0xff] %v3389
        %3646 = vst [vmem:[%s257 + $0x338] sm:$0xff] %v3390
        %3647 = vst [vmem:[%s257 + $0x340] sm:$0xff] %v3391
        %3648 = vst [vmem:[%s257 + $0x348] sm:$0xff] %v3392
        %3649 = vst [vmem:[%s257 + $0x350] sm:$0xff] %v3393
        %3650 = vst [vmem:[%s257 + $0x358] sm:$0xff] %v3394
        %3651 = vst [vmem:[%s257 + $0x360] sm:$0xff] %v3395
        %3652 = vst [vmem:[%s257 + $0x368] sm:$0xff] %v3396
        %3653 = vst [vmem:[%s257 + $0x370] sm:$0xff] %v3397
        %3654 = vst [vmem:[%s257 + $0x378] sm:$0xff] %v3398
        %3655 = vst [vmem:[%s257 + $0x380] sm:$0xff] %v3399
        %3656 = vst [vmem:[%s257 + $0x388] sm:$0xff] %v3400
        %3657 = vst [vmem:[%s257 + $0x390] sm:$0xff] %v3401
        %3658 = vst [vmem:[%s257 + $0x398] sm:$0xff] %v3402
        %3659 = vst [vmem:[%s257 + $0x3a0] sm:$0xff] %v3403
        %3660 = vst [vmem:[%s257 + $0x3a8] sm:$0xff] %v3404
        %3661 = vst [vmem:[%s257 + $0x3b0] sm:$0xff] %v3405
        %3662 = vst [vmem:[%s257 + $0x3b8] sm:$0xff] %v3406
        %3663 = vst [vmem:[%s257 + $0x3c0] sm:$0xff] %v3407
        %3664 = vst [vmem:[%s257 + $0x3c8] sm:$0xff] %v3408
        %3665 = vst [vmem:[%s257 + $0x3d0] sm:$0xff] %v3409
        %3666 = vst [vmem:[%s257 + $0x3d8] sm:$0xff] %v3410
        %3667 = vst [vmem:[%s257 + $0x3e0] sm:$0xff] %v3411
        %3668 = vst [vmem:[%s257 + $0x3e8] sm:$0xff] %v3412
        %3669 = vst [vmem:[%s257 + $0x3f0] sm:$0xff] %v3413
        %3670 = vst [vmem:[%s257 + $0x3f8] sm:$0xff] %v3414
        %3671 = vst [vmem:[%s257 + $0x400] sm:$0xff] %v3415
        %3672 = vst [vmem:[%s257 + $0x408] sm:$0xff] %v3416
        %3673 = vst [vmem:[%s257 + $0x410] sm:$0xff] %v3417
        %3674 = vst [vmem:[%s257 + $0x418] sm:$0xff] %v3418
        %3675 = vst [vmem:[%s257 + $0x420] sm:$0xff] %v3419
        %3676 = vst [vmem:[%s257 + $0x428] sm:$0xff] %v3420
        %3677 = vst [vmem:[%s257 + $0x430] sm:$0xff] %v3421
        %3678 = vst [vmem:[%s257 + $0x438] sm:$0xff] %v3422
        %3679 = vst [vmem:[%s257 + $0x440] sm:$0xff] %v3423
        %3680 = vst [vmem:[%s257 + $0x448] sm:$0xff] %v3424
        %3681 = vst [vmem:[%s257 + $0x450] sm:$0xff] %v3425
        %3682 = vst [vmem:[%s257 + $0x458] sm:$0xff] %v3426
        %3683 = vst [vmem:[%s257 + $0x460] sm:$0xff] %v3427
        %3684 = vst [vmem:[%s257 + $0x468] sm:$0xff] %v3428
        %3685 = vst [vmem:[%s257 + $0x470] sm:$0xff] %v3429
        %3686 = vst [vmem:[%s257 + $0x478] sm:$0xff] %v3430
        %3687 = vst [vmem:[%s257 + $0x480] sm:$0xff] %v3431
        %3688 = vst [vmem:[%s257 + $0x488] sm:$0xff] %v3432
        %3689 = vst [vmem:[%s257 + $0x490] sm:$0xff] %v3433
        %3690 = vst [vmem:[%s257 + $0x498] sm:$0xff] %v3434
        %3691 = vst [vmem:[%s257 + $0x4a0] sm:$0xff] %v3435
        %3692 = vst [vmem:[%s257 + $0x4a8] sm:$0xff] %v3436
        %3693 = vst [vmem:[%s257 + $0x4b0] sm:$0xff] %v3437
        %3694 = vst [vmem:[%s257 + $0x4b8] sm:$0xff] %v3438
        %3695 = vst [vmem:[%s257 + $0x4c0] sm:$0xff] %v3439
        %3696 = vst [vmem:[%s257 + $0x4c8] sm:$0xff] %v3440
        %3697 = vst [vmem:[%s257 + $0x4d0] sm:$0xff] %v3441
        %3698 = vst [vmem:[%s257 + $0x4d8] sm:$0xff] %v3442
        %3699 = vst [vmem:[%s257 + $0x4e0] sm:$0xff] %v3443
        %3700 = vst [vmem:[%s257 + $0x4e8] sm:$0xff] %v3444
        %3701 = vst [vmem:[%s257 + $0x4f0] sm:$0xff] %v3445
        %3702 = vst [vmem:[%s257 + $0x4f8] sm:$0xff] %v3446
        %3703 = vst [vmem:[%s257 + $0x500] sm:$0xff] %v3447
        %3704 = vst [vmem:[%s257 + $0x508] sm:$0xff] %v3448
        %3705 = vst [vmem:[%s257 + $0x510] sm:$0xff] %v3449
        %3706 = vst [vmem:[%s257 + $0x518] sm:$0xff] %v3450
        %3707 = vst [vmem:[%s257 + $0x520] sm:$0xff] %v3451
        %3708 = vst [vmem:[%s257 + $0x528] sm:$0xff] %v3452
        %3709 = vst [vmem:[%s257 + $0x530] sm:$0xff] %v3453
        %3710 = vst [vmem:[%s257 + $0x538] sm:$0xff] %v3454
        %3711 = vst [vmem:[%s257 + $0x540] sm:$0xff] %v3455
        %3712 = vst [vmem:[%s257 + $0x548] sm:$0xff] %v3456
        %3713 = vst [vmem:[%s257 + $0x550] sm:$0xff] %v3457
        %3714 = vst [vmem:[%s257 + $0x558] sm:$0xff] %v3458
        %3715 = vst [vmem:[%s257 + $0x560] sm:$0xff] %v3459
        %3716 = vst [vmem:[%s257 + $0x568] sm:$0xff] %v3460
        %3717 = vst [vmem:[%s257 + $0x570] sm:$0xff] %v3461
        %3718 = vst [vmem:[%s257 + $0x578] sm:$0xff] %v3462
        %3719 = vst [vmem:[%s257 + $0x580] sm:$0xff] %v3463
        %3720 = vst [vmem:[%s257 + $0x588] sm:$0xff] %v3464
        %3721 = vst [vmem:[%s257 + $0x590] sm:$0xff] %v3465
        %3722 = vst [vmem:[%s257 + $0x598] sm:$0xff] %v3466
        %3723 = vst [vmem:[%s257 + $0x5a0] sm:$0xff] %v3467
        %3724 = vst [vmem:[%s257 + $0x5a8] sm:$0xff] %v3468
        %3725 = vst [vmem:[%s257 + $0x5b0] sm:$0xff] %v3469
        %3726 = vst [vmem:[%s257 + $0x5b8] sm:$0xff] %v3470
        %3727 = vst [vmem:[%s257 + $0x5c0] sm:$0xff] %v3471
        %3728 = vst [vmem:[%s257 + $0x5c8] sm:$0xff] %v3472
        %3729 = vst [vmem:[%s257 + $0x5d0] sm:$0xff] %v3473
        %3730 = vst [vmem:[%s257 + $0x5d8] sm:$0xff] %v3474
        %3731 = vst [vmem:[%s257 + $0x5e0] sm:$0xff] %v3475
        %3732 = vst [vmem:[%s257 + $0x5e8] sm:$0xff] %v3476
        %3733 = vst [vmem:[%s257 + $0x5f0] sm:$0xff] %v3477
        %3734 = vst [vmem:[%s257 + $0x5f8] sm:$0xff] %v3478
        %3735 = vst [vmem:[%s257 + $0x600] sm:$0xff] %v3479
        %3736 = vst [vmem:[%s257 + $0x608] sm:$0xff] %v3480
        %3737 = vst [vmem:[%s257 + $0x610] sm:$0xff] %v3481
        %3738 = vst [vmem:[%s257 + $0x618] sm:$0xff] %v3482
        %3739 = vst [vmem:[%s257 + $0x620] sm:$0xff] %v3483
        %3740 = vst [vmem:[%s257 + $0x628] sm:$0xff] %v3484
        %3741 = vst [vmem:[%s257 + $0x630] sm:$0xff] %v3485
        %3742 = vst [vmem:[%s257 + $0x638] sm:$0xff] %v3486
        %3743 = vst [vmem:[%s257 + $0x640] sm:$0xff] %v3487
        %3744 = vst [vmem:[%s257 + $0x648] sm:$0xff] %v3488
        %3745 = vst [vmem:[%s257 + $0x650] sm:$0xff] %v3489
        %3746 = vst [vmem:[%s257 + $0x658] sm:$0xff] %v3490
        %3747 = vst [vmem:[%s257 + $0x660] sm:$0xff] %v3491
        %3748 = vst [vmem:[%s257 + $0x668] sm:$0xff] %v3492
        %3749 = vst [vmem:[%s257 + $0x670] sm:$0xff] %v3493
        %3750 = vst [vmem:[%s257 + $0x678] sm:$0xff] %v3494
        %3751 = vst [vmem:[%s257 + $0x680] sm:$0xff] %v3495
        %3752 = vst [vmem:[%s257 + $0x688] sm:$0xff] %v3496
        %3753 = vst [vmem:[%s257 + $0x690] sm:$0xff] %v3497
        %3754 = vst [vmem:[%s257 + $0x698] sm:$0xff] %v3498
        %3755 = vst [vmem:[%s257 + $0x6a0] sm:$0xff] %v3499
        %3756 = vst [vmem:[%s257 + $0x6a8] sm:$0xff] %v3500
        %3757 = vst [vmem:[%s257 + $0x6b0] sm:$0xff] %v3501
        %3758 = vst [vmem:[%s257 + $0x6b8] sm:$0xff] %v3502
        %3759 = vst [vmem:[%s257 + $0x6c0] sm:$0xff] %v3503
        %3760 = vst [vmem:[%s257 + $0x6c8] sm:$0xff] %v3504
        %3761 = vst [vmem:[%s257 + $0x6d0] sm:$0xff] %v3505
        %3762 = vst [vmem:[%s257 + $0x6d8] sm:$0xff] %v3506
        %3763 = vst [vmem:[%s257 + $0x6e0] sm:$0xff] %v3507
        %3764 = vst [vmem:[%s257 + $0x6e8] sm:$0xff] %v3508
        %3765 = vst [vmem:[%s257 + $0x6f0] sm:$0xff] %v3509
        %3766 = vst [vmem:[%s257 + $0x6f8] sm:$0xff] %v3510
        %3767 = vst [vmem:[%s257 + $0x700] sm:$0xff] %v3511
        %3768 = vst [vmem:[%s257 + $0x708] sm:$0xff] %v3512
        %3769 = vst [vmem:[%s257 + $0x710] sm:$0xff] %v3513
        %3770 = vst [vmem:[%s257 + $0x718] sm:$0xff] %v3514
        %3771 = vst [vmem:[%s257 + $0x720] sm:$0xff] %v3515
        %3772 = vst [vmem:[%s257 + $0x728] sm:$0xff] %v3516
        %3773 = vst [vmem:[%s257 + $0x730] sm:$0xff] %v3517
        %3774 = vst [vmem:[%s257 + $0x738] sm:$0xff] %v3518
        %3775 = vst [vmem:[%s257 + $0x740] sm:$0xff] %v3519
        %3776 = vst [vmem:[%s257 + $0x748] sm:$0xff] %v3520
        %3777 = vst [vmem:[%s257 + $0x750] sm:$0xff] %v3521
        %3778 = vst [vmem:[%s257 + $0x758] sm:$0xff] %v3522
        %3779 = vst [vmem:[%s257 + $0x760] sm:$0xff] %v3523
        %3780 = vst [vmem:[%s257 + $0x768] sm:$0xff] %v3524
        %3781 = vst [vmem:[%s257 + $0x770] sm:$0xff] %v3525
        %3782 = vst [vmem:[%s257 + $0x778] sm:$0xff] %v3526
        %3783 = vst [vmem:[%s257 + $0x780] sm:$0xff] %v3527
        %3784 = vst [vmem:[%s257 + $0x788] sm:$0xff] %v3528
        %3785 = vst [vmem:[%s257 + $0x790] sm:$0xff] %v3529
        %3786 = vst [vmem:[%s257 + $0x798] sm:$0xff] %v3530
        %3787 = vst [vmem:[%s257 + $0x7a0] sm:$0xff] %v3531
        %3788 = vst [vmem:[%s257 + $0x7a8] sm:$0xff] %v3532
        %3789 = vst [vmem:[%s257 + $0x7b0] sm:$0xff] %v3533
        %3790 = vst [vmem:[%s257 + $0x7b8] sm:$0xff] %v3534
        %3791 = vst [vmem:[%s257 + $0x7c0] sm:$0xff] %v3535
        %3792 = vst [vmem:[%s257 + $0x7c8] sm:$0xff] %v3536
        %3793 = vst [vmem:[%s257 + $0x7d0] sm:$0xff] %v3537
        %3794 = vst [vmem:[%s257 + $0x7d8] sm:$0xff] %v3538
        %3795 = vst [vmem:[%s257 + $0x7e0] sm:$0xff] %v3539
        %3796 = vst [vmem:[%s257 + $0x7e8] sm:$0xff] %v3540
        %3797 = vst [vmem:[%s257 + $0x7f0] sm:$0xff] %v3541
        %3798 = vst [vmem:[%s257 + $0x7f8] sm:$0xff] %v3542
      $region40: #{conv_bn_lrelu.2} parent=31 // pred_fallthru
        _
      %s3799 = smul.u32 256, %s19
      %p3800 = scmp.lt.s32.totalorder %s3799, 2047
      %s3801 = scalar_select %p3800, %s3799, 2047
      %p3802 = scmp.lt.s32.totalorder %s20, 0
      %s3803 = scalar_select %p3802, %s20, 0
      %s3804 = sadd.s32 %s3803, %s3801
      %s3805 = smul.addr %s3804, 8
      %s3806 = scalar_lea.vmem %s3, %s3805
      // Predicated region
      $region41: #{conv_bn_lrelu.2} parent=31 // pred_check
        %p3807 = pneg %p135
      $region42: #{conv_bn_lrelu.2} parent=31 // pred_check_branch
        %3809 = sbr.rel (%p3807) target = $region44
      $region43: #{conv_bn_lrelu.2} parent=31 // pred_region
        %s3810 = smul.u32 256, %s19
      $region44: #{conv_bn_lrelu.2} parent=31 // pred_fallthru
        _
    $region32: #{conv_bn_lrelu.2} parent=5 // pred_fallthru
      _
    %p3811 = scmp.le.s32.totalorder 2, %s9
    // Predicated region
    $region45: #{conv_bn_lrelu.2} parent=5 // pred_check
      %p3812 = pneg %p3811
    $region46: #{conv_bn_lrelu.2} parent=5 // pred_check_branch
      %3814 = sbr.rel (%p3812) target = $region48
    $region47: #{conv_bn_lrelu.2} parent=5 // pred_region
      %s3815 = ssub.s32 %s9, 2
      // Predicated region
      $region49: #{conv_bn_lrelu.2} parent=47 // pred_check
        %p3816 = pneg %p141
      $region50: #{conv_bn_lrelu.2} parent=47 // pred_check_branch
        %3818 = sbr.rel (%p3816) target = $region52
      $region51: #{conv_bn_lrelu.2} parent=47 // pred_region
        %s3819 = smul.u32 256, %s22
        %p3820 = scmp.lt.s32.totalorder %s3819, 2047
        %s3821 = scalar_select %p3820, %s3819, 2047
        %p3822 = scmp.lt.s32.totalorder %s23, 0
        %s3823 = scalar_select %p3822, %s23, 0
        %s3824 = sadd.s32 %s3823, %s3821
        %s3825 = smul.addr %s3824, 8
        %s3826 = scalar_lea.vmem %s3, %s3825
      $region52: #{conv_bn_lrelu.2} parent=47 // pred_fallthru
        _
    $region48: #{conv_bn_lrelu.2} parent=5 // pred_fallthru
      _
  $region6: #{conv_bn_lrelu.2} parent=0 // loop_footer
    %s13 = sadd.s32 1, %s9
  $region7: #{conv_bn_lrelu.2} parent=0 // loop_footer_branch
    %8 = sbr.rel target = $region3
  $region8: #{conv_bn_lrelu.2} parent=0 // loop_exit
    _

// kernel: tile.18
$region0: #{tile.18}
  #allocation0 [shape = 's32[1]{0}', space=sflag, size = 0x4, scoped, tag = 'scoped memory for tile.18']
  %s0 = inlined_call_operand.vmem [shape: f32[32], index: 0, kind: input, shape index: {}]
  %s1 = inlined_call_operand.vmem [shape: f32[4,32], index: 1, kind: output, shape index: {}]
  // Predicated region
  $region2: #{tile.18} parent=0 // pred_check
    _
  $region3: #{tile.18} parent=0 // pred_check_branch
    %3 = sbr.rel (0) target = $region5
  $region4: #{tile.18} parent=0 // pred_region
    _
  $region5: #{tile.18} parent=0 // pred_fallthru
    _
  %v4 = vld [vmem:[%s0] ss:$0 sm:$0xff]
  %5 = vst [vmem:[%s1] sm:$0xf] %v4

// kernel: tile.19
$region0: #{tile.19}
  %s0 = inlined_call_operand.vmem [shape: f32[4,32], index: 0, kind: input, shape index: {}]
  %s1 = inlined_call_operand.vmem [shape: f32[1,128], index: 1, kind: output, shape index: {}]
  $region1: #{tile.19} parent=0
    #allocation0 [shape = 'u8[4096]{0}', space=vmem, size = 0x1000, scoped, tag = 'scoped mem for output reshape']
    #allocation1 [shape = 'u8[4096]{0}', space=vmem, size = 0x1000, scoped, tag = 'scoped mem for input reshape']
    %s3 = ssub.s32 16, 1
    %v4 = vld [vmem:[%s0] sm:%s3]
    %5 = vst [vmem:[#allocation1] sm:%s3] %v4
    %v6 = vld [vmem:[#allocation1] sm:$0x1]
    %vm7 = vcmask 261120
    %8 = vst.msk [vmem:[#allocation0] sm:$0x1] %vm7, %v6
    %s9 = scalar_lea.vmem [#allocation1], 3
    %v10 = vld [vmem:[%s9] sm:$0x1]
    %11 = vrot.lane.b32.xlu0 %v10, 96
    %v12 = vpop.permute.xlu0 %11
    %vm13 = vcmask 1048320
    %14 = vst.msk [vmem:[#allocation0] sm:$0x1] %vm13, %v12
    %s15 = scalar_lea.vmem [#allocation1], 2
    %v16 = vld [vmem:[%s15] sm:$0x1]
    %17 = vrot.lane.b32.xlu0 %v16, 64
    %v18 = vpop.permute.xlu0 %17
    %vm19 = vcmask 785920
    %20 = vst.msk [vmem:[#allocation0] sm:$0x1] %vm19, %v18
    %s21 = scalar_lea.vmem [#allocation1], 1
    %v22 = vld [vmem:[%s21] sm:$0x1]
    %23 = vrot.lane.b32.xlu0 %v22, 32
    %v24 = vpop.permute.xlu0 %23
    %vm25 = vcmask 523520
    %26 = vst.msk [vmem:[#allocation0] sm:$0x1] %vm25, %v24
    %s28 = ssub.s32 2, 1
    %v29 = vld [vmem:[#allocation0] sm:%s28]
    %s31 = ssub.s32 2, 1
    %32 = vst [vmem:[%s1] sm:%s31] %v29

// kernel: conv_bn_lrelu.3
$region0: #{conv_bn_lrelu.3}
  #allocation0 [shape = 'u32[]', space=smem, size = 0x4, offset = 0x4, fixed_abs, tag = 'smem constant byte address 0x4 - core index']
  #allocation1 [shape = 'u32[72,128]{1,0:T(1,128)}', space=vmem, size = 0x9000, scoped, tag = 'internal scratch']
  %s0 = inlined_call_operand.vmem [shape: f32[4096,128], index: 0, kind: input, shape index: {}]
  %s1 = inlined_call_operand.vmem [shape: f32[1,128], index: 1, kind: input, shape index: {}]
  %s2 = inlined_call_operand.vmem [shape: f32[1,128], index: 2, kind: input, shape index: {}]
  %s3 = inlined_call_operand.vmem [shape: f32[4096,128], index: 3, kind: output, shape index: {}]
  %s4 = sld [smem:[#allocation0]]
  $region45: #{conv_bn_lrelu.3} parent=0
    _
  %s6 = ssub.s32 1, %s4
  %s7 = scalar_select 0, %s6, %s4
  loop: start=0, step=1, limit=6
  $region2: #{conv_bn_lrelu.3} parent=0 // loop_pre_header
    _
  $region3: #{conv_bn_lrelu.3} parent=0 // loop_header
    %s9 = sphi 0, %s13
    %p10 = scmp.ge.s32.totalorder %s9, 6
    %s19 = sphi 0, %s21
    %s22 = sphi 0, %s19
    %s23 = sphi 0, %s22
    %s39 = sphi 0, %s23
    %s43 = sphi 0, %s43
    %s45 = sphi 0, %s43
    %s46 = sphi 0, %s45
    %s60 = sphi 0, %s46
    %s64 = sphi 0, %s64
    %s66 = sphi 0, %s64
    %s67 = sphi 0, %s66
    %s81 = sphi 0, %s67
    %s87 = sphi 0, %s89
    %s90 = sphi 0, %s87
    %s91 = sphi 0, %s90
    %s107 = sphi 0, %s91
  $region4: #{conv_bn_lrelu.3} parent=0 // loop_header_branch
    %12 = sbr.rel (%p10) target = $region8
  $region5: #{conv_bn_lrelu.3} parent=0 // loop_body
    %s14 = ssub.s32 %s9, 1
    %s15 = ssub.s32 %s9, 2
    %s16 = sadd.s32 %s9, 1
    %s17 = ssub.s32 %s9, %s16
    %p18 = scmp.eq.s32.totalorder %s17, 0
    %s20 = sadd.s32 %s19, 1
    %s21 = scalar_select %p18, %s19, %s20
    %p24 = pneg %p18
    %p25 = scmp.eq.s32.totalorder %s9, 3
    %p26 = por %p24, %p25
    %p27 = scmp.ne.s32.totalorder %s19, %s22
    %p28 = scmp.eq.s32.totalorder %s9, 0
    %p29 = por %p27, %p28
    %p30 = scmp.ne.s32.totalorder %s19, %s22
    %p31 = scmp.eq.s32.totalorder %s14, 3
    %p32 = por %p30, %p31
    %p33 = scmp.ne.s32.totalorder %s22, %s23
    %p34 = scmp.eq.s32.totalorder %s14, 0
    %p35 = por %p33, %p34
    %p36 = scmp.ne.s32.totalorder %s22, %s23
    %p37 = scmp.eq.s32.totalorder %s15, 3
    %p38 = por %p36, %p37
    %p40 = scmp.ne.s32.totalorder %s23, %s39
    %p41 = scmp.eq.s32.totalorder %s15, 0
    %p42 = por %p40, %p41
    %s44 = sadd.s32 %s43, 1
    %p47 = scmp.eq.s32.totalorder %s9, 3
    %p48 = scmp.ne.s32.totalorder %s43, %s45
    %p49 = scmp.eq.s32.totalorder %s9, 0
    %p50 = por %p48, %p49
    %p51 = scmp.ne.s32.totalorder %s43, %s45
    %p52 = scmp.eq.s32.totalorder %s14, 3
    %p53 = por %p51, %p52
    %p54 = scmp.ne.s32.totalorder %s45, %s46
    %p55 = scmp.eq.s32.totalorder %s14, 0
    %p56 = por %p54, %p55
    %p57 = scmp.ne.s32.totalorder %s45, %s46
    %p58 = scmp.eq.s32.totalorder %s15, 3
    %p59 = por %p57, %p58
    %p61 = scmp.ne.s32.totalorder %s46, %s60
    %p62 = scmp.eq.s32.totalorder %s15, 0
    %p63 = por %p61, %p62
    %s65 = sadd.s32 %s64, 1
    %p68 = scmp.eq.s32.totalorder %s9, 3
    %p69 = scmp.ne.s32.totalorder %s64, %s66
    %p70 = scmp.eq.s32.totalorder %s9, 0
    %p71 = por %p69, %p70
    %p72 = scmp.ne.s32.totalorder %s64, %s66
    %p73 = scmp.eq.s32.totalorder %s14, 3
    %p74 = por %p72, %p73
    %p75 = scmp.ne.s32.totalorder %s66, %s67
    %p76 = scmp.eq.s32.totalorder %s14, 0
    %p77 = por %p75, %p76
    %p78 = scmp.ne.s32.totalorder %s66, %s67
    %p79 = scmp.eq.s32.totalorder %s15, 3
    %p80 = por %p78, %p79
    %p82 = scmp.ne.s32.totalorder %s67, %s81
    %p83 = scmp.eq.s32.totalorder %s15, 0
    %p84 = por %p82, %p83
    %s85 = ssub.s32 %s9, %s16
    %p86 = scmp.eq.s32.totalorder %s85, 0
    %s88 = sadd.s32 %s87, 1
    %s89 = scalar_select %p86, %s87, %s88
    %p92 = pneg %p86
    %p93 = scmp.eq.s32.totalorder %s9, 3
    %p94 = por %p92, %p93
    %p95 = scmp.ne.s32.totalorder %s87, %s90
    %p96 = scmp.eq.s32.totalorder %s9, 0
    %p97 = por %p95, %p96
    %p98 = scmp.ne.s32.totalorder %s87, %s90
    %p99 = scmp.eq.s32.totalorder %s14, 3
    %p100 = por %p98, %p99
    %p101 = scmp.ne.s32.totalorder %s90, %s91
    %p102 = scmp.eq.s32.totalorder %s14, 0
    %p103 = por %p101, %p102
    %p104 = scmp.ne.s32.totalorder %s90, %s91
    %p105 = scmp.eq.s32.totalorder %s15, 3
    %p106 = por %p104, %p105
    %p108 = scmp.ne.s32.totalorder %s91, %s107
    %p109 = scmp.eq.s32.totalorder %s15, 0
    %p110 = por %p108, %p109
    %p111 = scmp.le.s32.totalorder 1, %s9
    %p112 = scmp.lt.s32.totalorder %s9, 5
    %p113 = pnand %p111, %p112
    %p114 = pneg %p113
    // Predicated region
    $region9: #{conv_bn_lrelu.3} parent=5 // pred_check
      _
    $region10: #{conv_bn_lrelu.3} parent=5 // pred_check_branch
      %116 = sbr.rel (%p113) target = $region12
    $region11: #{conv_bn_lrelu.3} parent=5 // pred_region
      %s117 = ssub.s32 %s9, 1
      // Predicated region
      $region13: #{conv_bn_lrelu.3} parent=11 // pred_check
        %p118 = pneg %p56
      $region14: #{conv_bn_lrelu.3} parent=11 // pred_check_branch
        %120 = sbr.rel (%p118) target = $region16
      $region15: #{conv_bn_lrelu.3} parent=11 // pred_region
        _
      $region16: #{conv_bn_lrelu.3} parent=11 // pred_fallthru
        _
      // Predicated region
      $region17: #{conv_bn_lrelu.3} parent=11 // pred_check
        %p121 = pneg %p77
      $region18: #{conv_bn_lrelu.3} parent=11 // pred_check_branch
        %123 = sbr.rel (%p121) target = $region20
      $region19: #{conv_bn_lrelu.3} parent=11 // pred_region
        _
      $region20: #{conv_bn_lrelu.3} parent=11 // pred_fallthru
        _
    $region12: #{conv_bn_lrelu.3} parent=5 // pred_fallthru
      _
    %p124 = scmp.lt.s32.totalorder %s9, 4
    // Predicated region
    $region21: #{conv_bn_lrelu.3} parent=5 // pred_check
      %p125 = pneg %p124
    $region22: #{conv_bn_lrelu.3} parent=5 // pred_check_branch
      %127 = sbr.rel (%p125) target = $region24
    $region23: #{conv_bn_lrelu.3} parent=5 // pred_region
      // Predicated region
      $region25: #{conv_bn_lrelu.3} parent=23 // pred_check
        %p128 = pneg %p29
      $region26: #{conv_bn_lrelu.3} parent=23 // pred_check_branch
        %130 = sbr.rel (%p128) target = $region28
      $region27: #{conv_bn_lrelu.3} parent=23 // pred_region
        %s131 = smul.u32 128, %s9
        %p132 = scmp.lt.s32.totalorder %s131, 511
        %s133 = scalar_select %p132, %s131, 511
        %s134 = smul.addr %s133, 8
        %s135 = scalar_lea.vmem %s0, %s134
        %s136 = smul.u32 128, %s9
      $region28: #{conv_bn_lrelu.3} parent=23 // pred_fallthru
        _
    $region24: #{conv_bn_lrelu.3} parent=5 // pred_fallthru
      _
    %p137 = scmp.le.s32.totalorder 1, %s9
    %p138 = scmp.lt.s32.totalorder %s9, 5
    %p139 = pnand %p137, %p138
    %p140 = pneg %p139
    // Predicated region
    $region29: #{conv_bn_lrelu.3} parent=5 // pred_check
      _
    $region30: #{conv_bn_lrelu.3} parent=5 // pred_check_branch
      %142 = sbr.rel (%p139) target = $region32
    $region31: #{conv_bn_lrelu.3} parent=5 // pred_region
      %s143 = ssub.s32 %s9, 1
      %s144 = smul.u32 128, %s14
      %p145 = scmp.lt.s32.totalorder %s144, 511
      %s146 = scalar_select %p145, %s144, 511
      %s147 = smul.addr %s146, 8
      %s148 = scalar_lea.vmem %s0, %s147
      %p149 = pneg %p35
      %p150 = pneg %p32
      %p151 = pneg %p56
      %p152 = pneg %p53
      %p153 = pneg %p77
      %p154 = pneg %p74
      %p155 = pneg %p103
      %p156 = pneg %p100
      %s157 = smul.u32 128, %s14
      %p158 = scmp.lt.s32.totalorder %s157, 511
      %s159 = scalar_select %p158, %s157, 511
      %s160 = smul.addr %s159, 8
      %s161 = scalar_lea.vmem %s3, %s160
      %s162 = smul.u32 128, %s14
      %p163 = scmp.lt.s32.totalorder %s162, 511
      %s164 = scalar_select %p163, %s162, 511
      %s165 = smul.addr %s164, 8
      %s166 = scalar_lea.vmem %s0, %s165
      %s167 = smul.u32 128, %s14
      %s168 = smul.u32 128, %s14
      %p169 = scmp.lt.s32.totalorder %s168, 511
      %s170 = scalar_select %p169, %s168, 511
      %s171 = smul.addr %s170, 8
      %s172 = scalar_lea.vmem %s3, %s171
      %s173 = smul.u32 128, %s14
      %v174 = vld [vmem:[%s166] sm:$0xff]
      %v175 = vld [vmem:[%s166 + $0x8] sm:$0xff]
      %v176 = vld [vmem:[%s166 + $0x10] sm:$0xff]
      %v177 = vld [vmem:[%s166 + $0x18] sm:$0xff]
      %v178 = vld [vmem:[%s166 + $0x20] sm:$0xff]
      %v179 = vld [vmem:[%s166 + $0x28] sm:$0xff]
      %v180 = vld [vmem:[%s166 + $0x30] sm:$0xff]
      %v181 = vld [vmem:[%s166 + $0x38] sm:$0xff]
      %v182 = vld [vmem:[%s166 + $0x40] sm:$0xff]
      %v183 = vld [vmem:[%s166 + $0x48] sm:$0xff]
      %v184 = vld [vmem:[%s166 + $0x50] sm:$0xff]
      %v185 = vld [vmem:[%s166 + $0x58] sm:$0xff]
      %v186 = vld [vmem:[%s166 + $0x60] sm:$0xff]
      %v187 = vld [vmem:[%s166 + $0x68] sm:$0xff]
      %v188 = vld [vmem:[%s166 + $0x70] sm:$0xff]
      %v189 = vld [vmem:[%s166 + $0x78] sm:$0xff]
      %v190 = vld [vmem:[%s166 + $0x80] sm:$0xff]
      %v191 = vld [vmem:[%s166 + $0x88] sm:$0xff]
      %v192 = vld [vmem:[%s166 + $0x90] sm:$0xff]
      %v193 = vld [vmem:[%s166 + $0x98] sm:$0xff]
      %v194 = vld [vmem:[%s166 + $0xa0] sm:$0xff]
      %v195 = vld [vmem:[%s166 + $0xa8] sm:$0xff]
      %v196 = vld [vmem:[%s166 + $0xb0] sm:$0xff]
      %v197 = vld [vmem:[%s166 + $0xb8] sm:$0xff]
      %v198 = vld [vmem:[%s166 + $0xc0] sm:$0xff]
      %v199 = vld [vmem:[%s166 + $0xc8] sm:$0xff]
      %v200 = vld [vmem:[%s166 + $0xd0] sm:$0xff]
      %v201 = vld [vmem:[%s166 + $0xd8] sm:$0xff]
      %v202 = vld [vmem:[%s166 + $0xe0] sm:$0xff]
      %v203 = vld [vmem:[%s166 + $0xe8] sm:$0xff]
      %v204 = vld [vmem:[%s166 + $0xf0] sm:$0xff]
      %v205 = vld [vmem:[%s166 + $0xf8] sm:$0xff]
      %v206 = vld [vmem:[%s166 + $0x100] sm:$0xff]
      %v207 = vld [vmem:[%s166 + $0x108] sm:$0xff]
      %v208 = vld [vmem:[%s166 + $0x110] sm:$0xff]
      %v209 = vld [vmem:[%s166 + $0x118] sm:$0xff]
      %v210 = vld [vmem:[%s166 + $0x120] sm:$0xff]
      %v211 = vld [vmem:[%s166 + $0x128] sm:$0xff]
      %v212 = vld [vmem:[%s166 + $0x130] sm:$0xff]
      %v213 = vld [vmem:[%s166 + $0x138] sm:$0xff]
      %v214 = vld [vmem:[%s166 + $0x140] sm:$0xff]
      %v215 = vld [vmem:[%s166 + $0x148] sm:$0xff]
      %v216 = vld [vmem:[%s166 + $0x150] sm:$0xff]
      %v217 = vld [vmem:[%s166 + $0x158] sm:$0xff]
      %v218 = vld [vmem:[%s166 + $0x160] sm:$0xff]
      %v219 = vld [vmem:[%s166 + $0x168] sm:$0xff]
      %v220 = vld [vmem:[%s166 + $0x170] sm:$0xff]
      %v221 = vld [vmem:[%s166 + $0x178] sm:$0xff]
      %v222 = vld [vmem:[%s166 + $0x180] sm:$0xff]
      %v223 = vld [vmem:[%s166 + $0x188] sm:$0xff]
      %v224 = vld [vmem:[%s166 + $0x190] sm:$0xff]
      %v225 = vld [vmem:[%s166 + $0x198] sm:$0xff]
      %v226 = vld [vmem:[%s166 + $0x1a0] sm:$0xff]
      %v227 = vld [vmem:[%s166 + $0x1a8] sm:$0xff]
      %v228 = vld [vmem:[%s166 + $0x1b0] sm:$0xff]
      %v229 = vld [vmem:[%s166 + $0x1b8] sm:$0xff]
      %v230 = vld [vmem:[%s166 + $0x1c0] sm:$0xff]
      %v231 = vld [vmem:[%s166 + $0x1c8] sm:$0xff]
      %v232 = vld [vmem:[%s166 + $0x1d0] sm:$0xff]
      %v233 = vld [vmem:[%s166 + $0x1d8] sm:$0xff]
      %v234 = vld [vmem:[%s166 + $0x1e0] sm:$0xff]
      %v235 = vld [vmem:[%s166 + $0x1e8] sm:$0xff]
      %v236 = vld [vmem:[%s166 + $0x1f0] sm:$0xff]
      %v237 = vld [vmem:[%s166 + $0x1f8] sm:$0xff]
      %v238 = vld [vmem:[%s166 + $0x200] sm:$0xff]
      %v239 = vld [vmem:[%s166 + $0x208] sm:$0xff]
      %v240 = vld [vmem:[%s166 + $0x210] sm:$0xff]
      %v241 = vld [vmem:[%s166 + $0x218] sm:$0xff]
      %v242 = vld [vmem:[%s166 + $0x220] sm:$0xff]
      %v243 = vld [vmem:[%s166 + $0x228] sm:$0xff]
      %v244 = vld [vmem:[%s166 + $0x230] sm:$0xff]
      %v245 = vld [vmem:[%s166 + $0x238] sm:$0xff]
      %v246 = vld [vmem:[%s166 + $0x240] sm:$0xff]
      %v247 = vld [vmem:[%s166 + $0x248] sm:$0xff]
      %v248 = vld [vmem:[%s166 + $0x250] sm:$0xff]
      %v249 = vld [vmem:[%s166 + $0x258] sm:$0xff]
      %v250 = vld [vmem:[%s166 + $0x260] sm:$0xff]
      %v251 = vld [vmem:[%s166 + $0x268] sm:$0xff]
      %v252 = vld [vmem:[%s166 + $0x270] sm:$0xff]
      %v253 = vld [vmem:[%s166 + $0x278] sm:$0xff]
      %v254 = vld [vmem:[%s166 + $0x280] sm:$0xff]
      %v255 = vld [vmem:[%s166 + $0x288] sm:$0xff]
      %v256 = vld [vmem:[%s166 + $0x290] sm:$0xff]
      %v257 = vld [vmem:[%s166 + $0x298] sm:$0xff]
      %v258 = vld [vmem:[%s166 + $0x2a0] sm:$0xff]
      %v259 = vld [vmem:[%s166 + $0x2a8] sm:$0xff]
      %v260 = vld [vmem:[%s166 + $0x2b0] sm:$0xff]
      %v261 = vld [vmem:[%s166 + $0x2b8] sm:$0xff]
      %v262 = vld [vmem:[%s166 + $0x2c0] sm:$0xff]
      %v263 = vld [vmem:[%s166 + $0x2c8] sm:$0xff]
      %v264 = vld [vmem:[%s166 + $0x2d0] sm:$0xff]
      %v265 = vld [vmem:[%s166 + $0x2d8] sm:$0xff]
      %v266 = vld [vmem:[%s166 + $0x2e0] sm:$0xff]
      %v267 = vld [vmem:[%s166 + $0x2e8] sm:$0xff]
      %v268 = vld [vmem:[%s166 + $0x2f0] sm:$0xff]
      %v269 = vld [vmem:[%s166 + $0x2f8] sm:$0xff]
      %v270 = vld [vmem:[%s166 + $0x300] sm:$0xff]
      %v271 = vld [vmem:[%s166 + $0x308] sm:$0xff]
      %v272 = vld [vmem:[%s166 + $0x310] sm:$0xff]
      %v273 = vld [vmem:[%s166 + $0x318] sm:$0xff]
      %v274 = vld [vmem:[%s166 + $0x320] sm:$0xff]
      %v275 = vld [vmem:[%s166 + $0x328] sm:$0xff]
      %v276 = vld [vmem:[%s166 + $0x330] sm:$0xff]
      %v277 = vld [vmem:[%s166 + $0x338] sm:$0xff]
      %v278 = vld [vmem:[%s166 + $0x340] sm:$0xff]
      %v279 = vld [vmem:[%s166 + $0x348] sm:$0xff]
      %v280 = vld [vmem:[%s166 + $0x350] sm:$0xff]
      %v281 = vld [vmem:[%s166 + $0x358] sm:$0xff]
      %v282 = vld [vmem:[%s166 + $0x360] sm:$0xff]
      %v283 = vld [vmem:[%s166 + $0x368] sm:$0xff]
      %v284 = vld [vmem:[%s166 + $0x370] sm:$0xff]
      %v285 = vld [vmem:[%s166 + $0x378] sm:$0xff]
      %v286 = vld [vmem:[%s166 + $0x380] sm:$0xff]
      %v287 = vld [vmem:[%s166 + $0x388] sm:$0xff]
      %v288 = vld [vmem:[%s166 + $0x390] sm:$0xff]
      %v289 = vld [vmem:[%s166 + $0x398] sm:$0xff]
      %v290 = vld [vmem:[%s166 + $0x3a0] sm:$0xff]
      %v291 = vld [vmem:[%s166 + $0x3a8] sm:$0xff]
      %v292 = vld [vmem:[%s166 + $0x3b0] sm:$0xff]
      %v293 = vld [vmem:[%s166 + $0x3b8] sm:$0xff]
      %v294 = vld [vmem:[%s166 + $0x3c0] sm:$0xff]
      %v295 = vld [vmem:[%s166 + $0x3c8] sm:$0xff]
      %v296 = vld [vmem:[%s166 + $0x3d0] sm:$0xff]
      %v297 = vld [vmem:[%s166 + $0x3d8] sm:$0xff]
      %v298 = vld [vmem:[%s166 + $0x3e0] sm:$0xff]
      %v299 = vld [vmem:[%s166 + $0x3e8] sm:$0xff]
      %v300 = vld [vmem:[%s166 + $0x3f0] sm:$0xff]
      %v301 = vld [vmem:[%s166 + $0x3f8] sm:$0xff]
      %v302 = vld [vmem:[%s1] sm:$0x1]
      %v304 = vperm.slane %v302, 0
      %v306 = vmul.f32 %v174, %v304
      %v307 = vmul.f32 %v175, %v304
      %v308 = vmul.f32 %v176, %v304
      %v309 = vmul.f32 %v177, %v304
      %v310 = vmul.f32 %v178, %v304
      %v311 = vmul.f32 %v179, %v304
      %v312 = vmul.f32 %v180, %v304
      %v313 = vmul.f32 %v181, %v304
      %v314 = vmul.f32 %v182, %v304
      %v315 = vmul.f32 %v183, %v304
      %v316 = vmul.f32 %v184, %v304
      %v317 = vmul.f32 %v185, %v304
      %v318 = vmul.f32 %v186, %v304
      %v319 = vmul.f32 %v187, %v304
      %v320 = vmul.f32 %v188, %v304
      %v321 = vmul.f32 %v189, %v304
      %v322 = vmul.f32 %v190, %v304
      %v323 = vmul.f32 %v191, %v304
      %v324 = vmul.f32 %v192, %v304
      %v325 = vmul.f32 %v193, %v304
      %v326 = vmul.f32 %v194, %v304
      %v327 = vmul.f32 %v195, %v304
      %v328 = vmul.f32 %v196, %v304
      %v329 = vmul.f32 %v197, %v304
      %v330 = vmul.f32 %v198, %v304
      %v331 = vmul.f32 %v199, %v304
      %v332 = vmul.f32 %v200, %v304
      %v333 = vmul.f32 %v201, %v304
      %v334 = vmul.f32 %v202, %v304
      %v335 = vmul.f32 %v203, %v304
      %v336 = vmul.f32 %v204, %v304
      %v337 = vmul.f32 %v205, %v304
      %v338 = vmul.f32 %v206, %v304
      %v339 = vmul.f32 %v207, %v304
      %v340 = vmul.f32 %v208, %v304
      %v341 = vmul.f32 %v209, %v304
      %v342 = vmul.f32 %v210, %v304
      %v343 = vmul.f32 %v211, %v304
      %v344 = vmul.f32 %v212, %v304
      %v345 = vmul.f32 %v213, %v304
      %v346 = vmul.f32 %v214, %v304
      %v347 = vmul.f32 %v215, %v304
      %v348 = vmul.f32 %v216, %v304
      %v349 = vmul.f32 %v217, %v304
      %v350 = vmul.f32 %v218, %v304
      %v351 = vmul.f32 %v219, %v304
      %v352 = vmul.f32 %v220, %v304
      %v353 = vmul.f32 %v221, %v304
      %v354 = vmul.f32 %v222, %v304
      %v355 = vmul.f32 %v223, %v304
      %v356 = vmul.f32 %v224, %v304
      %v357 = vmul.f32 %v225, %v304
      %v358 = vmul.f32 %v226, %v304
      %v359 = vmul.f32 %v227, %v304
      %v360 = vmul.f32 %v228, %v304
      %v361 = vmul.f32 %v229, %v304
      %v362 = vmul.f32 %v230, %v304
      %v363 = vmul.f32 %v231, %v304
      %v364 = vmul.f32 %v232, %v304
      %v365 = vmul.f32 %v233, %v304
      %v366 = vmul.f32 %v234, %v304
      %v367 = vmul.f32 %v235, %v304
      %v368 = vmul.f32 %v236, %v304
      %v369 = vmul.f32 %v237, %v304
      %v370 = vmul.f32 %v238, %v304
      %v371 = vmul.f32 %v239, %v304
      %v372 = vmul.f32 %v240, %v304
      %v373 = vmul.f32 %v241, %v304
      %v374 = vmul.f32 %v242, %v304
      %v375 = vmul.f32 %v243, %v304
      %v376 = vmul.f32 %v244, %v304
      %v377 = vmul.f32 %v245, %v304
      %v378 = vmul.f32 %v246, %v304
      %v379 = vmul.f32 %v247, %v304
      %v380 = vmul.f32 %v248, %v304
      %v381 = vmul.f32 %v249, %v304
      %v382 = vmul.f32 %v250, %v304
      %v383 = vmul.f32 %v251, %v304
      %v384 = vmul.f32 %v252, %v304
      %v385 = vmul.f32 %v253, %v304
      %v386 = vmul.f32 %v254, %v304
      %v387 = vmul.f32 %v255, %v304
      %v388 = vmul.f32 %v256, %v304
      %v389 = vmul.f32 %v257, %v304
      %v390 = vmul.f32 %v258, %v304
      %v391 = vmul.f32 %v259, %v304
      %v392 = vmul.f32 %v260, %v304
      %v393 = vmul.f32 %v261, %v304
      %v394 = vmul.f32 %v262, %v304
      %v395 = vmul.f32 %v263, %v304
      %v396 = vmul.f32 %v264, %v304
      %v397 = vmul.f32 %v265, %v304
      %v398 = vmul.f32 %v266, %v304
      %v399 = vmul.f32 %v267, %v304
      %v400 = vmul.f32 %v268, %v304
      %v401 = vmul.f32 %v269, %v304
      %v402 = vmul.f32 %v270, %v304
      %v403 = vmul.f32 %v271, %v304
      %v404 = vmul.f32 %v272, %v304
      %v405 = vmul.f32 %v273, %v304
      %v406 = vmul.f32 %v274, %v304
      %v407 = vmul.f32 %v275, %v304
      %v408 = vmul.f32 %v276, %v304
      %v409 = vmul.f32 %v277, %v304
      %v410 = vmul.f32 %v278, %v304
      %v411 = vmul.f32 %v279, %v304
      %v412 = vmul.f32 %v280, %v304
      %v413 = vmul.f32 %v281, %v304
      %v414 = vmul.f32 %v282, %v304
      %v415 = vmul.f32 %v283, %v304
      %v416 = vmul.f32 %v284, %v304
      %v417 = vmul.f32 %v285, %v304
      %v418 = vmul.f32 %v286, %v304
      %v419 = vmul.f32 %v287, %v304
      %v420 = vmul.f32 %v288, %v304
      %v421 = vmul.f32 %v289, %v304
      %v422 = vmul.f32 %v290, %v304
      %v423 = vmul.f32 %v291, %v304
      %v424 = vmul.f32 %v292, %v304
      %v425 = vmul.f32 %v293, %v304
      %v426 = vmul.f32 %v294, %v304
      %v427 = vmul.f32 %v295, %v304
      %v428 = vmul.f32 %v296, %v304
      %v429 = vmul.f32 %v297, %v304
      %v430 = vmul.f32 %v298, %v304
      %v431 = vmul.f32 %v299, %v304
      %v432 = vmul.f32 %v300, %v304
      %v433 = vmul.f32 %v301, %v304
      %v434 = vld [vmem:[%s2] sm:$0x1]
      %v436 = vperm.slane %v434, 0
      %v438 = vadd.f32 %v306, %v436
      %v439 = vadd.f32 %v307, %v436
      %v440 = vadd.f32 %v308, %v436
      %v441 = vadd.f32 %v309, %v436
      %v442 = vadd.f32 %v310, %v436
      %v443 = vadd.f32 %v311, %v436
      %v444 = vadd.f32 %v312, %v436
      %v445 = vadd.f32 %v313, %v436
      %v446 = vadd.f32 %v314, %v436
      %v447 = vadd.f32 %v315, %v436
      %v448 = vadd.f32 %v316, %v436
      %v449 = vadd.f32 %v317, %v436
      %v450 = vadd.f32 %v318, %v436
      %v451 = vadd.f32 %v319, %v436
      %v452 = vadd.f32 %v320, %v436
      %v453 = vadd.f32 %v321, %v436
      %v454 = vadd.f32 %v322, %v436
      %v455 = vadd.f32 %v323, %v436
      %v456 = vadd.f32 %v324, %v436
      %v457 = vadd.f32 %v325, %v436
      %v458 = vadd.f32 %v326, %v436
      %v459 = vadd.f32 %v327, %v436
      %v460 = vadd.f32 %v328, %v436
      %v461 = vadd.f32 %v329, %v436
      %v462 = vadd.f32 %v330, %v436
      %v463 = vadd.f32 %v331, %v436
      %v464 = vadd.f32 %v332, %v436
      %v465 = vadd.f32 %v333, %v436
      %v466 = vadd.f32 %v334, %v436
      %v467 = vadd.f32 %v335, %v436
      %v468 = vadd.f32 %v336, %v436
      %v469 = vadd.f32 %v337, %v436
      %v470 = vadd.f32 %v338, %v436
      %v471 = vadd.f32 %v339, %v436
      %v472 = vadd.f32 %v340, %v436
      %v473 = vadd.f32 %v341, %v436
      %v474 = vadd.f32 %v342, %v436
      %v475 = vadd.f32 %v343, %v436
      %v476 = vadd.f32 %v344, %v436
      %v477 = vadd.f32 %v345, %v436
      %v478 = vadd.f32 %v346, %v436
      %v479 = vadd.f32 %v347, %v436
      %v480 = vadd.f32 %v348, %v436
      %v481 = vadd.f32 %v349, %v436
      %v482 = vadd.f32 %v350, %v436
      %v483 = vadd.f32 %v351, %v436
      %v484 = vadd.f32 %v352, %v436
      %v485 = vadd.f32 %v353, %v436
      %v486 = vadd.f32 %v354, %v436
      %v487 = vadd.f32 %v355, %v436
      %v488 = vadd.f32 %v356, %v436
      %v489 = vadd.f32 %v357, %v436
      %v490 = vadd.f32 %v358, %v436
      %v491 = vadd.f32 %v359, %v436
      %v492 = vadd.f32 %v360, %v436
      %v493 = vadd.f32 %v361, %v436
      %v494 = vadd.f32 %v362, %v436
      %v495 = vadd.f32 %v363, %v436
      %v496 = vadd.f32 %v364, %v436
      %v497 = vadd.f32 %v365, %v436
      %v498 = vadd.f32 %v366, %v436
      %v499 = vadd.f32 %v367, %v436
      %v500 = vadd.f32 %v368, %v436
      %v501 = vadd.f32 %v369, %v436
      %v502 = vadd.f32 %v370, %v436
      %v503 = vadd.f32 %v371, %v436
      %v504 = vadd.f32 %v372, %v436
      %v505 = vadd.f32 %v373, %v436
      %v506 = vadd.f32 %v374, %v436
      %v507 = vadd.f32 %v375, %v436
      %v508 = vadd.f32 %v376, %v436
      %v509 = vadd.f32 %v377, %v436
      %v510 = vadd.f32 %v378, %v436
      %v511 = vadd.f32 %v379, %v436
      %v512 = vadd.f32 %v380, %v436
      %v513 = vadd.f32 %v381, %v436
      %v514 = vadd.f32 %v382, %v436
      %v515 = vadd.f32 %v383, %v436
      %v516 = vadd.f32 %v384, %v436
      %v517 = vadd.f32 %v385, %v436
      %v518 = vadd.f32 %v386, %v436
      %v519 = vadd.f32 %v387, %v436
      %v520 = vadd.f32 %v388, %v436
      %v521 = vadd.f32 %v389, %v436
      %v522 = vadd.f32 %v390, %v436
      %v523 = vadd.f32 %v391, %v436
      %v524 = vadd.f32 %v392, %v436
      %v525 = vadd.f32 %v393, %v436
      %v526 = vadd.f32 %v394, %v436
      %v527 = vadd.f32 %v395, %v436
      %v528 = vadd.f32 %v396, %v436
      %v529 = vadd.f32 %v397, %v436
      %v530 = vadd.f32 %v398, %v436
      %v531 = vadd.f32 %v399, %v436
      %v532 = vadd.f32 %v400, %v436
      %v533 = vadd.f32 %v401, %v436
      %v534 = vadd.f32 %v402, %v436
      %v535 = vadd.f32 %v403, %v436
      %v536 = vadd.f32 %v404, %v436
      %v537 = vadd.f32 %v405, %v436
      %v538 = vadd.f32 %v406, %v436
      %v539 = vadd.f32 %v407, %v436
      %v540 = vadd.f32 %v408, %v436
      %v541 = vadd.f32 %v409, %v436
      %v542 = vadd.f32 %v410, %v436
      %v543 = vadd.f32 %v411, %v436
      %v544 = vadd.f32 %v412, %v436
      %v545 = vadd.f32 %v413, %v436
      %v546 = vadd.f32 %v414, %v436
      %v547 = vadd.f32 %v415, %v436
      %v548 = vadd.f32 %v416, %v436
      %v549 = vadd.f32 %v417, %v436
      %v550 = vadd.f32 %v418, %v436
      %v551 = vadd.f32 %v419, %v436
      %v552 = vadd.f32 %v420, %v436
      %v553 = vadd.f32 %v421, %v436
      %v554 = vadd.f32 %v422, %v436
      %v555 = vadd.f32 %v423, %v436
      %v556 = vadd.f32 %v424, %v436
      %v557 = vadd.f32 %v425, %v436
      %v558 = vadd.f32 %v426, %v436
      %v559 = vadd.f32 %v427, %v436
      %v560 = vadd.f32 %v428, %v436
      %v561 = vadd.f32 %v429, %v436
      %v562 = vadd.f32 %v430, %v436
      %v563 = vadd.f32 %v431, %v436
      %v564 = vadd.f32 %v432, %v436
      %v565 = vadd.f32 %v433, %v436
      %vm566 = vcmp.ge.f32.partialorder %v438, 0.0
      %vm567 = vcmp.ge.f32.partialorder %v439, 0.0
      %vm568 = vcmp.ge.f32.partialorder %v440, 0.0
      %vm569 = vcmp.ge.f32.partialorder %v441, 0.0
      %vm570 = vcmp.ge.f32.partialorder %v442, 0.0
      %vm571 = vcmp.ge.f32.partialorder %v443, 0.0
      %vm572 = vcmp.ge.f32.partialorder %v444, 0.0
      %vm573 = vcmp.ge.f32.partialorder %v445, 0.0
      %vm574 = vcmp.ge.f32.partialorder %v446, 0.0
      %vm575 = vcmp.ge.f32.partialorder %v447, 0.0
      %vm576 = vcmp.ge.f32.partialorder %v448, 0.0
      %vm577 = vcmp.ge.f32.partialorder %v449, 0.0
      %vm578 = vcmp.ge.f32.partialorder %v450, 0.0
      %vm579 = vcmp.ge.f32.partialorder %v451, 0.0
      %vm580 = vcmp.ge.f32.partialorder %v452, 0.0
      %vm581 = vcmp.ge.f32.partialorder %v453, 0.0
      %vm582 = vcmp.ge.f32.partialorder %v454, 0.0
      %vm583 = vcmp.ge.f32.partialorder %v455, 0.0
      %vm584 = vcmp.ge.f32.partialorder %v456, 0.0
      %vm585 = vcmp.ge.f32.partialorder %v457, 0.0
      %vm586 = vcmp.ge.f32.partialorder %v458, 0.0
      %vm587 = vcmp.ge.f32.partialorder %v459, 0.0
      %vm588 = vcmp.ge.f32.partialorder %v460, 0.0
      %vm589 = vcmp.ge.f32.partialorder %v461, 0.0
      %vm590 = vcmp.ge.f32.partialorder %v462, 0.0
      %vm591 = vcmp.ge.f32.partialorder %v463, 0.0
      %vm592 = vcmp.ge.f32.partialorder %v464, 0.0
      %vm593 = vcmp.ge.f32.partialorder %v465, 0.0
      %vm594 = vcmp.ge.f32.partialorder %v466, 0.0
      %vm595 = vcmp.ge.f32.partialorder %v467, 0.0
      %vm596 = vcmp.ge.f32.partialorder %v468, 0.0
      %vm597 = vcmp.ge.f32.partialorder %v469, 0.0
      %vm598 = vcmp.ge.f32.partialorder %v470, 0.0
      %vm599 = vcmp.ge.f32.partialorder %v471, 0.0
      %vm600 = vcmp.ge.f32.partialorder %v472, 0.0
      %vm601 = vcmp.ge.f32.partialorder %v473, 0.0
      %vm602 = vcmp.ge.f32.partialorder %v474, 0.0
      %vm603 = vcmp.ge.f32.partialorder %v475, 0.0
      %vm604 = vcmp.ge.f32.partialorder %v476, 0.0
      %vm605 = vcmp.ge.f32.partialorder %v477, 0.0
      %vm606 = vcmp.ge.f32.partialorder %v478, 0.0
      %vm607 = vcmp.ge.f32.partialorder %v479, 0.0
      %vm608 = vcmp.ge.f32.partialorder %v480, 0.0
      %vm609 = vcmp.ge.f32.partialorder %v481, 0.0
      %vm610 = vcmp.ge.f32.partialorder %v482, 0.0
      %vm611 = vcmp.ge.f32.partialorder %v483, 0.0
      %vm612 = vcmp.ge.f32.partialorder %v484, 0.0
      %vm613 = vcmp.ge.f32.partialorder %v485, 0.0
      %vm614 = vcmp.ge.f32.partialorder %v486, 0.0
      %vm615 = vcmp.ge.f32.partialorder %v487, 0.0
      %vm616 = vcmp.ge.f32.partialorder %v488, 0.0
      %vm617 = vcmp.ge.f32.partialorder %v489, 0.0
      %vm618 = vcmp.ge.f32.partialorder %v490, 0.0
      %vm619 = vcmp.ge.f32.partialorder %v491, 0.0
      %vm620 = vcmp.ge.f32.partialorder %v492, 0.0
      %vm621 = vcmp.ge.f32.partialorder %v493, 0.0
      %vm622 = vcmp.ge.f32.partialorder %v494, 0.0
      %vm623 = vcmp.ge.f32.partialorder %v495, 0.0
      %vm624 = vcmp.ge.f32.partialorder %v496, 0.0
      %vm625 = vcmp.ge.f32.partialorder %v497, 0.0
      %vm626 = vcmp.ge.f32.partialorder %v498, 0.0
      %vm627 = vcmp.ge.f32.partialorder %v499, 0.0
      %vm628 = vcmp.ge.f32.partialorder %v500, 0.0
      %vm629 = vcmp.ge.f32.partialorder %v501, 0.0
      %vm630 = vcmp.ge.f32.partialorder %v502, 0.0
      %vm631 = vcmp.ge.f32.partialorder %v503, 0.0
      %vm632 = vcmp.ge.f32.partialorder %v504, 0.0
      %vm633 = vcmp.ge.f32.partialorder %v505, 0.0
      %vm634 = vcmp.ge.f32.partialorder %v506, 0.0
      %vm635 = vcmp.ge.f32.partialorder %v507, 0.0
      %vm636 = vcmp.ge.f32.partialorder %v508, 0.0
      %vm637 = vcmp.ge.f32.partialorder %v509, 0.0
      %vm638 = vcmp.ge.f32.partialorder %v510, 0.0
      %vm639 = vcmp.ge.f32.partialorder %v511, 0.0
      %vm640 = vcmp.ge.f32.partialorder %v512, 0.0
      %vm641 = vcmp.ge.f32.partialorder %v513, 0.0
      %vm642 = vcmp.ge.f32.partialorder %v514, 0.0
      %vm643 = vcmp.ge.f32.partialorder %v515, 0.0
      %vm644 = vcmp.ge.f32.partialorder %v516, 0.0
      %vm645 = vcmp.ge.f32.partialorder %v517, 0.0
      %vm646 = vcmp.ge.f32.partialorder %v518, 0.0
      %vm647 = vcmp.ge.f32.partialorder %v519, 0.0
      %vm648 = vcmp.ge.f32.partialorder %v520, 0.0
      %vm649 = vcmp.ge.f32.partialorder %v521, 0.0
      %vm650 = vcmp.ge.f32.partialorder %v522, 0.0
      %vm651 = vcmp.ge.f32.partialorder %v523, 0.0
      %vm652 = vcmp.ge.f32.partialorder %v524, 0.0
      %vm653 = vcmp.ge.f32.partialorder %v525, 0.0
      %vm654 = vcmp.ge.f32.partialorder %v526, 0.0
      %vm655 = vcmp.ge.f32.partialorder %v527, 0.0
      %vm656 = vcmp.ge.f32.partialorder %v528, 0.0
      %vm657 = vcmp.ge.f32.partialorder %v529, 0.0
      %vm658 = vcmp.ge.f32.partialorder %v530, 0.0
      %vm659 = vcmp.ge.f32.partialorder %v531, 0.0
      %vm660 = vcmp.ge.f32.partialorder %v532, 0.0
      %vm661 = vcmp.ge.f32.partialorder %v533, 0.0
      %vm662 = vcmp.ge.f32.partialorder %v534, 0.0
      %vm663 = vcmp.ge.f32.partialorder %v535, 0.0
      %vm664 = vcmp.ge.f32.partialorder %v536, 0.0
      %vm665 = vcmp.ge.f32.partialorder %v537, 0.0
      %vm666 = vcmp.ge.f32.partialorder %v538, 0.0
      %vm667 = vcmp.ge.f32.partialorder %v539, 0.0
      %vm668 = vcmp.ge.f32.partialorder %v540, 0.0
      %vm669 = vcmp.ge.f32.partialorder %v541, 0.0
      %vm670 = vcmp.ge.f32.partialorder %v542, 0.0
      %vm671 = vcmp.ge.f32.partialorder %v543, 0.0
      %vm672 = vcmp.ge.f32.partialorder %v544, 0.0
      %vm673 = vcmp.ge.f32.partialorder %v545, 0.0
      %vm674 = vcmp.ge.f32.partialorder %v546, 0.0
      %vm675 = vcmp.ge.f32.partialorder %v547, 0.0
      %vm676 = vcmp.ge.f32.partialorder %v548, 0.0
      %vm677 = vcmp.ge.f32.partialorder %v549, 0.0
      %vm678 = vcmp.ge.f32.partialorder %v550, 0.0
      %vm679 = vcmp.ge.f32.partialorder %v551, 0.0
      %vm680 = vcmp.ge.f32.partialorder %v552, 0.0
      %vm681 = vcmp.ge.f32.partialorder %v553, 0.0
      %vm682 = vcmp.ge.f32.partialorder %v554, 0.0
      %vm683 = vcmp.ge.f32.partialorder %v555, 0.0
      %vm684 = vcmp.ge.f32.partialorder %v556, 0.0
      %vm685 = vcmp.ge.f32.partialorder %v557, 0.0
      %vm686 = vcmp.ge.f32.partialorder %v558, 0.0
      %vm687 = vcmp.ge.f32.partialorder %v559, 0.0
      %vm688 = vcmp.ge.f32.partialorder %v560, 0.0
      %vm689 = vcmp.ge.f32.partialorder %v561, 0.0
      %vm690 = vcmp.ge.f32.partialorder %v562, 0.0
      %vm691 = vcmp.ge.f32.partialorder %v563, 0.0
      %vm692 = vcmp.ge.f32.partialorder %v564, 0.0
      %vm693 = vcmp.ge.f32.partialorder %v565, 0.0
      %v694 = vmul.f32 %v438, 0.1
      %v695 = vmul.f32 %v439, 0.1
      %v696 = vmul.f32 %v440, 0.1
      %v697 = vmul.f32 %v441, 0.1
      %v698 = vmul.f32 %v442, 0.1
      %v699 = vmul.f32 %v443, 0.1
      %v700 = vmul.f32 %v444, 0.1
      %v701 = vmul.f32 %v445, 0.1
      %v702 = vmul.f32 %v446, 0.1
      %v703 = vmul.f32 %v447, 0.1
      %v704 = vmul.f32 %v448, 0.1
      %v705 = vmul.f32 %v449, 0.1
      %v706 = vmul.f32 %v450, 0.1
      %v707 = vmul.f32 %v451, 0.1
      %v708 = vmul.f32 %v452, 0.1
      %v709 = vmul.f32 %v453, 0.1
      %v710 = vmul.f32 %v454, 0.1
      %v711 = vmul.f32 %v455, 0.1
      %v712 = vmul.f32 %v456, 0.1
      %v713 = vmul.f32 %v457, 0.1
      %v714 = vmul.f32 %v458, 0.1
      %v715 = vmul.f32 %v459, 0.1
      %v716 = vmul.f32 %v460, 0.1
      %v717 = vmul.f32 %v461, 0.1
      %v718 = vmul.f32 %v462, 0.1
      %v719 = vmul.f32 %v463, 0.1
      %v720 = vmul.f32 %v464, 0.1
      %v721 = vmul.f32 %v465, 0.1
      %v722 = vmul.f32 %v466, 0.1
      %v723 = vmul.f32 %v467, 0.1
      %v724 = vmul.f32 %v468, 0.1
      %v725 = vmul.f32 %v469, 0.1
      %v726 = vmul.f32 %v470, 0.1
      %v727 = vmul.f32 %v471, 0.1
      %v728 = vmul.f32 %v472, 0.1
      %v729 = vmul.f32 %v473, 0.1
      %v730 = vmul.f32 %v474, 0.1
      %v731 = vmul.f32 %v475, 0.1
      %v732 = vmul.f32 %v476, 0.1
      %v733 = vmul.f32 %v477, 0.1
      %v734 = vmul.f32 %v478, 0.1
      %v735 = vmul.f32 %v479, 0.1
      %v736 = vmul.f32 %v480, 0.1
      %v737 = vmul.f32 %v481, 0.1
      %v738 = vmul.f32 %v482, 0.1
      %v739 = vmul.f32 %v483, 0.1
      %v740 = vmul.f32 %v484, 0.1
      %v741 = vmul.f32 %v485, 0.1
      %v742 = vmul.f32 %v486, 0.1
      %v743 = vmul.f32 %v487, 0.1
      %v744 = vmul.f32 %v488, 0.1
      %v745 = vmul.f32 %v489, 0.1
      %v746 = vmul.f32 %v490, 0.1
      %v747 = vmul.f32 %v491, 0.1
      %v748 = vmul.f32 %v492, 0.1
      %v749 = vmul.f32 %v493, 0.1
      %v750 = vmul.f32 %v494, 0.1
      %v751 = vmul.f32 %v495, 0.1
      %v752 = vmul.f32 %v496, 0.1
      %v753 = vmul.f32 %v497, 0.1
      %v754 = vmul.f32 %v498, 0.1
      %v755 = vmul.f32 %v499, 0.1
      %v756 = vmul.f32 %v500, 0.1
      %v757 = vmul.f32 %v501, 0.1
      %v758 = vmul.f32 %v502, 0.1
      %v759 = vmul.f32 %v503, 0.1
      %v760 = vmul.f32 %v504, 0.1
      %v761 = vmul.f32 %v505, 0.1
      %v762 = vmul.f32 %v506, 0.1
      %v763 = vmul.f32 %v507, 0.1
      %v764 = vmul.f32 %v508, 0.1
      %v765 = vmul.f32 %v509, 0.1
      %v766 = vmul.f32 %v510, 0.1
      %v767 = vmul.f32 %v511, 0.1
      %v768 = vmul.f32 %v512, 0.1
      %v769 = vmul.f32 %v513, 0.1
      %v770 = vmul.f32 %v514, 0.1
      %v771 = vmul.f32 %v515, 0.1
      %v772 = vmul.f32 %v516, 0.1
      %v773 = vmul.f32 %v517, 0.1
      %v774 = vmul.f32 %v518, 0.1
      %v775 = vmul.f32 %v519, 0.1
      %v776 = vmul.f32 %v520, 0.1
      %v777 = vmul.f32 %v521, 0.1
      %v778 = vmul.f32 %v522, 0.1
      %v779 = vmul.f32 %v523, 0.1
      %v780 = vmul.f32 %v524, 0.1
      %v781 = vmul.f32 %v525, 0.1
      %v782 = vmul.f32 %v526, 0.1
      %v783 = vmul.f32 %v527, 0.1
      %v784 = vmul.f32 %v528, 0.1
      %v785 = vmul.f32 %v529, 0.1
      %v786 = vmul.f32 %v530, 0.1
      %v787 = vmul.f32 %v531, 0.1
      %v788 = vmul.f32 %v532, 0.1
      %v789 = vmul.f32 %v533, 0.1
      %v790 = vmul.f32 %v534, 0.1
      %v791 = vmul.f32 %v535, 0.1
      %v792 = vmul.f32 %v536, 0.1
      %v793 = vmul.f32 %v537, 0.1
      %v794 = vmul.f32 %v538, 0.1
      %v795 = vmul.f32 %v539, 0.1
      %v796 = vmul.f32 %v540, 0.1
      %v797 = vmul.f32 %v541, 0.1
      %v798 = vmul.f32 %v542, 0.1
      %v799 = vmul.f32 %v543, 0.1
      %v800 = vmul.f32 %v544, 0.1
      %v801 = vmul.f32 %v545, 0.1
      %v802 = vmul.f32 %v546, 0.1
      %v803 = vmul.f32 %v547, 0.1
      %v804 = vmul.f32 %v548, 0.1
      %v805 = vmul.f32 %v549, 0.1
      %v806 = vmul.f32 %v550, 0.1
      %v807 = vmul.f32 %v551, 0.1
      %v808 = vmul.f32 %v552, 0.1
      %v809 = vmul.f32 %v553, 0.1
      %v810 = vmul.f32 %v554, 0.1
      %v811 = vmul.f32 %v555, 0.1
      %v812 = vmul.f32 %v556, 0.1
      %v813 = vmul.f32 %v557, 0.1
      %v814 = vmul.f32 %v558, 0.1
      %v815 = vmul.f32 %v559, 0.1
      %v816 = vmul.f32 %v560, 0.1
      %v817 = vmul.f32 %v561, 0.1
      %v818 = vmul.f32 %v562, 0.1
      %v819 = vmul.f32 %v563, 0.1
      %v820 = vmul.f32 %v564, 0.1
      %v821 = vmul.f32 %v565, 0.1
      %v822 = vsel %vm566, %v438, %v694
      %v823 = vsel %vm567, %v439, %v695
      %v824 = vsel %vm568, %v440, %v696
      %v825 = vsel %vm569, %v441, %v697
      %v826 = vsel %vm570, %v442, %v698
      %v827 = vsel %vm571, %v443, %v699
      %v828 = vsel %vm572, %v444, %v700
      %v829 = vsel %vm573, %v445, %v701
      %v830 = vsel %vm574, %v446, %v702
      %v831 = vsel %vm575, %v447, %v703
      %v832 = vsel %vm576, %v448, %v704
      %v833 = vsel %vm577, %v449, %v705
      %v834 = vsel %vm578, %v450, %v706
      %v835 = vsel %vm579, %v451, %v707
      %v836 = vsel %vm580, %v452, %v708
      %v837 = vsel %vm581, %v453, %v709
      %v838 = vsel %vm582, %v454, %v710
      %v839 = vsel %vm583, %v455, %v711
      %v840 = vsel %vm584, %v456, %v712
      %v841 = vsel %vm585, %v457, %v713
      %v842 = vsel %vm586, %v458, %v714
      %v843 = vsel %vm587, %v459, %v715
      %v844 = vsel %vm588, %v460, %v716
      %v845 = vsel %vm589, %v461, %v717
      %v846 = vsel %vm590, %v462, %v718
      %v847 = vsel %vm591, %v463, %v719
      %v848 = vsel %vm592, %v464, %v720
      %v849 = vsel %vm593, %v465, %v721
      %v850 = vsel %vm594, %v466, %v722
      %v851 = vsel %vm595, %v467, %v723
      %v852 = vsel %vm596, %v468, %v724
      %v853 = vsel %vm597, %v469, %v725
      %v854 = vsel %vm598, %v470, %v726
      %v855 = vsel %vm599, %v471, %v727
      %v856 = vsel %vm600, %v472, %v728
      %v857 = vsel %vm601, %v473, %v729
      %v858 = vsel %vm602, %v474, %v730
      %v859 = vsel %vm603, %v475, %v731
      %v860 = vsel %vm604, %v476, %v732
      %v861 = vsel %vm605, %v477, %v733
      %v862 = vsel %vm606, %v478, %v734
      %v863 = vsel %vm607, %v479, %v735
      %v864 = vsel %vm608, %v480, %v736
      %v865 = vsel %vm609, %v481, %v737
      %v866 = vsel %vm610, %v482, %v738
      %v867 = vsel %vm611, %v483, %v739
      %v868 = vsel %vm612, %v484, %v740
      %v869 = vsel %vm613, %v485, %v741
      %v870 = vsel %vm614, %v486, %v742
      %v871 = vsel %vm615, %v487, %v743
      %v872 = vsel %vm616, %v488, %v744
      %v873 = vsel %vm617, %v489, %v745
      %v874 = vsel %vm618, %v490, %v746
      %v875 = vsel %vm619, %v491, %v747
      %v876 = vsel %vm620, %v492, %v748
      %v877 = vsel %vm621, %v493, %v749
      %v878 = vsel %vm622, %v494, %v750
      %v879 = vsel %vm623, %v495, %v751
      %v880 = vsel %vm624, %v496, %v752
      %v881 = vsel %vm625, %v497, %v753
      %v882 = vsel %vm626, %v498, %v754
      %v883 = vsel %vm627, %v499, %v755
      %v884 = vsel %vm628, %v500, %v756
      %v885 = vsel %vm629, %v501, %v757
      %v886 = vsel %vm630, %v502, %v758
      %v887 = vsel %vm631, %v503, %v759
      %v888 = vsel %vm632, %v504, %v760
      %v889 = vsel %vm633, %v505, %v761
      %v890 = vsel %vm634, %v506, %v762
      %v891 = vsel %vm635, %v507, %v763
      %v892 = vsel %vm636, %v508, %v764
      %v893 = vsel %vm637, %v509, %v765
      %v894 = vsel %vm638, %v510, %v766
      %v895 = vsel %vm639, %v511, %v767
      %v896 = vsel %vm640, %v512, %v768
      %v897 = vsel %vm641, %v513, %v769
      %v898 = vsel %vm642, %v514, %v770
      %v899 = vsel %vm643, %v515, %v771
      %v900 = vsel %vm644, %v516, %v772
      %v901 = vsel %vm645, %v517, %v773
      %v902 = vsel %vm646, %v518, %v774
      %v903 = vsel %vm647, %v519, %v775
      %v904 = vsel %vm648, %v520, %v776
      %v905 = vsel %vm649, %v521, %v777
      %v906 = vsel %vm650, %v522, %v778
      %v907 = vsel %vm651, %v523, %v779
      %v908 = vsel %vm652, %v524, %v780
      %v909 = vsel %vm653, %v525, %v781
      %v910 = vsel %vm654, %v526, %v782
      %v911 = vsel %vm655, %v527, %v783
      %v912 = vsel %vm656, %v528, %v784
      %v913 = vsel %vm657, %v529, %v785
      %v914 = vsel %vm658, %v530, %v786
      %v915 = vsel %vm659, %v531, %v787
      %v916 = vsel %vm660, %v532, %v788
      %v917 = vsel %vm661, %v533, %v789
      %v918 = vsel %vm662, %v534, %v790
      %v919 = vsel %vm663, %v535, %v791
      %v920 = vsel %vm664, %v536, %v792
      %v921 = vsel %vm665, %v537, %v793
      %v922 = vsel %vm666, %v538, %v794
      %v923 = vsel %vm667, %v539, %v795
      %v924 = vsel %vm668, %v540, %v796
      %v925 = vsel %vm669, %v541, %v797
      %v926 = vsel %vm670, %v542, %v798
      %v927 = vsel %vm671, %v543, %v799
      %v928 = vsel %vm672, %v544, %v800
      %v929 = vsel %vm673, %v545, %v801
      %v930 = vsel %vm674, %v546, %v802
      %v931 = vsel %vm675, %v547, %v803
      %v932 = vsel %vm676, %v548, %v804
      %v933 = vsel %vm677, %v549, %v805
      %v934 = vsel %vm678, %v550, %v806
      %v935 = vsel %vm679, %v551, %v807
      %v936 = vsel %vm680, %v552, %v808
      %v937 = vsel %vm681, %v553, %v809
      %v938 = vsel %vm682, %v554, %v810
      %v939 = vsel %vm683, %v555, %v811
      %v940 = vsel %vm684, %v556, %v812
      %v941 = vsel %vm685, %v557, %v813
      %v942 = vsel %vm686, %v558, %v814
      %v943 = vsel %vm687, %v559, %v815
      %v944 = vsel %vm688, %v560, %v816
      %v945 = vsel %vm689, %v561, %v817
      %v946 = vsel %vm690, %v562, %v818
      %v947 = vsel %vm691, %v563, %v819
      %v948 = vsel %vm692, %v564, %v820
      %v949 = vsel %vm693, %v565, %v821
      %950 = vst [vmem:[%s172] sm:$0xff] %v822
      %951 = vst [vmem:[%s172 + $0x8] sm:$0xff] %v823
      %952 = vst [vmem:[%s172 + $0x10] sm:$0xff] %v824
      %953 = vst [vmem:[%s172 + $0x18] sm:$0xff] %v825
      %954 = vst [vmem:[%s172 + $0x20] sm:$0xff] %v826
      %955 = vst [vmem:[%s172 + $0x28] sm:$0xff] %v827
      %956 = vst [vmem:[%s172 + $0x30] sm:$0xff] %v828
      %957 = vst [vmem:[%s172 + $0x38] sm:$0xff] %v829
      %958 = vst [vmem:[%s172 + $0x40] sm:$0xff] %v830
      %959 = vst [vmem:[%s172 + $0x48] sm:$0xff] %v831
      %960 = vst [vmem:[%s172 + $0x50] sm:$0xff] %v832
      %961 = vst [vmem:[%s172 + $0x58] sm:$0xff] %v833
      %962 = vst [vmem:[%s172 + $0x60] sm:$0xff] %v834
      %963 = vst [vmem:[%s172 + $0x68] sm:$0xff] %v835
      %964 = vst [vmem:[%s172 + $0x70] sm:$0xff] %v836
      %965 = vst [vmem:[%s172 + $0x78] sm:$0xff] %v837
      %966 = vst [vmem:[%s172 + $0x80] sm:$0xff] %v838
      %967 = vst [vmem:[%s172 + $0x88] sm:$0xff] %v839
      %968 = vst [vmem:[%s172 + $0x90] sm:$0xff] %v840
      %969 = vst [vmem:[%s172 + $0x98] sm:$0xff] %v841
      %970 = vst [vmem:[%s172 + $0xa0] sm:$0xff] %v842
      %971 = vst [vmem:[%s172 + $0xa8] sm:$0xff] %v843
      %972 = vst [vmem:[%s172 + $0xb0] sm:$0xff] %v844
      %973 = vst [vmem:[%s172 + $0xb8] sm:$0xff] %v845
      %974 = vst [vmem:[%s172 + $0xc0] sm:$0xff] %v846
      %975 = vst [vmem:[%s172 + $0xc8] sm:$0xff] %v847
      %976 = vst [vmem:[%s172 + $0xd0] sm:$0xff] %v848
      %977 = vst [vmem:[%s172 + $0xd8] sm:$0xff] %v849
      %978 = vst [vmem:[%s172 + $0xe0] sm:$0xff] %v850
      %979 = vst [vmem:[%s172 + $0xe8] sm:$0xff] %v851
      %980 = vst [vmem:[%s172 + $0xf0] sm:$0xff] %v852
      %981 = vst [vmem:[%s172 + $0xf8] sm:$0xff] %v853
      %982 = vst [vmem:[%s172 + $0x100] sm:$0xff] %v854
      %983 = vst [vmem:[%s172 + $0x108] sm:$0xff] %v855
      %984 = vst [vmem:[%s172 + $0x110] sm:$0xff] %v856
      %985 = vst [vmem:[%s172 + $0x118] sm:$0xff] %v857
      %986 = vst [vmem:[%s172 + $0x120] sm:$0xff] %v858
      %987 = vst [vmem:[%s172 + $0x128] sm:$0xff] %v859
      %988 = vst [vmem:[%s172 + $0x130] sm:$0xff] %v860
      %989 = vst [vmem:[%s172 + $0x138] sm:$0xff] %v861
      %990 = vst [vmem:[%s172 + $0x140] sm:$0xff] %v862
      %991 = vst [vmem:[%s172 + $0x148] sm:$0xff] %v863
      %992 = vst [vmem:[%s172 + $0x150] sm:$0xff] %v864
      %993 = vst [vmem:[%s172 + $0x158] sm:$0xff] %v865
      %994 = vst [vmem:[%s172 + $0x160] sm:$0xff] %v866
      %995 = vst [vmem:[%s172 + $0x168] sm:$0xff] %v867
      %996 = vst [vmem:[%s172 + $0x170] sm:$0xff] %v868
      %997 = vst [vmem:[%s172 + $0x178] sm:$0xff] %v869
      %998 = vst [vmem:[%s172 + $0x180] sm:$0xff] %v870
      %999 = vst [vmem:[%s172 + $0x188] sm:$0xff] %v871
      %1000 = vst [vmem:[%s172 + $0x190] sm:$0xff] %v872
      %1001 = vst [vmem:[%s172 + $0x198] sm:$0xff] %v873
      %1002 = vst [vmem:[%s172 + $0x1a0] sm:$0xff] %v874
      %1003 = vst [vmem:[%s172 + $0x1a8] sm:$0xff] %v875
      %1004 = vst [vmem:[%s172 + $0x1b0] sm:$0xff] %v876
      %1005 = vst [vmem:[%s172 + $0x1b8] sm:$0xff] %v877
      %1006 = vst [vmem:[%s172 + $0x1c0] sm:$0xff] %v878
      %1007 = vst [vmem:[%s172 + $0x1c8] sm:$0xff] %v879
      %1008 = vst [vmem:[%s172 + $0x1d0] sm:$0xff] %v880
      %1009 = vst [vmem:[%s172 + $0x1d8] sm:$0xff] %v881
      %1010 = vst [vmem:[%s172 + $0x1e0] sm:$0xff] %v882
      %1011 = vst [vmem:[%s172 + $0x1e8] sm:$0xff] %v883
      %1012 = vst [vmem:[%s172 + $0x1f0] sm:$0xff] %v884
      %1013 = vst [vmem:[%s172 + $0x1f8] sm:$0xff] %v885
      %1014 = vst [vmem:[%s172 + $0x200] sm:$0xff] %v886
      %1015 = vst [vmem:[%s172 + $0x208] sm:$0xff] %v887
      %1016 = vst [vmem:[%s172 + $0x210] sm:$0xff] %v888
      %1017 = vst [vmem:[%s172 + $0x218] sm:$0xff] %v889
      %1018 = vst [vmem:[%s172 + $0x220] sm:$0xff] %v890
      %1019 = vst [vmem:[%s172 + $0x228] sm:$0xff] %v891
      %1020 = vst [vmem:[%s172 + $0x230] sm:$0xff] %v892
      %1021 = vst [vmem:[%s172 + $0x238] sm:$0xff] %v893
      %1022 = vst [vmem:[%s172 + $0x240] sm:$0xff] %v894
      %1023 = vst [vmem:[%s172 + $0x248] sm:$0xff] %v895
      %1024 = vst [vmem:[%s172 + $0x250] sm:$0xff] %v896
      %1025 = vst [vmem:[%s172 + $0x258] sm:$0xff] %v897
      %1026 = vst [vmem:[%s172 + $0x260] sm:$0xff] %v898
      %1027 = vst [vmem:[%s172 + $0x268] sm:$0xff] %v899
      %1028 = vst [vmem:[%s172 + $0x270] sm:$0xff] %v900
      %1029 = vst [vmem:[%s172 + $0x278] sm:$0xff] %v901
      %1030 = vst [vmem:[%s172 + $0x280] sm:$0xff] %v902
      %1031 = vst [vmem:[%s172 + $0x288] sm:$0xff] %v903
      %1032 = vst [vmem:[%s172 + $0x290] sm:$0xff] %v904
      %1033 = vst [vmem:[%s172 + $0x298] sm:$0xff] %v905
      %1034 = vst [vmem:[%s172 + $0x2a0] sm:$0xff] %v906
      %1035 = vst [vmem:[%s172 + $0x2a8] sm:$0xff] %v907
      %1036 = vst [vmem:[%s172 + $0x2b0] sm:$0xff] %v908
      %1037 = vst [vmem:[%s172 + $0x2b8] sm:$0xff] %v909
      %1038 = vst [vmem:[%s172 + $0x2c0] sm:$0xff] %v910
      %1039 = vst [vmem:[%s172 + $0x2c8] sm:$0xff] %v911
      %1040 = vst [vmem:[%s172 + $0x2d0] sm:$0xff] %v912
      %1041 = vst [vmem:[%s172 + $0x2d8] sm:$0xff] %v913
      %1042 = vst [vmem:[%s172 + $0x2e0] sm:$0xff] %v914
      %1043 = vst [vmem:[%s172 + $0x2e8] sm:$0xff] %v915
      %1044 = vst [vmem:[%s172 + $0x2f0] sm:$0xff] %v916
      %1045 = vst [vmem:[%s172 + $0x2f8] sm:$0xff] %v917
      %1046 = vst [vmem:[%s172 + $0x300] sm:$0xff] %v918
      %1047 = vst [vmem:[%s172 + $0x308] sm:$0xff] %v919
      %1048 = vst [vmem:[%s172 + $0x310] sm:$0xff] %v920
      %1049 = vst [vmem:[%s172 + $0x318] sm:$0xff] %v921
      %1050 = vst [vmem:[%s172 + $0x320] sm:$0xff] %v922
      %1051 = vst [vmem:[%s172 + $0x328] sm:$0xff] %v923
      %1052 = vst [vmem:[%s172 + $0x330] sm:$0xff] %v924
      %1053 = vst [vmem:[%s172 + $0x338] sm:$0xff] %v925
      %1054 = vst [vmem:[%s172 + $0x340] sm:$0xff] %v926
      %1055 = vst [vmem:[%s172 + $0x348] sm:$0xff] %v927
      %1056 = vst [vmem:[%s172 + $0x350] sm:$0xff] %v928
      %1057 = vst [vmem:[%s172 + $0x358] sm:$0xff] %v929
      %1058 = vst [vmem:[%s172 + $0x360] sm:$0xff] %v930
      %1059 = vst [vmem:[%s172 + $0x368] sm:$0xff] %v931
      %1060 = vst [vmem:[%s172 + $0x370] sm:$0xff] %v932
      %1061 = vst [vmem:[%s172 + $0x378] sm:$0xff] %v933
      %1062 = vst [vmem:[%s172 + $0x380] sm:$0xff] %v934
      %1063 = vst [vmem:[%s172 + $0x388] sm:$0xff] %v935
      %1064 = vst [vmem:[%s172 + $0x390] sm:$0xff] %v936
      %1065 = vst [vmem:[%s172 + $0x398] sm:$0xff] %v937
      %1066 = vst [vmem:[%s172 + $0x3a0] sm:$0xff] %v938
      %1067 = vst [vmem:[%s172 + $0x3a8] sm:$0xff] %v939
      %1068 = vst [vmem:[%s172 + $0x3b0] sm:$0xff] %v940
      %1069 = vst [vmem:[%s172 + $0x3b8] sm:$0xff] %v941
      %1070 = vst [vmem:[%s172 + $0x3c0] sm:$0xff] %v942
      %1071 = vst [vmem:[%s172 + $0x3c8] sm:$0xff] %v943
      %1072 = vst [vmem:[%s172 + $0x3d0] sm:$0xff] %v944
      %1073 = vst [vmem:[%s172 + $0x3d8] sm:$0xff] %v945
      %1074 = vst [vmem:[%s172 + $0x3e0] sm:$0xff] %v946
      %1075 = vst [vmem:[%s172 + $0x3e8] sm:$0xff] %v947
      %1076 = vst [vmem:[%s172 + $0x3f0] sm:$0xff] %v948
      %1077 = vst [vmem:[%s172 + $0x3f8] sm:$0xff] %v949
      %s1078 = smul.u32 128, %s14
      %p1079 = scmp.lt.s32.totalorder %s1078, 511
      %s1080 = scalar_select %p1079, %s1078, 511
      %s1081 = smul.addr %s1080, 8
      %s1082 = scalar_lea.vmem %s3, %s1081
      // Predicated region
      $region33: #{conv_bn_lrelu.3} parent=31 // pred_check
        %p1083 = pneg %p100
      $region34: #{conv_bn_lrelu.3} parent=31 // pred_check_branch
        %1085 = sbr.rel (%p1083) target = $region36
      $region35: #{conv_bn_lrelu.3} parent=31 // pred_region
        %s1086 = smul.u32 128, %s14
      $region36: #{conv_bn_lrelu.3} parent=31 // pred_fallthru
        _
    $region32: #{conv_bn_lrelu.3} parent=5 // pred_fallthru
      _
    %p1087 = scmp.le.s32.totalorder 2, %s9
    // Predicated region
    $region37: #{conv_bn_lrelu.3} parent=5 // pred_check
      %p1088 = pneg %p1087
    $region38: #{conv_bn_lrelu.3} parent=5 // pred_check_branch
      %1090 = sbr.rel (%p1088) target = $region40
    $region39: #{conv_bn_lrelu.3} parent=5 // pred_region
      %s1091 = ssub.s32 %s9, 2
      // Predicated region
      $region41: #{conv_bn_lrelu.3} parent=39 // pred_check
        %p1092 = pneg %p106
      $region42: #{conv_bn_lrelu.3} parent=39 // pred_check_branch
        %1094 = sbr.rel (%p1092) target = $region44
      $region43: #{conv_bn_lrelu.3} parent=39 // pred_region
        %s1095 = smul.u32 128, %s15
        %p1096 = scmp.lt.s32.totalorder %s1095, 511
        %s1097 = scalar_select %p1096, %s1095, 511
        %s1098 = smul.addr %s1097, 8
        %s1099 = scalar_lea.vmem %s3, %s1098
      $region44: #{conv_bn_lrelu.3} parent=39 // pred_fallthru
        _
    $region40: #{conv_bn_lrelu.3} parent=5 // pred_fallthru
      _
  $region6: #{conv_bn_lrelu.3} parent=0 // loop_footer
    %s13 = sadd.s32 1, %s9
  $region7: #{conv_bn_lrelu.3} parent=0 // loop_footer_branch
    %8 = sbr.rel target = $region3
  $region8: #{conv_bn_lrelu.3} parent=0 // loop_exit
    _

</llo_original>
